<compile_context>
chip_gen: v5e
topology: v5e:2x2
jax: 0.10.0
libtpu: 0.0.40
codegen_flags: <defaults>
</compile_context>

<pallas_src>
import functools

import numpy as np
import jax
import jax.numpy as jnp
from jax.experimental import pallas as pl
from jax.experimental.pallas import tpu as pltpu


def _round_up(x, m):
    return (x + m - 1) // m * m


# ----------------------------------------------------------------------------
# Per-chip configuration helpers
# ----------------------------------------------------------------------------
def _vmem_limit_bytes():
    """Per-generation VMEM budget: ~100 MiB on v5e/v6e (128 MiB physical),
    ~48 MiB on v7x (64 MiB physical). Conservative fallback if the query fails."""
    try:
        cap = int(pltpu.get_tpu_info().vmem_capacity_bytes)
    except Exception:
        cap = 64 * 1024 * 1024
    return max(32 * 1024 * 1024, min(int(cap * 0.8), cap - 16 * 1024 * 1024))


_BUFFERED_ONE = None


def _buffered_one_supported():
    """Probe (once) whether pipeline_mode=pl.Buffered(1) compiles & runs here."""
    global _BUFFERED_ONE
    if _BUFFERED_ONE is not None:
        return _BUFFERED_ONE
    try:
        def _k(x_ref, o_ref):
            o_ref[...] = x_ref[...] + 1.0

        f = pl.pallas_call(
            _k,
            out_shape=jax.ShapeDtypeStruct((16, 128), jnp.float32),
            grid=(2,),
            in_specs=[pl.BlockSpec((8, 128), lambda i: (0, 0),
                                   pipeline_mode=pl.Buffered(1))],
            out_specs=pl.BlockSpec((8, 128), lambda i: (i, 0)),
        )
        jax.block_until_ready(f(jnp.zeros((8, 128), jnp.float32)))
        _BUFFERED_ONE = True
    except Exception:
        _BUFFERED_ONE = False
    return _BUFFERED_ONE


def _invariant_spec(shape, index_map):
    """BlockSpec for grid-invariant weights: single-buffered when supported
    (no point double-buffering a block that is never re-fetched)."""
    if _buffered_one_supported():
        return pl.BlockSpec(shape, index_map, pipeline_mode=pl.Buffered(1))
    return pl.BlockSpec(shape, index_map)


def _batch_block(Bp):
    # Split the padded batch into 2 blocks when possible so the "parallel"
    # batch grid axis can be sharded across v7x's two TensorCores; single
    # block otherwise (adds only a trivial outer grid level elsewhere).
    return Bp // 2 if (Bp % 16 == 0) else Bp


def _choose_time_chunk(T, max_chunk, bb, h4p, vmem_limit):
    """Pick the time-chunk Tc: bounded so the gx scratch (Tc*bb*4Hp f32) stays
    within ~1/4 of the VMEM budget, then chosen to minimize Tp - T padding
    (pure waste in the serial recurrence), preferring larger Tc to amortize
    per-grid-step overhead."""
    cap = max(1, (vmem_limit // 4) // max(1, bb * h4p * 4))
    cap = max(1, min(max_chunk, T, cap))
    best, best_key = 1, None
    for tc in range(1, cap + 1):
        key = (_round_up(T, tc), -tc)
        if best_key is None or key < best_key:
            best_key, best = key, tc
    return best


# ----------------------------------------------------------------------------
# Kernel 1: LSTM recurrence, one (batch-block, time-chunk) per grid step
# ----------------------------------------------------------------------------
def _lstm_chunk_kernel(x_ref, wih_ref, whh_ref, b_ref, out_ref,
                       gx_sc, h_sc, c_sc, *, unroll):
    # x_ref:   (Tc, bb, E)   bf16  embeddings for this chunk / batch block
    # wih_ref: (E, 4H)       bf16  input weights (transposed), grid-invariant
    # whh_ref: (H, 4H)       bf16  recurrent weights (transposed), grid-invariant
    # b_ref:   (1, 4H)       f32   combined bias (b_ih + b_hh), grid-invariant
    # out_ref: (Tc, bb, H)   bf16  hidden outputs
    # gx_sc:   (Tc, bb, 4H)  f32   precomputed input projection (VMEM scratch)
    # h_sc/c_sc: (bb, H)     f32   carried hidden / cell state across time chunks
    @pl.when(pl.program_id(1) == 0)          # first time chunk of this batch block
    def _():
        h_sc[...] = jnp.zeros_like(h_sc)
        c_sc[...] = jnp.zeros_like(c_sc)

    Tc, B, E = x_ref.shape
    H = h_sc.shape[-1]

    # Hoisted input projection for the whole chunk: one MXU matmul with a real
    # M dimension (Tc*bb), bias fused in.
    x_flat = x_ref[...].reshape(Tc * B, E)
    gx = (jnp.dot(x_flat, wih_ref[...], preferred_element_type=jnp.float32)
          + b_ref[...])
    gx_sc[...] = gx.reshape(Tc, B, 4 * H)

    # Sequential recurrence: only h @ W_hh + elementwise gates per time step.
    def step(t, carry):
        h, c = carry  # f32 (bb, H)
        g = gx_sc[t] + jnp.dot(h.astype(whh_ref.dtype), whh_ref[...],
                               preferred_element_type=jnp.float32)
        # Lane-aligned gate split (H multiple of 128); PyTorch order i, f, g, o.
        i_g = jax.nn.sigmoid(g[:, 0 * H:1 * H])
        f_g = jax.nn.sigmoid(g[:, 1 * H:2 * H])
        g_g = jnp.tanh(g[:, 2 * H:3 * H])
        o_g = jax.nn.sigmoid(g[:, 3 * H:4 * H])
        c_new = f_g * c + i_g * g_g
        h_new = o_g * jnp.tanh(c_new)
        out_ref[t] = h_new.astype(out_ref.dtype)
        return h_new, c_new

    h_f, c_f = jax.lax.fori_loop(0, Tc, step, (h_sc[...], c_sc[...]),
                                 unroll=unroll)
    h_sc[...] = h_f
    c_sc[...] = c_f


def lstm_forward(embeds_p, w_ih_t, w_hh_t, bias2d, *, time_chunk):
    """embeds_p: (Tp, Bp, Ep) bf16 -> hidden sequence (Tp, Bp, Hp) bf16."""
    Tp, Bp, E = embeds_p.shape
    H = w_hh_t.shape[0]
    H4 = w_hh_t.shape[1]
    Tc = time_chunk
    assert Tp % Tc == 0

    bb = _batch_block(Bp)
    assert Bp % bb == 0
    nb = Bp // bb
    vmem_limit = _vmem_limit_bytes()

    # Bounded unroll: full unroll only while the per-step gate temporaries
    # (bb, 4H) f32 are a handful of vregs, otherwise unroll=2 to avoid spills
    # on the serial critical path.
    unroll = True if (bb * H4 * 4 <= 64 * 1024) else 2

    return pl.pallas_call(
        functools.partial(_lstm_chunk_kernel, unroll=unroll),
        out_shape=jax.ShapeDtypeStruct((Tp, Bp, H), jnp.bfloat16),
        grid_spec=pltpu.PrefetchScalarGridSpec(
            num_scalar_prefetch=0,
            grid=(nb, Tp // Tc),
            in_specs=[
                pl.BlockSpec((Tc, bb, E), lambda b, t: (t, b, 0)),
                _invariant_spec((E, H4), lambda b, t: (0, 0)),
                _invariant_spec((H, H4), lambda b, t: (0, 0)),
                _invariant_spec((1, H4), lambda b, t: (0, 0)),
            ],
            out_specs=pl.BlockSpec((Tc, bb, H), lambda b, t: (t, b, 0)),
            scratch_shapes=[
                pltpu.VMEM((Tc, bb, H4), jnp.float32),  # precomputed input gates
                pltpu.VMEM((bb, H), jnp.float32),       # h state
                pltpu.VMEM((bb, H), jnp.float32),       # c state
            ],
        ),
        compiler_params=pltpu.CompilerParams(
            # batch blocks independent (megacore on v7x); time axis is a true
            # recurrence -> sequential.
            dimension_semantics=("parallel", "arbitrary"),
            vmem_limit_bytes=vmem_limit,
        ),
    )(embeds_p, w_ih_t, w_hh_t, bias2d)


# ----------------------------------------------------------------------------
# Kernel 2a: hidden -> word logits + log_softmax, fused (vocab fits VMEM)
# ----------------------------------------------------------------------------
def _proj_logsoftmax_kernel(h_ref, w_ref, b_ref, out_ref, *, actual_v):
    # h_ref: (tm, H) bf16, w_ref: (H, Vp) bf16, b_ref: (1, Vp) f32,
    # out_ref: (tm, Vp) f32
    logits = (jnp.dot(h_ref[...], w_ref[...], preferred_element_type=jnp.float32)
              + b_ref[...])
    col = jax.lax.broadcasted_iota(jnp.int32, logits.shape, 1)
    logits = jnp.where(col < actual_v, logits, jnp.float32(-1e30))
    m = jnp.max(logits, axis=-1, keepdims=True)
    z = logits - m
    lse = jnp.log(jnp.sum(jnp.exp(z), axis=-1, keepdims=True))
    out_ref[...] = z - lse


# ----------------------------------------------------------------------------
# Kernel 2b: vocab-tiled projection with online (running max / sum-exp) LSE
# ----------------------------------------------------------------------------
def _proj_lse_kernel(h_ref, w_ref, b_ref, logits_ref, lse_ref, m_sc, l_sc,
                     *, actual_v, vt):
    # h_ref: (tm, H) bf16, w_ref: (H, vt) bf16, b_ref: (1, vt) f32
    # logits_ref: (tm, vt) f32 (raw masked logits, written per vocab tile)
    # lse_ref: (tm, 1) f32 (finalized on the last vocab tile)
    j = pl.program_id(1)

    @pl.when(j == 0)
    def _():
        m_sc[...] = jnp.full_like(m_sc, -jnp.inf)
        l_sc[...] = jnp.zeros_like(l_sc)

    logits = (jnp.dot(h_ref[...], w_ref[...], preferred_element_type=jnp.float32)
              + b_ref[...])
    col = jax.lax.broadcasted_iota(jnp.int32, logits.shape, 1) + j * vt
    logits = jnp.where(col < actual_v, logits, jnp.float32(-1e30))
    logits_ref[...] = logits

    m_new = jnp.maximum(m_sc[...], jnp.max(logits, axis=-1, keepdims=True))
    l_sc[...] = (l_sc[...] * jnp.exp(m_sc[...] - m_new)
                 + jnp.sum(jnp.exp(logits - m_new), axis=-1, keepdims=True))
    m_sc[...] = m_new

    @pl.when(j == pl.num_programs(1) - 1)
    def _():
        lse_ref[...] = m_sc[...] + jnp.log(l_sc[...])


def proj_log_softmax(hidden, w_out_t, b_out, *, actual_v, row_block=256,
                     vocab_block=None):
    """hidden: (N, Hp) bf16 (valid rows only) -> (N, Vp) f32 log-probabilities."""
    N, H = hidden.shape
    Vp = w_out_t.shape[1]
    vmem_limit = _vmem_limit_bytes()

    tm = min(row_block, _round_up(N, 8))
    Np = _round_up(N, tm)
    if Np != N:
        hidden = jnp.pad(hidden, ((0, Np - N), (0, 0)))
    b2d = b_out.reshape(1, Vp)

    # Fused-path VMEM footprint estimate (weights single-buffered if supported).
    w_bufs = 1 if _buffered_one_supported() else 2
    fused_bytes = (w_bufs * H * Vp * 2 + w_bufs * Vp * 4
                   + 2 * tm * H * 2 + 2 * tm * Vp * 4)
    use_fused = (vocab_block is None) and (fused_bytes <= vmem_limit // 2)

    if use_fused:
        out = pl.pallas_call(
            functools.partial(_proj_logsoftmax_kernel, actual_v=actual_v),
            out_shape=jax.ShapeDtypeStruct((Np, Vp), jnp.float32),
            grid_spec=pltpu.PrefetchScalarGridSpec(
                num_scalar_prefetch=0,
                grid=(Np // tm,),
                in_specs=[
                    pl.BlockSpec((tm, H), lambda i: (i, 0)),
                    _invariant_spec((H, Vp), lambda i: (0, 0)),
                    _invariant_spec((1, Vp), lambda i: (0, 0)),
                ],
                out_specs=pl.BlockSpec((tm, Vp), lambda i: (i, 0)),
            ),
            compiler_params=pltpu.CompilerParams(
                dimension_semantics=("parallel",),
                vmem_limit_bytes=vmem_limit),
        )(hidden, w_out_t, b2d)
        return out[:N]

    # Vocab-tiled path: W_out streamed in (Hp, vt) tiles; per-row LSE reduced
    # online and finalized on the last tile; normalization is one cheap
    # elementwise subtract outside the kernel.
    vt = vocab_block if vocab_block is not None else 512
    vt = max(128, min((vt // 128) * 128, Vp))
    while Vp % vt != 0:          # Vp is a multiple of 128, so this terminates
        vt -= 128
    nv = Vp // vt

    logits, lse = pl.pallas_call(
        functools.partial(_proj_lse_kernel, actual_v=actual_v, vt=vt),
        out_shape=(jax.ShapeDtypeStruct((Np, Vp), jnp.float32),
                   jax.ShapeDtypeStruct((Np, 1), jnp.float32)),
        grid_spec=pltpu.PrefetchScalarGridSpec(
            num_scalar_prefetch=0,
            grid=(Np // tm, nv),
            in_specs=[
                pl.BlockSpec((tm, H), lambda i, j: (i, 0)),
                pl.BlockSpec((H, vt), lambda i, j: (0, j)),
                pl.BlockSpec((1, vt), lambda i, j: (0, j)),
            ],
            out_specs=[
                pl.BlockSpec((tm, vt), lambda i, j: (i, j)),
                pl.BlockSpec((tm, 1), lambda i, j: (i, 0)),
            ],
            scratch_shapes=[
                pltpu.VMEM((tm, 1), jnp.float32),   # running max
                pltpu.VMEM((tm, 1), jnp.float32),   # running sum-exp
            ],
        ),
        compiler_params=pltpu.CompilerParams(
            dimension_semantics=("parallel", "arbitrary"),
            vmem_limit_bytes=vmem_limit),
    )(hidden, w_out_t, b2d)
    return (logits - lse)[:N]


# ----------------------------------------------------------------------------
# Full model forward (embedding gather is plain-JAX glue)
# ----------------------------------------------------------------------------
def lstm_language_model_forward(sentence, packed, *, time_chunk=32,
                                vocab_block=None):
    """sentence: (T, B) int32 token ids -> (T, B, V) f32 log-probabilities."""
    d = packed["dims"]
    T, B = sentence.shape
    Bp = _round_up(B, 8)
    bb = _batch_block(Bp)
    vmem_limit = _vmem_limit_bytes()

    Tc = _choose_time_chunk(T, time_chunk, bb, 4 * d["Hp"], vmem_limit)
    Tp = _round_up(T, Tc)

    embeds = jnp.take(packed["embedding"], sentence, axis=0)        # (T, B, Ep) bf16
    embeds = jnp.pad(embeds, ((0, Tp - T), (0, Bp - B), (0, 0)))    # zero-pad T, B

    lstm_out = lstm_forward(
        embeds, packed["w_ih_t"], packed["w_hh_t"], packed["lstm_bias"],
        time_chunk=Tc)                                              # (Tp, Bp, Hp) bf16

    # Kernel 2 only processes VALID rows (avoids Tp*Bp/(T*B) wasted vocab matmuls).
    hidden_valid = lstm_out[:T, :B, :].reshape(T * B, d["Hp"])
    log_probs = proj_log_softmax(
        hidden_valid, packed["w_out_t"], packed["b_out"],
        actual_v=d["V"], vocab_block=vocab_block)                   # (T*B, Vp) f32
    return log_probs.reshape(T, B, d["Vp"])[:, :, :d["V"]]


# ----------------------------------------------------------------------------
# Deterministic parameter init (PyTorch-layout, f32) + packing for the kernels
# ----------------------------------------------------------------------------
def init_params(key, embedding_dim, hidden_dim, min_output_word_id, max_word_id):
    E, H = embedding_dim, hidden_dim
    vocab_in = max_word_id + 1
    V = max_word_id - min_output_word_id + 1
    ks = jax.random.split(key, 7)

    embedding = jax.random.normal(ks[0], (vocab_in, E), jnp.float32) * 0.1
    embedding = embedding.at[0].set(0.0)  # padding_idx=0

    w_ih = jax.random.normal(ks[1], (4 * H, E), jnp.float32) * 0.1
    w_hh = jax.random.normal(ks[2], (4 * H, H), jnp.float32) * 0.1
    b_ih = jax.random.normal(ks[3], (4 * H,), jnp.float32) * 0.1
    b_hh = jax.random.normal(ks[4], (4 * H,), jnp.float32) * 0.1

    w_out = jax.random.normal(ks[5], (V, H), jnp.float32) * 0.1
    b_out = jax.random.normal(ks[6], (V,), jnp.float32) * 0.1

    return {"embedding": embedding, "w_ih": w_ih, "w_hh": w_hh,
            "b_ih": b_ih, "b_hh": b_hh, "w_out": w_out, "b_out": b_out}


def pack_params(params, embedding_dim, hidden_dim, min_output_word_id, max_word_id):
    """Pad to TPU-friendly shapes (E,H,V -> multiples of 128, per-gate padding of H)
    and cast MXU operands to bf16. Zero padding keeps padded lanes inert."""
    E, H = embedding_dim, hidden_dim
    V = max_word_id - min_output_word_id + 1
    Ep, Hp, Vp = _round_up(E, 128), _round_up(H, 128), _round_up(V, 128)

    emb_p = jnp.pad(params["embedding"], ((0, 0), (0, Ep - E)))

    def pad_gate_rows(w, in_dim, in_pad):
        # (4H, in) -> per-gate pad of H rows and of the input dim -> (4Hp, in_pad)
        w4 = w.reshape(4, H, in_dim)
        w4 = jnp.pad(w4, ((0, 0), (0, Hp - H), (0, in_pad - in_dim)))
        return w4.reshape(4 * Hp, in_pad)

    w_ih_p = pad_gate_rows(params["w_ih"], E, Ep)          # (4Hp, Ep)
    w_hh_p = pad_gate_rows(params["w_hh"], H, Hp)          # (4Hp, Hp)
    bias = (params["b_ih"] + params["b_hh"]).reshape(4, H)
    bias_p = jnp.pad(bias, ((0, 0), (0, Hp - H))).reshape(1, 4 * Hp)

    w_out_p = jnp.pad(params["w_out"], ((0, Vp - V), (0, Hp - H)))  # (Vp, Hp)
    b_out_p = jnp.pad(params["b_out"], (0, Vp - V))                 # (Vp,)

    return {
        "embedding": emb_p.astype(jnp.bfloat16),     # bf16 halves gather/DMA bytes
        "w_ih_t": w_ih_p.T.astype(jnp.bfloat16),     # (Ep, 4Hp)
        "w_hh_t": w_hh_p.T.astype(jnp.bfloat16),     # (Hp, 4Hp)
        "lstm_bias": bias_p.astype(jnp.float32),     # (1, 4Hp)
        "w_out_t": w_out_p.T.astype(jnp.bfloat16),   # (Hp, Vp)
        "b_out": b_out_p.astype(jnp.float32),        # (Vp,)
        "dims": {"E": E, "H": H, "V": V, "Ep": Ep, "Hp": Hp, "Vp": Vp},
    }


# ----------------------------------------------------------------------------
# Pure-JAX f32 reference (for correctness check)
# ----------------------------------------------------------------------------
def reference_forward(sentence, params):
    H = params["w_hh"].shape[1]
    B = sentence.shape[1]
    embeds = jnp.take(params["embedding"], sentence, axis=0)  # (T, B, E)
    w_ih_t = params["w_ih"].T
    w_hh_t = params["w_hh"].T
    bias = params["b_ih"] + params["b_hh"]

    def step(carry, x_t):
        h, c = carry
        gates = x_t @ w_ih_t + h @ w_hh_t + bias
        i = jax.nn.sigmoid(gates[:, 0 * H:1 * H])
        f = jax.nn.sigmoid(gates[:, 1 * H:2 * H])
        g = jnp.tanh(gates[:, 2 * H:3 * H])
        o = jax.nn.sigmoid(gates[:, 3 * H:4 * H])
        c_new = f * c + i * g
        h_new = o * jnp.tanh(c_new)
        return (h_new, c_new), h_new

    init = (jnp.zeros((B, H), jnp.float32), jnp.zeros((B, H), jnp.float32))
    _, hs = jax.lax.scan(step, init, embeds)                  # (T, B, H)
    logits = hs @ params["w_out"].T + params["b_out"]
    return jax.nn.log_softmax(logits, axis=-1)


def _run_case(embedding_dim, hidden_dim, min_id, max_id, T, B, seed,
              vocab_block=None):
    key = jax.random.PRNGKey(seed)
    pkey, skey = jax.random.split(key)
    params = init_params(pkey, embedding_dim, hidden_dim, min_id, max_id)
    packed = pack_params(params, embedding_dim, hidden_dim, min_id, max_id)
    sentence = jax.random.randint(skey, (T, B), 0, max_id + 1, dtype=jnp.int32)

    out = lstm_language_model_forward(sentence, packed, vocab_block=vocab_block)
    out = jax.block_until_ready(out)
    ref = jax.block_until_ready(reference_forward(sentence, params))

    V = max_id - min_id + 1
    assert out.shape == (T, B, V)
    assert bool(jnp.all(jnp.isfinite(out)))
    # Tolerance sized for bf16 MXU operands vs. a pure-f32 reference.
    np.testing.assert_allclose(np.asarray(out), np.asarray(ref),
                               rtol=5e-2, atol=5e-2)


if __name__ == "__main__":
    # Case 1: small module-consistent shapes -> fused log-softmax path,
    # single batch block.
    _run_case(embedding_dim=16, hidden_dim=32, min_id=3, max_id=50,
              T=8, B=2, seed=0)

    # Case 2: larger vocab / batch -> vocab-tiled online log-softmax path and
    # the 2-way batch-blocked ("parallel") LSTM grid.
    _run_case(embedding_dim=20, hidden_dim=48, min_id=3, max_id=300,
              T=7, B=16, seed=1, vocab_block=128)

    print("KERNEL_OK")
</pallas_src>

<mosaic_0001>
module attributes {stable_mosaic.version = 11 : i64} {
  func.func @_k(%arg0: i32, %arg1: memref<8x128xf32, #tpu.memory_space<vmem>>, %arg2: memref<8x128xf32, #tpu.memory_space<vmem>>) attributes {dimension_semantics = [#tpu.dimension_semantics<arbitrary>], iteration_bounds = array<i64: 2>, scalar_prefetch = 0 : i64, scratch_operands = 0 : i64, tpu.core_type = #tpu.core_type<tc>, window_params = [{pipeline_mode = #tpu.pipeline_mode<synchronous>, transform_indices = @transform_0, window_bounds = array<i64: 8, 128>}, {transform_indices = @transform_1, window_bounds = array<i64: 8, 128>}]} {
    %c0 = arith.constant 0 : index
    %c0_0 = arith.constant 0 : index
    %0 = vector.load %arg1[%c0, %c0_0] : memref<8x128xf32, #tpu.memory_space<vmem>>, vector<8x128xf32>
    %cst = arith.constant 1.000000e+00 : f32
    %1 = vector.broadcast %cst : f32 to vector<8x128xf32>
    %2 = arith.addf %0, %1 : vector<8x128xf32>
    %c0_1 = arith.constant 0 : index
    %c0_2 = arith.constant 0 : index
    %3 = vector.load %arg2[%c0_1, %c0_2] : memref<8x128xf32, #tpu.memory_space<vmem>>, vector<8x128xf32>
    tpu.vector_store %arg2[%c0_1, %c0_2], %2 {strides = array<i32>} : memref<8x128xf32, #tpu.memory_space<vmem>>, vector<8x128xf32>,
    return
  }
  func.func @transform_0(%arg0: i32) -> (i32, i32) {
    %c0_i32 = arith.constant 0 : i32
    %c0_i32_0 = arith.constant 0 : i32
    %c0_i32_1 = arith.constant 0 : i32
    return %c0_i32, %c0_i32_0 : i32, i32
  }
  func.func @transform_1(%arg0: i32) -> (i32, i32) {
    %c0_i32 = arith.constant 0 : i32
    %c0_i32_0 = arith.constant 0 : i32
    return %arg0, %c0_i32 : i32, i32
  }
}

module attributes {stable_mosaic.version = 11 : i64} {
  func.func @_lstm_chunk_kernel(%arg0: i32, %arg1: i32, %arg2: memref<8x8x128xbf16, #tpu.memory_space<vmem>>, %arg3: memref<128x512xbf16, #tpu.memory_space<vmem>>, %arg4: memref<128x512xbf16, #tpu.memory_space<vmem>>, %arg5: memref<1x512xf32, #tpu.memory_space<vmem>>, %arg6: memref<8x8x128xbf16, #tpu.memory_space<vmem>>, %arg7: memref<8x8x512xf32, #tpu.memory_space<vmem>>, %arg8: memref<8x128xf32, #tpu.memory_space<vmem>>, %arg9: memref<8x128xf32, #tpu.memory_space<vmem>>) attributes {dimension_semantics = [#tpu.dimension_semantics<parallel>, #tpu.dimension_semantics<arbitrary>], iteration_bounds = array<i64: 1, 1>, scalar_prefetch = 0 : i64, scratch_operands = 3 : i64, tpu.core_type = #tpu.core_type<tc>, window_params = [{transform_indices = @transform_0, window_bounds = array<i64: 8, 8, 128>}, {pipeline_mode = #tpu.pipeline_mode<synchronous>, transform_indices = @transform_1, window_bounds = array<i64: 128, 512>}, {pipeline_mode = #tpu.pipeline_mode<synchronous>, transform_indices = @transform_2, window_bounds = array<i64: 128, 512>}, {pipeline_mode = #tpu.pipeline_mode<synchronous>, transform_indices = @transform_3, window_bounds = array<i64: 1, 512>}, {transform_indices = @transform_4, window_bounds = array<i64: 8, 8, 128>}]} {
    %c0_i32 = arith.constant 0 : i32
    %0 = arith.cmpi eq, %arg1, %c0_i32 : i32
    %1 = arith.extui %0 : i1 to i32
    %c0_i32_0 = arith.constant 0 : i32
    %2 = arith.cmpi ne, %1, %c0_i32_0 : i32
    scf.if %2 {
      %cst_99 = arith.constant 0.000000e+00 : f32
      %312 = vector.broadcast %cst_99 : f32 to vector<8x128xf32>
      %c0_100 = arith.constant 0 : index
      %c0_101 = arith.constant 0 : index
      %313 = vector.load %arg8[%c0_100, %c0_101] : memref<8x128xf32, #tpu.memory_space<vmem>>, vector<8x128xf32>
      tpu.vector_store %arg8[%c0_100, %c0_101], %312 {strides = array<i32>} : memref<8x128xf32, #tpu.memory_space<vmem>>, vector<8x128xf32>,
      %cst_102 = arith.constant 0.000000e+00 : f32
      %314 = vector.broadcast %cst_102 : f32 to vector<8x128xf32>
      %c0_103 = arith.constant 0 : index
      %c0_104 = arith.constant 0 : index
      %315 = vector.load %arg9[%c0_103, %c0_104] : memref<8x128xf32, #tpu.memory_space<vmem>>, vector<8x128xf32>
      tpu.vector_store %arg9[%c0_103, %c0_104], %314 {strides = array<i32>} : memref<8x128xf32, #tpu.memory_space<vmem>>, vector<8x128xf32>,
    } else {
    }
    %c0 = arith.constant 0 : index
    %c0_1 = arith.constant 0 : index
    %c0_2 = arith.constant 0 : index
    %3 = vector.load %arg2[%c0, %c0_1, %c0_2] : memref<8x8x128xbf16, #tpu.memory_space<vmem>>, vector<8x8x128xbf16>
    %4 = vector.shape_cast %3 : vector<8x8x128xbf16> to vector<64x128xbf16>
    %c0_3 = arith.constant 0 : index
    %c0_4 = arith.constant 0 : index
    %5 = vector.load %arg3[%c0_3, %c0_4] : memref<128x512xbf16, #tpu.memory_space<vmem>>, vector<128x512xbf16>
    %cst = arith.constant dense<0.000000e+00> : vector<64x512xf32>
    %6 = tpu.matmul %4, %5, %cst {dimension_numbers = #tpu.dot_dimension_numbers<[1], [0], [0], [1], [0, 0, 1, 1], [], []>} : vector<64x128xbf16>, vector<128x512xbf16>, vector<64x512xf32> -> vector<64x512xf32>
    %c0_5 = arith.constant 0 : index
    %c0_6 = arith.constant 0 : index
    %7 = vector.load %arg5[%c0_5, %c0_6] : memref<1x512xf32, #tpu.memory_space<vmem>>, vector<1x512xf32>
    %8 = vector.broadcast %7 : vector<1x512xf32> to vector<64x512xf32>
    %9 = arith.addf %6, %8 : vector<64x512xf32>
    %10 = vector.shape_cast %9 : vector<64x512xf32> to vector<8x8x512xf32>
    %c0_7 = arith.constant 0 : index
    %c0_8 = arith.constant 0 : index
    %c0_9 = arith.constant 0 : index
    %11 = vector.load %arg7[%c0_7, %c0_8, %c0_9] : memref<8x8x512xf32, #tpu.memory_space<vmem>>, vector<8x8x512xf32>
    tpu.vector_store %arg7[%c0_7, %c0_8, %c0_9], %10 {strides = array<i32>} : memref<8x8x512xf32, #tpu.memory_space<vmem>>, vector<8x8x512xf32>,
    %c0_10 = arith.constant 0 : index
    %c0_11 = arith.constant 0 : index
    %12 = vector.load %arg8[%c0_10, %c0_11] : memref<8x128xf32, #tpu.memory_space<vmem>>, vector<8x128xf32>
    %c0_12 = arith.constant 0 : index
    %c0_13 = arith.constant 0 : index
    %13 = vector.load %arg9[%c0_12, %c0_13] : memref<8x128xf32, #tpu.memory_space<vmem>>, vector<8x128xf32>
    %c0_i32_14 = arith.constant 0 : i32
    %14 = arith.index_cast %c0_i32_14 : i32 to index
    %c0_15 = arith.constant 0 : index
    %c0_16 = arith.constant 0 : index
    %15 = vector.load %arg7[%14, %c0_15, %c0_16] : memref<8x8x512xf32, #tpu.memory_space<vmem>>, vector<1x8x512xf32>
    %16 = vector.shape_cast %15 : vector<1x8x512xf32> to vector<8x512xf32>
    %17 = arith.truncf %12 : vector<8x128xf32> to vector<8x128xbf16>
    %c0_17 = arith.constant 0 : index
    %c0_18 = arith.constant 0 : index
    %18 = vector.load %arg4[%c0_17, %c0_18] : memref<128x512xbf16, #tpu.memory_space<vmem>>, vector<128x512xbf16>
    %cst_19 = arith.constant dense<0.000000e+00> : vector<8x512xf32>
    %19 = tpu.matmul %17, %18, %cst_19 {dimension_numbers = #tpu.dot_dimension_numbers<[1], [0], [0], [1], [0, 0, 1, 1], [], []>} : vector<8x128xbf16>, vector<128x512xbf16>, vector<8x512xf32> -> vector<8x512xf32>
    %20 = arith.addf %16, %19 : vector<8x512xf32>
    %21 = vector.extract_strided_slice %20 {offsets = [0, 0], sizes = [8, 128], strides = [1, 1]} : vector<8x512xf32> to vector<8x128xf32>
    %22 = arith.negf %21 : vector<8x128xf32>
    %23 = math.exp %22 : vector<8x128xf32>
    %cst_20 = arith.constant 1.000000e+00 : f32
    %24 = vector.broadcast %cst_20 : f32 to vector<8x128xf32>
    %25 = arith.addf %24, %23 : vector<8x128xf32>
    %26 = arith.divf %24, %25 : vector<8x128xf32>
    %27 = vector.extract_strided_slice %20 {offsets = [0, 128], sizes = [8, 128], strides = [1, 1]} : vector<8x512xf32> to vector<8x128xf32>
    %28 = arith.negf %27 : vector<8x128xf32>
    %29 = math.exp %28 : vector<8x128xf32>
    %cst_21 = arith.constant 1.000000e+00 : f32
    %30 = vector.broadcast %cst_21 : f32 to vector<8x128xf32>
    %31 = arith.addf %30, %29 : vector<8x128xf32>
    %32 = arith.divf %30, %31 : vector<8x128xf32>
    %33 = vector.extract_strided_slice %20 {offsets = [0, 256], sizes = [8, 128], strides = [1, 1]} : vector<8x512xf32> to vector<8x128xf32>
    %34 = math.tanh %33 : vector<8x128xf32>
    %35 = vector.extract_strided_slice %20 {offsets = [0, 384], sizes = [8, 128], strides = [1, 1]} : vector<8x512xf32> to vector<8x128xf32>
    %36 = arith.negf %35 : vector<8x128xf32>
    %37 = math.exp %36 : vector<8x128xf32>
    %cst_22 = arith.constant 1.000000e+00 : f32
    %38 = vector.broadcast %cst_22 : f32 to vector<8x128xf32>
    %39 = arith.addf %38, %37 : vector<8x128xf32>
    %40 = arith.divf %38, %39 : vector<8x128xf32>
    %41 = arith.mulf %32, %13 : vector<8x128xf32>
    %42 = arith.mulf %26, %34 : vector<8x128xf32>
    %43 = arith.addf %41, %42 : vector<8x128xf32>
    %44 = math.tanh %43 : vector<8x128xf32>
    %45 = arith.mulf %40, %44 : vector<8x128xf32>
    %46 = arith.truncf %45 : vector<8x128xf32> to vector<8x128xbf16>
    %47 = arith.index_cast %c0_i32_14 : i32 to index
    %c0_23 = arith.constant 0 : index
    %c0_24 = arith.constant 0 : index
    %48 = vector.load %arg6[%47, %c0_23, %c0_24] : memref<8x8x128xbf16, #tpu.memory_space<vmem>>, vector<1x8x128xbf16>
    %49 = vector.shape_cast %48 : vector<1x8x128xbf16> to vector<8x128xbf16>
    %50 = vector.shape_cast %46 : vector<8x128xbf16> to vector<1x8x128xbf16>
    tpu.vector_store %arg6[%47, %c0_23, %c0_24], %50 {strides = array<i32>} : memref<8x8x128xbf16, #tpu.memory_space<vmem>>, vector<1x8x128xbf16>,
    %c1_i32 = arith.constant 1 : i32
    %51 = arith.index_cast %c1_i32 : i32 to index
    %c0_25 = arith.constant 0 : index
    %c0_26 = arith.constant 0 : index
    %52 = vector.load %arg7[%51, %c0_25, %c0_26] : memref<8x8x512xf32, #tpu.memory_space<vmem>>, vector<1x8x512xf32>
    %53 = vector.shape_cast %52 : vector<1x8x512xf32> to vector<8x512xf32>
    %54 = arith.truncf %45 : vector<8x128xf32> to vector<8x128xbf16>
    %c0_27 = arith.constant 0 : index
    %c0_28 = arith.constant 0 : index
    %55 = vector.load %arg4[%c0_27, %c0_28] : memref<128x512xbf16, #tpu.memory_space<vmem>>, vector<128x512xbf16>
    %cst_29 = arith.constant dense<0.000000e+00> : vector<8x512xf32>
    %56 = tpu.matmul %54, %55, %cst_29 {dimension_numbers = #tpu.dot_dimension_numbers<[1], [0], [0], [1], [0, 0, 1, 1], [], []>} : vector<8x128xbf16>, vector<128x512xbf16>, vector<8x512xf32> -> vector<8x512xf32>
    %57 = arith.addf %53, %56 : vector<8x512xf32>
    %58 = vector.extract_strided_slice %57 {offsets = [0, 0], sizes = [8, 128], strides = [1, 1]} : vector<8x512xf32> to vector<8x128xf32>
    %59 = arith.negf %58 : vector<8x128xf32>
    %60 = math.exp %59 : vector<8x128xf32>
    %cst_30 = arith.constant 1.000000e+00 : f32
    %61 = vector.broadcast %cst_30 : f32 to vector<8x128xf32>
    %62 = arith.addf %61, %60 : vector<8x128xf32>
    %63 = arith.divf %61, %62 : vector<8x128xf32>
    %64 = vector.extract_strided_slice %57 {offsets = [0, 128], sizes = [8, 128], strides = [1, 1]} : vector<8x512xf32> to vector<8x128xf32>
    %65 = arith.negf %64 : vector<8x128xf32>
    %66 = math.exp %65 : vector<8x128xf32>
    %cst_31 = arith.constant 1.000000e+00 : f32
    %67 = vector.broadcast %cst_31 : f32 to vector<8x128xf32>
    %68 = arith.addf %67, %66 : vector<8x128xf32>
    %69 = arith.divf %67, %68 : vector<8x128xf32>
    %70 = vector.extract_strided_slice %57 {offsets = [0, 256], sizes = [8, 128], strides = [1, 1]} : vector<8x512xf32> to vector<8x128xf32>
    %71 = math.tanh %70 : vector<8x128xf32>
    %72 = vector.extract_strided_slice %57 {offsets = [0, 384], sizes = [8, 128], strides = [1, 1]} : vector<8x512xf32> to vector<8x128xf32>
    %73 = arith.negf %72 : vector<8x128xf32>
    %74 = math.exp %73 : vector<8x128xf32>
    %cst_32 = arith.constant 1.000000e+00 : f32
    %75 = vector.broadcast %cst_32 : f32 to vector<8x128xf32>
    %76 = arith.addf %75, %74 : vector<8x128xf32>
    %77 = arith.divf %75, %76 : vector<8x128xf32>
    %78 = arith.mulf %69, %43 : vector<8x128xf32>
    %79 = arith.mulf %63, %71 : vector<8x128xf32>
    %80 = arith.addf %78, %79 : vector<8x128xf32>
    %81 = math.tanh %80 : vector<8x128xf32>
    %82 = arith.mulf %77, %81 : vector<8x128xf32>
    %83 = arith.truncf %82 : vector<8x128xf32> to vector<8x128xbf16>
    %84 = arith.index_cast %c1_i32 : i32 to index
    %c0_33 = arith.constant 0 : index
    %c0_34 = arith.constant 0 : index
    %85 = vector.load %arg6[%84, %c0_33, %c0_34] : memref<8x8x128xbf16, #tpu.memory_space<vmem>>, vector<1x8x128xbf16>
    %86 = vector.shape_cast %85 : vector<1x8x128xbf16> to vector<8x128xbf16>
    %87 = vector.shape_cast %83 : vector<8x128xbf16> to vector<1x8x128xbf16>
    tpu.vector_store %arg6[%84, %c0_33, %c0_34], %87 {strides = array<i32>} : memref<8x8x128xbf16, #tpu.memory_space<vmem>>, vector<1x8x128xbf16>,
    %c2_i32 = arith.constant 2 : i32
    %88 = arith.index_cast %c2_i32 : i32 to index
    %c0_35 = arith.constant 0 : index
    %c0_36 = arith.constant 0 : index
    %89 = vector.load %arg7[%88, %c0_35, %c0_36] : memref<8x8x512xf32, #tpu.memory_space<vmem>>, vector<1x8x512xf32>
    %90 = vector.shape_cast %89 : vector<1x8x512xf32> to vector<8x512xf32>
    %91 = arith.truncf %82 : vector<8x128xf32> to vector<8x128xbf16>
    %c0_37 = arith.constant 0 : index
    %c0_38 = arith.constant 0 : index
    %92 = vector.load %arg4[%c0_37, %c0_38] : memref<128x512xbf16, #tpu.memory_space<vmem>>, vector<128x512xbf16>
    %cst_39 = arith.constant dense<0.000000e+00> : vector<8x512xf32>
    %93 = tpu.matmul %91, %92, %cst_39 {dimension_numbers = #tpu.dot_dimension_numbers<[1], [0], [0], [1], [0, 0, 1, 1], [], []>} : vector<8x128xbf16>, vector<128x512xbf16>, vector<8x512xf32> -> vector<8x512xf32>
    %94 = arith.addf %90, %93 : vector<8x512xf32>
    %95 = vector.extract_strided_slice %94 {offsets = [0, 0], sizes = [8, 128], strides = [1, 1]} : vector<8x512xf32> to vector<8x128xf32>
    %96 = arith.negf %95 : vector<8x128xf32>
    %97 = math.exp %96 : vector<8x128xf32>
    %cst_40 = arith.constant 1.000000e+00 : f32
    %98 = vector.broadcast %cst_40 : f32 to vector<8x128xf32>
    %99 = arith.addf %98, %97 : vector<8x128xf32>
    %100 = arith.divf %98, %99 : vector<8x128xf32>
    %101 = vector.extract_strided_slice %94 {offsets = [0, 128], sizes = [8, 128], strides = [1, 1]} : vector<8x512xf32> to vector<8x128xf32>
    %102 = arith.negf %101 : vector<8x128xf32>
    %103 = math.exp %102 : vector<8x128xf32>
    %cst_41 = arith.constant 1.000000e+00 : f32
    %104 = vector.broadcast %cst_41 : f32 to vector<8x128xf32>
    %105 = arith.addf %104, %103 : vector<8x128xf32>
    %106 = arith.divf %104, %105 : vector<8x128xf32>
    %107 = vector.extract_strided_slice %94 {offsets = [0, 256], sizes = [8, 128], strides = [1, 1]} : vector<8x512xf32> to vector<8x128xf32>
    %108 = math.tanh %107 : vector<8x128xf32>
    %109 = vector.extract_strided_slice %94 {offsets = [0, 384], sizes = [8, 128], strides = [1, 1]} : vector<8x512xf32> to vector<8x128xf32>
    %110 = arith.negf %109 : vector<8x128xf32>
    %111 = math.exp %110 : vector<8x128xf32>
    %cst_42 = arith.constant 1.000000e+00 : f32
    %112 = vector.broadcast %cst_42 : f32 to vector<8x128xf32>
    %113 = arith.addf %112, %111 : vector<8x128xf32>
    %114 = arith.divf %112, %113 : vector<8x128xf32>
    %115 = arith.mulf %106, %80 : vector<8x128xf32>
    %116 = arith.mulf %100, %108 : vector<8x128xf32>
    %117 = arith.addf %115, %116 : vector<8x128xf32>
    %118 = math.tanh %117 : vector<8x128xf32>
    %119 = arith.mulf %114, %118 : vector<8x128xf32>
    %120 = arith.truncf %119 : vector<8x128xf32> to vector<8x128xbf16>
    %121 = arith.index_cast %c2_i32 : i32 to index
    %c0_43 = arith.constant 0 : index
    %c0_44 = arith.constant 0 : index
    %122 = vector.load %arg6[%121, %c0_43, %c0_44] : memref<8x8x128xbf16, #tpu.memory_space<vmem>>, vector<1x8x128xbf16>
    %123 = vector.shape_cast %122 : vector<1x8x128xbf16> to vector<8x128xbf16>
    %124 = vector.shape_cast %120 : vector<8x128xbf16> to vector<1x8x128xbf16>
    tpu.vector_store %arg6[%121, %c0_43, %c0_44], %124 {strides = array<i32>} : memref<8x8x128xbf16, #tpu.memory_space<vmem>>, vector<1x8x128xbf16>,
    %c3_i32 = arith.constant 3 : i32
    %125 = arith.index_cast %c3_i32 : i32 to index
    %c0_45 = arith.constant 0 : index
    %c0_46 = arith.constant 0 : index
    %126 = vector.load %arg7[%125, %c0_45, %c0_46] : memref<8x8x512xf32, #tpu.memory_space<vmem>>, vector<1x8x512xf32>
    %127 = vector.shape_cast %126 : vector<1x8x512xf32> to vector<8x512xf32>
    %128 = arith.truncf %119 : vector<8x128xf32> to vector<8x128xbf16>
    %c0_47 = arith.constant 0 : index
    %c0_48 = arith.constant 0 : index
    %129 = vector.load %arg4[%c0_47, %c0_48] : memref<128x512xbf16, #tpu.memory_space<vmem>>, vector<128x512xbf16>
    %cst_49 = arith.constant dense<0.000000e+00> : vector<8x512xf32>
    %130 = tpu.matmul %128, %129, %cst_49 {dimension_numbers = #tpu.dot_dimension_numbers<[1], [0], [0], [1], [0, 0, 1, 1], [], []>} : vector<8x128xbf16>, vector<128x512xbf16>, vector<8x512xf32> -> vector<8x512xf32>
    %131 = arith.addf %127, %130 : vector<8x512xf32>
    %132 = vector.extract_strided_slice %131 {offsets = [0, 0], sizes = [8, 128], strides = [1, 1]} : vector<8x512xf32> to vector<8x128xf32>
    %133 = arith.negf %132 : vector<8x128xf32>
    %134 = math.exp %133 : vector<8x128xf32>
    %cst_50 = arith.constant 1.000000e+00 : f32
    %135 = vector.broadcast %cst_50 : f32 to vector<8x128xf32>
    %136 = arith.addf %135, %134 : vector<8x128xf32>
    %137 = arith.divf %135, %136 : vector<8x128xf32>
    %138 = vector.extract_strided_slice %131 {offsets = [0, 128], sizes = [8, 128], strides = [1, 1]} : vector<8x512xf32> to vector<8x128xf32>
    %139 = arith.negf %138 : vector<8x128xf32>
    %140 = math.exp %139 : vector<8x128xf32>
    %cst_51 = arith.constant 1.000000e+00 : f32
    %141 = vector.broadcast %cst_51 : f32 to vector<8x128xf32>
    %142 = arith.addf %141, %140 : vector<8x128xf32>
    %143 = arith.divf %141, %142 : vector<8x128xf32>
    %144 = vector.extract_strided_slice %131 {offsets = [0, 256], sizes = [8, 128], strides = [1, 1]} : vector<8x512xf32> to vector<8x128xf32>
    %145 = math.tanh %144 : vector<8x128xf32>
    %146 = vector.extract_strided_slice %131 {offsets = [0, 384], sizes = [8, 128], strides = [1, 1]} : vector<8x512xf32> to vector<8x128xf32>
    %147 = arith.negf %146 : vector<8x128xf32>
    %148 = math.exp %147 : vector<8x128xf32>
    %cst_52 = arith.constant 1.000000e+00 : f32
    %149 = vector.broadcast %cst_52 : f32 to vector<8x128xf32>
    %150 = arith.addf %149, %148 : vector<8x128xf32>
    %151 = arith.divf %149, %150 : vector<8x128xf32>
    %152 = arith.mulf %143, %117 : vector<8x128xf32>
    %153 = arith.mulf %137, %145 : vector<8x128xf32>
    %154 = arith.addf %152, %153 : vector<8x128xf32>
    %155 = math.tanh %154 : vector<8x128xf32>
    %156 = arith.mulf %151, %155 : vector<8x128xf32>
    %157 = arith.truncf %156 : vector<8x128xf32> to vector<8x128xbf16>
    %158 = arith.index_cast %c3_i32 : i32 to index
    %c0_53 = arith.constant 0 : index
    %c0_54 = arith.constant 0 : index
    %159 = vector.load %arg6[%158, %c0_53, %c0_54] : memref<8x8x128xbf16, #tpu.memory_space<vmem>>, vector<1x8x128xbf16>
    %160 = vector.shape_cast %159 : vector<1x8x128xbf16> to vector<8x128xbf16>
    %161 = vector.shape_cast %157 : vector<8x128xbf16> to vector<1x8x128xbf16>
    tpu.vector_store %arg6[%158, %c0_53, %c0_54], %161 {strides = array<i32>} : memref<8x8x128xbf16, #tpu.memory_space<vmem>>, vector<1x8x128xbf16>,
    %c4_i32 = arith.constant 4 : i32
    %162 = arith.index_cast %c4_i32 : i32 to index
    %c0_55 = arith.constant 0 : index
    %c0_56 = arith.constant 0 : index
    %163 = vector.load %arg7[%162, %c0_55, %c0_56] : memref<8x8x512xf32, #tpu.memory_space<vmem>>, vector<1x8x512xf32>
    %164 = vector.shape_cast %163 : vector<1x8x512xf32> to vector<8x512xf32>
    %165 = arith.truncf %156 : vector<8x128xf32> to vector<8x128xbf16>
    %c0_57 = arith.constant 0 : index
    %c0_58 = arith.constant 0 : index
    %166 = vector.load %arg4[%c0_57, %c0_58] : memref<128x512xbf16, #tpu.memory_space<vmem>>, vector<128x512xbf16>
    %cst_59 = arith.constant dense<0.000000e+00> : vector<8x512xf32>
    %167 = tpu.matmul %165, %166, %cst_59 {dimension_numbers = #tpu.dot_dimension_numbers<[1], [0], [0], [1], [0, 0, 1, 1], [], []>} : vector<8x128xbf16>, vector<128x512xbf16>, vector<8x512xf32> -> vector<8x512xf32>
    %168 = arith.addf %164, %167 : vector<8x512xf32>
    %169 = vector.extract_strided_slice %168 {offsets = [0, 0], sizes = [8, 128], strides = [1, 1]} : vector<8x512xf32> to vector<8x128xf32>
    %170 = arith.negf %169 : vector<8x128xf32>
    %171 = math.exp %170 : vector<8x128xf32>
    %cst_60 = arith.constant 1.000000e+00 : f32
    %172 = vector.broadcast %cst_60 : f32 to vector<8x128xf32>
    %173 = arith.addf %172, %171 : vector<8x128xf32>
    %174 = arith.divf %172, %173 : vector<8x128xf32>
    %175 = vector.extract_strided_slice %168 {offsets = [0, 128], sizes = [8, 128], strides = [1, 1]} : vector<8x512xf32> to vector<8x128xf32>
    %176 = arith.negf %175 : vector<8x128xf32>
    %177 = math.exp %176 : vector<8x128xf32>
    %cst_61 = arith.constant 1.000000e+00 : f32
    %178 = vector.broadcast %cst_61 : f32 to vector<8x128xf32>
    %179 = arith.addf %178, %177 : vector<8x128xf32>
    %180 = arith.divf %178, %179 : vector<8x128xf32>
    %181 = vector.extract_strided_slice %168 {offsets = [0, 256], sizes = [8, 128], strides = [1, 1]} : vector<8x512xf32> to vector<8x128xf32>
    %182 = math.tanh %181 : vector<8x128xf32>
    %183 = vector.extract_strided_slice %168 {offsets = [0, 384], sizes = [8, 128], strides = [1, 1]} : vector<8x512xf32> to vector<8x128xf32>
    %184 = arith.negf %183 : vector<8x128xf32>
    %185 = math.exp %184 : vector<8x128xf32>
    %cst_62 = arith.constant 1.000000e+00 : f32
    %186 = vector.broadcast %cst_62 : f32 to vector<8x128xf32>
    %187 = arith.addf %186, %185 : vector<8x128xf32>
    %188 = arith.divf %186, %187 : vector<8x128xf32>
    %189 = arith.mulf %180, %154 : vector<8x128xf32>
    %190 = arith.mulf %174, %182 : vector<8x128xf32>
    %191 = arith.addf %189, %190 : vector<8x128xf32>
    %192 = math.tanh %191 : vector<8x128xf32>
    %193 = arith.mulf %188, %192 : vector<8x128xf32>
    %194 = arith.truncf %193 : vector<8x128xf32> to vector<8x128xbf16>
    %195 = arith.index_cast %c4_i32 : i32 to index
    %c0_63 = arith.constant 0 : index
    %c0_64 = arith.constant 0 : index
    %196 = vector.load %arg6[%195, %c0_63, %c0_64] : memref<8x8x128xbf16, #tpu.memory_space<vmem>>, vector<1x8x128xbf16>
    %197 = vector.shape_cast %196 : vector<1x8x128xbf16> to vector<8x128xbf16>
    %198 = vector.shape_cast %194 : vector<8x128xbf16> to vector<1x8x128xbf16>
    tpu.vector_store %arg6[%195, %c0_63, %c0_64], %198 {strides = array<i32>} : memref<8x8x128xbf16, #tpu.memory_space<vmem>>, vector<1x8x128xbf16>,
    %c5_i32 = arith.constant 5 : i32
    %199 = arith.index_cast %c5_i32 : i32 to index
    %c0_65 = arith.constant 0 : index
    %c0_66 = arith.constant 0 : index
    %200 = vector.load %arg7[%199, %c0_65, %c0_66] : memref<8x8x512xf32, #tpu.memory_space<vmem>>, vector<1x8x512xf32>
    %201 = vector.shape_cast %200 : vector<1x8x512xf32> to vector<8x512xf32>
    %202 = arith.truncf %193 : vector<8x128xf32> to vector<8x128xbf16>
    %c0_67 = arith.constant 0 : index
    %c0_68 = arith.constant 0 : index
    %203 = vector.load %arg4[%c0_67, %c0_68] : memref<128x512xbf16, #tpu.memory_space<vmem>>, vector<128x512xbf16>
    %cst_69 = arith.constant dense<0.000000e+00> : vector<8x512xf32>
    %204 = tpu.matmul %202, %203, %cst_69 {dimension_numbers = #tpu.dot_dimension_numbers<[1], [0], [0], [1], [0, 0, 1, 1], [], []>} : vector<8x128xbf16>, vector<128x512xbf16>, vector<8x512xf32> -> vector<8x512xf32>
    %205 = arith.addf %201, %204 : vector<8x512xf32>
    %206 = vector.extract_strided_slice %205 {offsets = [0, 0], sizes = [8, 128], strides = [1, 1]} : vector<8x512xf32> to vector<8x128xf32>
    %207 = arith.negf %206 : vector<8x128xf32>
    %208 = math.exp %207 : vector<8x128xf32>
    %cst_70 = arith.constant 1.000000e+00 : f32
    %209 = vector.broadcast %cst_70 : f32 to vector<8x128xf32>
    %210 = arith.addf %209, %208 : vector<8x128xf32>
    %211 = arith.divf %209, %210 : vector<8x128xf32>
    %212 = vector.extract_strided_slice %205 {offsets = [0, 128], sizes = [8, 128], strides = [1, 1]} : vector<8x512xf32> to vector<8x128xf32>
    %213 = arith.negf %212 : vector<8x128xf32>
    %214 = math.exp %213 : vector<8x128xf32>
    %cst_71 = arith.constant 1.000000e+00 : f32
    %215 = vector.broadcast %cst_71 : f32 to vector<8x128xf32>
    %216 = arith.addf %215, %214 : vector<8x128xf32>
    %217 = arith.divf %215, %216 : vector<8x128xf32>
    %218 = vector.extract_strided_slice %205 {offsets = [0, 256], sizes = [8, 128], strides = [1, 1]} : vector<8x512xf32> to vector<8x128xf32>
    %219 = math.tanh %218 : vector<8x128xf32>
    %220 = vector.extract_strided_slice %205 {offsets = [0, 384], sizes = [8, 128], strides = [1, 1]} : vector<8x512xf32> to vector<8x128xf32>
    %221 = arith.negf %220 : vector<8x128xf32>
    %222 = math.exp %221 : vector<8x128xf32>
    %cst_72 = arith.constant 1.000000e+00 : f32
    %223 = vector.broadcast %cst_72 : f32 to vector<8x128xf32>
    %224 = arith.addf %223, %222 : vector<8x128xf32>
    %225 = arith.divf %223, %224 : vector<8x128xf32>
    %226 = arith.mulf %217, %191 : vector<8x128xf32>
    %227 = arith.mulf %211, %219 : vector<8x128xf32>
    %228 = arith.addf %226, %227 : vector<8x128xf32>
    %229 = math.tanh %228 : vector<8x128xf32>
    %230 = arith.mulf %225, %229 : vector<8x128xf32>
    %231 = arith.truncf %230 : vector<8x128xf32> to vector<8x128xbf16>
    %232 = arith.index_cast %c5_i32 : i32 to index
    %c0_73 = arith.constant 0 : index
    %c0_74 = arith.constant 0 : index
    %233 = vector.load %arg6[%232, %c0_73, %c0_74] : memref<8x8x128xbf16, #tpu.memory_space<vmem>>, vector<1x8x128xbf16>
    %234 = vector.shape_cast %233 : vector<1x8x128xbf16> to vector<8x128xbf16>
    %235 = vector.shape_cast %231 : vector<8x128xbf16> to vector<1x8x128xbf16>
    tpu.vector_store %arg6[%232, %c0_73, %c0_74], %235 {strides = array<i32>} : memref<8x8x128xbf16, #tpu.memory_space<vmem>>, vector<1x8x128xbf16>,
    %c6_i32 = arith.constant 6 : i32
    %236 = arith.index_cast %c6_i32 : i32 to index
    %c0_75 = arith.constant 0 : index
    %c0_76 = arith.constant 0 : index
    %237 = vector.load %arg7[%236, %c0_75, %c0_76] : memref<8x8x512xf32, #tpu.memory_space<vmem>>, vector<1x8x512xf32>
    %238 = vector.shape_cast %237 : vector<1x8x512xf32> to vector<8x512xf32>
    %239 = arith.truncf %230 : vector<8x128xf32> to vector<8x128xbf16>
    %c0_77 = arith.constant 0 : index
    %c0_78 = arith.constant 0 : index
    %240 = vector.load %arg4[%c0_77, %c0_78] : memref<128x512xbf16, #tpu.memory_space<vmem>>, vector<128x512xbf16>
    %cst_79 = arith.constant dense<0.000000e+00> : vector<8x512xf32>
    %241 = tpu.matmul %239, %240, %cst_79 {dimension_numbers = #tpu.dot_dimension_numbers<[1], [0], [0], [1], [0, 0, 1, 1], [], []>} : vector<8x128xbf16>, vector<128x512xbf16>, vector<8x512xf32> -> vector<8x512xf32>
    %242 = arith.addf %238, %241 : vector<8x512xf32>
    %243 = vector.extract_strided_slice %242 {offsets = [0, 0], sizes = [8, 128], strides = [1, 1]} : vector<8x512xf32> to vector<8x128xf32>
    %244 = arith.negf %243 : vector<8x128xf32>
    %245 = math.exp %244 : vector<8x128xf32>
    %cst_80 = arith.constant 1.000000e+00 : f32
    %246 = vector.broadcast %cst_80 : f32 to vector<8x128xf32>
    %247 = arith.addf %246, %245 : vector<8x128xf32>
    %248 = arith.divf %246, %247 : vector<8x128xf32>
    %249 = vector.extract_strided_slice %242 {offsets = [0, 128], sizes = [8, 128], strides = [1, 1]} : vector<8x512xf32> to vector<8x128xf32>
    %250 = arith.negf %249 : vector<8x128xf32>
    %251 = math.exp %250 : vector<8x128xf32>
    %cst_81 = arith.constant 1.000000e+00 : f32
    %252 = vector.broadcast %cst_81 : f32 to vector<8x128xf32>
    %253 = arith.addf %252, %251 : vector<8x128xf32>
    %254 = arith.divf %252, %253 : vector<8x128xf32>
    %255 = vector.extract_strided_slice %242 {offsets = [0, 256], sizes = [8, 128], strides = [1, 1]} : vector<8x512xf32> to vector<8x128xf32>
    %256 = math.tanh %255 : vector<8x128xf32>
    %257 = vector.extract_strided_slice %242 {offsets = [0, 384], sizes = [8, 128], strides = [1, 1]} : vector<8x512xf32> to vector<8x128xf32>
    %258 = arith.negf %257 : vector<8x128xf32>
    %259 = math.exp %258 : vector<8x128xf32>
    %cst_82 = arith.constant 1.000000e+00 : f32
    %260 = vector.broadcast %cst_82 : f32 to vector<8x128xf32>
    %261 = arith.addf %260, %259 : vector<8x128xf32>
    %262 = arith.divf %260, %261 : vector<8x128xf32>
    %263 = arith.mulf %254, %228 : vector<8x128xf32>
    %264 = arith.mulf %248, %256 : vector<8x128xf32>
    %265 = arith.addf %263, %264 : vector<8x128xf32>
    %266 = math.tanh %265 : vector<8x128xf32>
    %267 = arith.mulf %262, %266 : vector<8x128xf32>
    %268 = arith.truncf %267 : vector<8x128xf32> to vector<8x128xbf16>
    %269 = arith.index_cast %c6_i32 : i32 to index
    %c0_83 = arith.constant 0 : index
    %c0_84 = arith.constant 0 : index
    %270 = vector.load %arg6[%269, %c0_83, %c0_84] : memref<8x8x128xbf16, #tpu.memory_space<vmem>>, vector<1x8x128xbf16>
    %271 = vector.shape_cast %270 : vector<1x8x128xbf16> to vector<8x128xbf16>
    %272 = vector.shape_cast %268 : vector<8x128xbf16> to vector<1x8x128xbf16>
    tpu.vector_store %arg6[%269, %c0_83, %c0_84], %272 {strides = array<i32>} : memref<8x8x128xbf16, #tpu.memory_space<vmem>>, vector<1x8x128xbf16>,
    %c7_i32 = arith.constant 7 : i32
    %273 = arith.index_cast %c7_i32 : i32 to index
    %c0_85 = arith.constant 0 : index
    %c0_86 = arith.constant 0 : index
    %274 = vector.load %arg7[%273, %c0_85, %c0_86] : memref<8x8x512xf32, #tpu.memory_space<vmem>>, vector<1x8x512xf32>
    %275 = vector.shape_cast %274 : vector<1x8x512xf32> to vector<8x512xf32>
    %276 = arith.truncf %267 : vector<8x128xf32> to vector<8x128xbf16>
    %c0_87 = arith.constant 0 : index
    %c0_88 = arith.constant 0 : index
    %277 = vector.load %arg4[%c0_87, %c0_88] : memref<128x512xbf16, #tpu.memory_space<vmem>>, vector<128x512xbf16>
    %cst_89 = arith.constant dense<0.000000e+00> : vector<8x512xf32>
    %278 = tpu.matmul %276, %277, %cst_89 {dimension_numbers = #tpu.dot_dimension_numbers<[1], [0], [0], [1], [0, 0, 1, 1], [], []>} : vector<8x128xbf16>, vector<128x512xbf16>, vector<8x512xf32> -> vector<8x512xf32>
    %279 = arith.addf %275, %278 : vector<8x512xf32>
    %280 = vector.extract_strided_slice %279 {offsets = [0, 0], sizes = [8, 128], strides = [1, 1]} : vector<8x512xf32> to vector<8x128xf32>
    %281 = arith.negf %280 : vector<8x128xf32>
    %282 = math.exp %281 : vector<8x128xf32>
    %cst_90 = arith.constant 1.000000e+00 : f32
    %283 = vector.broadcast %cst_90 : f32 to vector<8x128xf32>
    %284 = arith.addf %283, %282 : vector<8x128xf32>
    %285 = arith.divf %283, %284 : vector<8x128xf32>
    %286 = vector.extract_strided_slice %279 {offsets = [0, 128], sizes = [8, 128], strides = [1, 1]} : vector<8x512xf32> to vector<8x128xf32>
    %287 = arith.negf %286 : vector<8x128xf32>
    %288 = math.exp %287 : vector<8x128xf32>
    %cst_91 = arith.constant 1.000000e+00 : f32
    %289 = vector.broadcast %cst_91 : f32 to vector<8x128xf32>
    %290 = arith.addf %289, %288 : vector<8x128xf32>
    %291 = arith.divf %289, %290 : vector<8x128xf32>
    %292 = vector.extract_strided_slice %279 {offsets = [0, 256], sizes = [8, 128], strides = [1, 1]} : vector<8x512xf32> to vector<8x128xf32>
    %293 = math.tanh %292 : vector<8x128xf32>
    %294 = vector.extract_strided_slice %279 {offsets = [0, 384], sizes = [8, 128], strides = [1, 1]} : vector<8x512xf32> to vector<8x128xf32>
    %295 = arith.negf %294 : vector<8x128xf32>
    %296 = math.exp %295 : vector<8x128xf32>
    %cst_92 = arith.constant 1.000000e+00 : f32
    %297 = vector.broadcast %cst_92 : f32 to vector<8x128xf32>
    %298 = arith.addf %297, %296 : vector<8x128xf32>
    %299 = arith.divf %297, %298 : vector<8x128xf32>
    %300 = arith.mulf %291, %265 : vector<8x128xf32>
    %301 = arith.mulf %285, %293 : vector<8x128xf32>
    %302 = arith.addf %300, %301 : vector<8x128xf32>
    %303 = math.tanh %302 : vector<8x128xf32>
    %304 = arith.mulf %299, %303 : vector<8x128xf32>
    %305 = arith.truncf %304 : vector<8x128xf32> to vector<8x128xbf16>
    %306 = arith.index_cast %c7_i32 : i32 to index
    %c0_93 = arith.constant 0 : index
    %c0_94 = arith.constant 0 : index
    %307 = vector.load %arg6[%306, %c0_93, %c0_94] : memref<8x8x128xbf16, #tpu.memory_space<vmem>>, vector<1x8x128xbf16>
    %308 = vector.shape_cast %307 : vector<1x8x128xbf16> to vector<8x128xbf16>
    %309 = vector.shape_cast %305 : vector<8x128xbf16> to vector<1x8x128xbf16>
    tpu.vector_store %arg6[%306, %c0_93, %c0_94], %309 {strides = array<i32>} : memref<8x8x128xbf16, #tpu.memory_space<vmem>>, vector<1x8x128xbf16>,
    %c8_i32 = arith.constant 8 : i32
    %c0_95 = arith.constant 0 : index
    %c0_96 = arith.constant 0 : index
    %310 = vector.load %arg8[%c0_95, %c0_96] : memref<8x128xf32, #tpu.memory_space<vmem>>, vector<8x128xf32>
    tpu.vector_store %arg8[%c0_95, %c0_96], %304 {strides = array<i32>} : memref<8x128xf32, #tpu.memory_space<vmem>>, vector<8x128xf32>,
    %c0_97 = arith.constant 0 : index
    %c0_98 = arith.constant 0 : index
    %311 = vector.load %arg9[%c0_97, %c0_98] : memref<8x128xf32, #tpu.memory_space<vmem>>, vector<8x128xf32>
    tpu.vector_store %arg9[%c0_97, %c0_98], %302 {strides = array<i32>} : memref<8x128xf32, #tpu.memory_space<vmem>>, vector<8x128xf32>,
    return
  }
  func.func @transform_0(%arg0: i32, %arg1: i32) -> (i32, i32, i32) {
    %c0_i32 = arith.constant 0 : i32
    %c0_i32_0 = arith.constant 0 : i32
    return %arg1, %arg0, %c0_i32 : i32, i32, i32
  }
  func.func @transform_1(%arg0: i32, %arg1: i32) -> (i32, i32) {
    %c0_i32 = arith.constant 0 : i32
    %c0_i32_0 = arith.constant 0 : i32
    %c0_i32_1 = arith.constant 0 : i32
    return %c0_i32, %c0_i32_0 : i32, i32
  }
  func.func @transform_2(%arg0: i32, %arg1: i32) -> (i32, i32) {
    %c0_i32 = arith.constant 0 : i32
    %c0_i32_0 = arith.constant 0 : i32
    %c0_i32_1 = arith.constant 0 : i32
    return %c0_i32, %c0_i32_0 : i32, i32
  }
  func.func @transform_3(%arg0: i32, %arg1: i32) -> (i32, i32) {
    %c0_i32 = arith.constant 0 : i32
    %c0_i32_0 = arith.constant 0 : i32
    %c0_i32_1 = arith.constant 0 : i32
    return %c0_i32, %c0_i32_0 : i32, i32
  }
  func.func @transform_4(%arg0: i32, %arg1: i32) -> (i32, i32, i32) {
    %c0_i32 = arith.constant 0 : i32
    %c0_i32_0 = arith.constant 0 : i32
    return %arg1, %arg0, %c0_i32 : i32, i32, i32
  }
}

</mosaic_0001>

<llo_original>
// kernel: tpu_custom_call.1
$region0: #{tpu_custom_call.1}
  #allocation0 [shape = 'u32[]', space=smem, size = 0x4, offset = 0x4, fixed_abs, tag = 'smem constant byte address 0x4 - core index']
  #allocation1 [shape = 'u32[72,128]{1,0:T(1,128)}', space=vmem, size = 0x9000, scoped, tag = 'internal scratch']
  %s0 = inlined_call_operand.hbm [shape: f32[8,128], index: 0, kind: input, shape index: {}]
  %s1 = inlined_call_operand.hbm [shape: f32[16,128], index: 1, kind: output, shape index: {}]
  %s2 = sld [smem:[#allocation0]]
  $region41: #{tpu_custom_call.1} parent=0
    _
  %s4 = ssub.s32 1, %s2
  %s5 = scalar_select 0, %s4, %s2
  $region1: #{tpu_custom_call.1} parent=0
    #allocation2 [shape = 'u8[4096]{0}', space=vmem, size = 0x1000, scoped, tag = 'input window, operand 0, single buffered']
    #allocation3 [shape = 's32[2]{0}', space=sflag, size = 0x8, scoped, tag = 'scoped memory for tpu_custom_call.1']
    #allocation4 [shape = 's32[2]{0}', space=sflag, size = 0x8, scoped, tag = 'scoped memory for tpu_custom_call.1']
    #allocation5 [shape = 'u8[8192]{0}', space=vmem, size = 0x2000, scoped, tag = 'output window, operand 0']
    %6 = vsyncpa [#allocation3], 0
    %7 = vsyncpa [#allocation4], 0
    %s8 = scalar_lea.sflag [#allocation4], 1
    %9 = vsyncpa %s8, 0
    loop: start=0, step=1, limit=4
    $region2: #{tpu_custom_call.1} parent=1 // loop_pre_header
      _
    $region3: #{tpu_custom_call.1} parent=1 // loop_header
      %s11 = sphi 0, %s15
      %p12 = scmp.ge.s32.totalorder %s11, 4
      %s19 = sphi 0, %s19
      %s21 = sphi 0, %s19
      %s22 = sphi 0, %s21
      %s36 = sphi 0, %s22
      %s42 = sphi 0, %s44
      %s45 = sphi 0, %s42
      %s46 = sphi 0, %s45
      %s62 = sphi 0, %s46
    $region4: #{tpu_custom_call.1} parent=1 // loop_header_branch
      %14 = sbr.rel (%p12) target = $region8
    $region5: #{tpu_custom_call.1} parent=1 // loop_body
      %s16 = ssub.s32 %s11, 1
      %s17 = ssub.s32 %s11, 2
      %s18 = sadd.s32 %s11, 1
      %s20 = sadd.s32 %s19, 1
      %p23 = scmp.eq.s32.totalorder %s11, 1
      %p24 = scmp.ne.s32.totalorder %s19, %s21
      %p25 = scmp.eq.s32.totalorder %s11, 0
      %p26 = por %p24, %p25
      %p27 = scmp.ne.s32.totalorder %s19, %s21
      %p28 = scmp.eq.s32.totalorder %s16, 1
      %p29 = por %p27, %p28
      %p30 = scmp.ne.s32.totalorder %s21, %s22
      %p31 = scmp.eq.s32.totalorder %s16, 0
      %p32 = por %p30, %p31
      %p33 = scmp.ne.s32.totalorder %s21, %s22
      %p34 = scmp.eq.s32.totalorder %s17, 1
      %p35 = por %p33, %p34
      %p37 = scmp.ne.s32.totalorder %s22, %s36
      %p38 = scmp.eq.s32.totalorder %s17, 0
      %p39 = por %p37, %p38
      %s40 = ssub.s32 %s11, %s18
      %p41 = scmp.eq.s32.totalorder %s40, 0
      %s43 = sadd.s32 %s42, 1
      %s44 = scalar_select %p41, %s42, %s43
      %p47 = pneg %p41
      %p48 = scmp.eq.s32.totalorder %s11, 1
      %p49 = por %p47, %p48
      %p50 = scmp.ne.s32.totalorder %s42, %s45
      %p51 = scmp.eq.s32.totalorder %s11, 0
      %p52 = por %p50, %p51
      %p53 = scmp.ne.s32.totalorder %s42, %s45
      %p54 = scmp.eq.s32.totalorder %s16, 1
      %p55 = por %p53, %p54
      %p56 = scmp.ne.s32.totalorder %s45, %s46
      %p57 = scmp.eq.s32.totalorder %s16, 0
      %p58 = por %p56, %p57
      %p59 = scmp.ne.s32.totalorder %s45, %s46
      %p60 = scmp.eq.s32.totalorder %s17, 1
      %p61 = por %p59, %p60
      %p63 = scmp.ne.s32.totalorder %s46, %s62
      %p64 = scmp.eq.s32.totalorder %s17, 0
      %p65 = por %p63, %p64
      %p66 = scmp.le.s32.totalorder 1, %s11
      %p67 = scmp.lt.s32.totalorder %s11, 3
      %p68 = pnand %p66, %p67
      %p69 = pneg %p68
      // Predicated region
      $region9: #{tpu_custom_call.1} parent=5 // pred_check
        _
      $region10: #{tpu_custom_call.1} parent=5 // pred_check_branch
        %71 = sbr.rel (%p68) target = $region12
      $region11: #{tpu_custom_call.1} parent=5 // pred_region
        %s72 = ssub.s32 %s11, 1
        // Predicated region
        $region13: #{tpu_custom_call.1} parent=11 // pred_check
          %p73 = pneg %p32
        $region14: #{tpu_custom_call.1} parent=11 // pred_check_branch
          %75 = sbr.rel (%p73) target = $region16
        $region15: #{tpu_custom_call.1} parent=11 // pred_region
          %77 = vsyncadd [#allocation3], 0
          %s79 = sshll.u32 %s0, 4
          %s80 = int_to_ptr.hbm [resolvable:$true] %s79
          %s81 = sshll.u32 [#allocation2], 4
          %s82 = int_to_ptr.vmem [resolvable:$true] %s81
          %84 = dma.hbm_to_vmem [thread:$0]  %s80, 128, %s82, [#allocation3]
        $region16: #{tpu_custom_call.1} parent=11 // pred_fallthru
          _
      $region12: #{tpu_custom_call.1} parent=5 // pred_fallthru
        _
      %p85 = scmp.lt.s32.totalorder %s11, 2
      // Predicated region
      $region17: #{tpu_custom_call.1} parent=5 // pred_check
        %p86 = pneg %p85
      $region18: #{tpu_custom_call.1} parent=5 // pred_check_branch
        %88 = sbr.rel (%p86) target = $region20
      $region19: #{tpu_custom_call.1} parent=5 // pred_region
        _
      $region20: #{tpu_custom_call.1} parent=5 // pred_fallthru
        _
      %p89 = scmp.le.s32.totalorder 1, %s11
      %p90 = scmp.lt.s32.totalorder %s11, 3
      %p91 = pnand %p89, %p90
      %p92 = pneg %p91
      // Predicated region
      $region21: #{tpu_custom_call.1} parent=5 // pred_check
        _
      $region22: #{tpu_custom_call.1} parent=5 // pred_check_branch
        %94 = sbr.rel (%p91) target = $region24
      $region23: #{tpu_custom_call.1} parent=5 // pred_region
        %s95 = ssub.s32 %s11, 1
        // Predicated region
        $region25: #{tpu_custom_call.1} parent=23 // pred_check
          %p96 = pneg %p32
        $region26: #{tpu_custom_call.1} parent=23 // pred_check_branch
          %98 = sbr.rel (%p96) target = $region28
        $region27: #{tpu_custom_call.1} parent=23 // pred_region
          %100 = dma.done [#allocation3], 128
        $region28: #{tpu_custom_call.1} parent=23 // pred_fallthru
          _
        %p101 = pneg %p32
        %p102 = pneg %p29
        %p103 = pneg %p58
        %p104 = pneg %p55
        %s105 = sand.u32 %s45, 1
        %s106 = scalar_lea.sflag [#allocation4], %s105
        %s107 = sand.u32 %s45, 1
        %s108 = smul.addr %s107, 8
        %s109 = scalar_lea.vmem [#allocation5], %s108
        %v110 = vld [vmem:[#allocation2] sm:$0xff]
        %v111 = vadd.f32 %v110, 1.0
        %112 = vst [vmem:[%s109] sm:$0xff] %v111
        %s113 = sand.u32 %s45, 1
        %s114 = scalar_lea.sflag [#allocation4], %s113
        %s115 = sand.u32 %s45, 1
        %s116 = smul.addr %s115, 8
        %s117 = scalar_lea.vmem [#allocation5], %s116
        // Predicated region
        $region29: #{tpu_custom_call.1} parent=23 // pred_check
          %p118 = pneg %p55
        $region30: #{tpu_custom_call.1} parent=23 // pred_check_branch
          %120 = sbr.rel (%p118) target = $region32
        $region31: #{tpu_custom_call.1} parent=23 // pred_region
          %122 = vsyncadd %s114, 0
          %s123 = smul.addr %s16, 8
          %s124 = scalar_lea.hbm %s1, %s123
          %s126 = sshll.u32 %s117, 4
          %s127 = int_to_ptr.vmem [resolvable:$true] %s126
          %s128 = sshll.u32 %s124, 4
          %s129 = int_to_ptr.hbm [resolvable:$true] %s128
          %131 = dma.vmem_to_hbm [thread:$0]  %s127, 128, %s129, %s114
        $region32: #{tpu_custom_call.1} parent=23 // pred_fallthru
          _
      $region24: #{tpu_custom_call.1} parent=5 // pred_fallthru
        _
      %p132 = scmp.le.s32.totalorder 2, %s11
      // Predicated region
      $region33: #{tpu_custom_call.1} parent=5 // pred_check
        %p133 = pneg %p132
      $region34: #{tpu_custom_call.1} parent=5 // pred_check_branch
        %135 = sbr.rel (%p133) target = $region36
      $region35: #{tpu_custom_call.1} parent=5 // pred_region
        %s136 = ssub.s32 %s11, 2
        // Predicated region
        $region37: #{tpu_custom_call.1} parent=35 // pred_check
          %p137 = pneg %p61
        $region38: #{tpu_custom_call.1} parent=35 // pred_check_branch
          %139 = sbr.rel (%p137) target = $region40
        $region39: #{tpu_custom_call.1} parent=35 // pred_region
          %s140 = sand.u32 %s46, 1
          %s141 = scalar_lea.sflag [#allocation4], %s140
          %s142 = sand.u32 %s46, 1
          %s143 = smul.addr %s142, 8
          %s144 = scalar_lea.vmem [#allocation5], %s143
          %146 = dma.done %s141, 128
        $region40: #{tpu_custom_call.1} parent=35 // pred_fallthru
          _
      $region36: #{tpu_custom_call.1} parent=5 // pred_fallthru
        _
    $region6: #{tpu_custom_call.1} parent=1 // loop_footer
      %s15 = sadd.s32 1, %s11
    $region7: #{tpu_custom_call.1} parent=1 // loop_footer_branch
      %10 = sbr.rel target = $region3
    $region8: #{tpu_custom_call.1} parent=1 // loop_exit
      _
    %147 = vsyncpa [#allocation3], 1
    %s148 = scalar_lea.sflag [#allocation3], 1
    %149 = vsyncpa %s148, 1
    %150 = vsyncpa [#allocation4], 1
    %s151 = scalar_lea.sflag [#allocation4], 1
    %152 = vsyncpa %s151, 1

// kernel: tpu_custom_call.1
$region0: #{tpu_custom_call.1}
  #allocation0 [shape = 'u32[]', space=smem, size = 0x4, offset = 0x4, fixed_abs, tag = 'smem constant byte address 0x4 - core index']
  #allocation1 [shape = 'u32[72,128]{1,0:T(1,128)}', space=vmem, size = 0x9000, scoped, tag = 'internal scratch']
  #allocation2 [shape = 'f32[8,8,512]{2,1,0:T(8,128)}', space=vmem, size = 0x20000, scoped, tag = 'scratch operand']
  #allocation3 [shape = 'f32[8,128]{1,0:T(8,128)}', space=vmem, size = 0x1000, scoped, tag = 'scratch operand']
  #allocation4 [shape = 'f32[8,128]{1,0:T(8,128)}', space=vmem, size = 0x1000, scoped, tag = 'scratch operand']
  %s0 = inlined_call_operand.hbm [shape: bf16[8,8,128], index: 0, kind: input, shape index: {}]
  %s1 = inlined_call_operand.hbm [shape: bf16[128,512], index: 1, kind: input, shape index: {}]
  %s2 = inlined_call_operand.hbm [shape: bf16[128,512], index: 2, kind: input, shape index: {}]
  %s3 = inlined_call_operand.hbm [shape: f32[1,512], index: 3, kind: input, shape index: {}]
  %s4 = inlined_call_operand.hbm [shape: bf16[8,8,128], index: 4, kind: output, shape index: {}]
  %s5 = sld [smem:[#allocation0]]
  $region46: #{tpu_custom_call.1} parent=0
    _
  %s7 = ssub.s32 1, %s5
  %s8 = scalar_select 0, %s7, %s5
  $region1: #{tpu_custom_call.1} parent=0
    #allocation5 [shape = 'u8[16384]{0}', space=vmem, size = 0x4000, scoped, tag = 'input window, operand 0, single buffered']
    #allocation6 [shape = 's32[1]{0}', space=sflag, size = 0x4, scoped, tag = 'scoped memory for tpu_custom_call.1']
    #allocation7 [shape = 's32[1]{0}', space=sflag, size = 0x4, scoped, tag = 'scoped memory for tpu_custom_call.1']
    #allocation8 [shape = 'u8[131072]{0}', space=vmem, size = 0x20000, scoped, tag = 'input window, operand 1, single buffered']
    #allocation9 [shape = 's32[1]{0}', space=sflag, size = 0x4, scoped, tag = 'scoped memory for tpu_custom_call.1']
    #allocation10 [shape = 'u8[131072]{0}', space=vmem, size = 0x20000, scoped, tag = 'input window, operand 2, single buffered']
    #allocation11 [shape = 'u8[2048]{0}', space=vmem, size = 0x800, scoped, tag = 'input window, operand 3, single buffered']
    #allocation12 [shape = 's32[1]{0}', space=sflag, size = 0x4, scoped, tag = 'scoped memory for tpu_custom_call.1']
    #allocation13 [shape = 'u8[16384]{0}', space=vmem, size = 0x4000, scoped, tag = 'output window, operand 0, single buffered']
    %9 = vsyncpa [#allocation6], 0
    %10 = vsyncpa [#allocation9], 0
    %11 = vsyncpa [#allocation12], 0
    %12 = vsyncpa [#allocation7], 0
    // Predicated region
    $region2: #{tpu_custom_call.1} parent=1 // pred_check
      _
    $region3: #{tpu_custom_call.1} parent=1 // pred_check_branch
      %14 = sbr.rel (0) target = $region5
    $region4: #{tpu_custom_call.1} parent=1 // pred_region
      %16 = vsyncadd [#allocation6], 0
      %s17 = sshll.u32 %s0, 4
      %s18 = int_to_ptr.hbm [resolvable:$true] %s17
      %s19 = sshll.u32 [#allocation5], 4
      %s20 = int_to_ptr.vmem [resolvable:$true] %s19
      %25 = dma.hbm_to_vmem [thread:$0]  %s18, 512, %s20, [#allocation6], 64, 64, 4
    $region5: #{tpu_custom_call.1} parent=1 // pred_fallthru
      _
    // Predicated region
    $region6: #{tpu_custom_call.1} parent=1 // pred_check
      _
    $region7: #{tpu_custom_call.1} parent=1 // pred_check_branch
      %27 = sbr.rel (0) target = $region9
    $region8: #{tpu_custom_call.1} parent=1 // pred_region
      %29 = vsyncadd [#allocation9], 0
      %s30 = sshll.u32 %s1, 4
      %s31 = int_to_ptr.hbm [resolvable:$true] %s30
      %s32 = sshll.u32 [#allocation8], 4
      %s33 = int_to_ptr.vmem [resolvable:$true] %s32
      %38 = dma.hbm_to_vmem [thread:$0]  %s31, 4096, %s33, [#allocation9], 256, 256, 16
    $region9: #{tpu_custom_call.1} parent=1 // pred_fallthru
      _
    // Predicated region
    $region10: #{tpu_custom_call.1} parent=1 // pred_check
      _
    $region11: #{tpu_custom_call.1} parent=1 // pred_check_branch
      %40 = sbr.rel (0) target = $region13
    $region12: #{tpu_custom_call.1} parent=1 // pred_region
      %42 = vsyncadd [#allocation9], 0
      %s43 = sshll.u32 %s2, 4
      %s44 = int_to_ptr.hbm [resolvable:$true] %s43
      %s45 = sshll.u32 [#allocation10], 4
      %s46 = int_to_ptr.vmem [resolvable:$true] %s45
      %51 = dma.hbm_to_vmem [thread:$0]  %s44, 4096, %s46, [#allocation9], 256, 256, 16
    $region13: #{tpu_custom_call.1} parent=1 // pred_fallthru
      _
    // Predicated region
    $region14: #{tpu_custom_call.1} parent=1 // pred_check
      _
    $region15: #{tpu_custom_call.1} parent=1 // pred_check_branch
      %53 = sbr.rel (0) target = $region17
    $region16: #{tpu_custom_call.1} parent=1 // pred_region
      %55 = vsyncadd [#allocation12], 0
      %s57 = sshll.u32 %s3, 4
      %s58 = int_to_ptr.hbm [resolvable:$true] %s57
      %s59 = sshll.u32 [#allocation11], 4
      %s60 = int_to_ptr.vmem [resolvable:$true] %s59
      %62 = dma.hbm_to_vmem [thread:$0]  %s58, 64, %s60, [#allocation12]
    $region17: #{tpu_custom_call.1} parent=1 // pred_fallthru
      _
    // Predicated region
    $region18: #{tpu_custom_call.1} parent=1 // pred_check
      _
    $region19: #{tpu_custom_call.1} parent=1 // pred_check_branch
      %64 = sbr.rel (0) target = $region21
    $region20: #{tpu_custom_call.1} parent=1 // pred_region
      %66 = dma.done [#allocation6], 512
    $region21: #{tpu_custom_call.1} parent=1 // pred_fallthru
      _
    // Predicated region
    $region22: #{tpu_custom_call.1} parent=1 // pred_check
      _
    $region23: #{tpu_custom_call.1} parent=1 // pred_check_branch
      %68 = sbr.rel (0) target = $region25
    $region24: #{tpu_custom_call.1} parent=1 // pred_region
      %70 = dma.done [#allocation9], 4096
    $region25: #{tpu_custom_call.1} parent=1 // pred_fallthru
      _
    // Predicated region
    $region26: #{tpu_custom_call.1} parent=1 // pred_check
      _
    $region27: #{tpu_custom_call.1} parent=1 // pred_check_branch
      %72 = sbr.rel (0) target = $region29
    $region28: #{tpu_custom_call.1} parent=1 // pred_region
      %74 = dma.done [#allocation9], 4096
    $region29: #{tpu_custom_call.1} parent=1 // pred_fallthru
      _
    // Predicated region
    $region30: #{tpu_custom_call.1} parent=1 // pred_check
      _
    $region31: #{tpu_custom_call.1} parent=1 // pred_check_branch
      %76 = sbr.rel (0) target = $region33
    $region32: #{tpu_custom_call.1} parent=1 // pred_region
      %78 = dma.done [#allocation12], 64
    $region33: #{tpu_custom_call.1} parent=1 // pred_fallthru
      _
    %p79 = scmp.eq.s32.totalorder 0, 0
    // Predicated region
    $region34: #{tpu_custom_call.1} parent=1 // pred_check
      %p80 = pneg %p79
    $region35: #{tpu_custom_call.1} parent=1 // pred_check_branch
      %82 = sbr.rel (%p80) target = $region37
    $region36: #{tpu_custom_call.1} parent=1 // pred_region
      %83 = vst [vmem:[#allocation3] sm:$0xff] 0.0
      %84 = vst [vmem:[#allocation4] sm:$0xff] 0.0
    $region37: #{tpu_custom_call.1} parent=1 // pred_fallthru
      _
    %v85 = vld [vmem:[#allocation5] sm:$0xf]
    %v86 = vld [vmem:[#allocation5 + $0x4] sm:$0xf]
    %v87 = vld [vmem:[#allocation5 + $0x8] sm:$0xf]
    %v88 = vld [vmem:[#allocation5 + $0xc] sm:$0xf]
    %v89 = vld [vmem:[#allocation5 + $0x10] sm:$0xf]
    %v90 = vld [vmem:[#allocation5 + $0x14] sm:$0xf]
    %v91 = vld [vmem:[#allocation5 + $0x18] sm:$0xf]
    %v92 = vld [vmem:[#allocation5 + $0x1c] sm:$0xf]
    %v93 = vld [vmem:[#allocation8] sm:$0xff]
    %v94 = vld [vmem:[#allocation8 + $0x8] sm:$0xff]
    %v95 = vld [vmem:[#allocation8 + $0x10] sm:$0xff]
    %v96 = vld [vmem:[#allocation8 + $0x18] sm:$0xff]
    %v97 = vld [vmem:[#allocation8 + $0x20] sm:$0xff]
    %v98 = vld [vmem:[#allocation8 + $0x28] sm:$0xff]
    %v99 = vld [vmem:[#allocation8 + $0x30] sm:$0xff]
    %v100 = vld [vmem:[#allocation8 + $0x38] sm:$0xff]
    %v101 = vld [vmem:[#allocation8 + $0x40] sm:$0xff]
    %v102 = vld [vmem:[#allocation8 + $0x48] sm:$0xff]
    %v103 = vld [vmem:[#allocation8 + $0x50] sm:$0xff]
    %v104 = vld [vmem:[#allocation8 + $0x58] sm:$0xff]
    %v105 = vld [vmem:[#allocation8 + $0x60] sm:$0xff]
    %v106 = vld [vmem:[#allocation8 + $0x68] sm:$0xff]
    %v107 = vld [vmem:[#allocation8 + $0x70] sm:$0xff]
    %v108 = vld [vmem:[#allocation8 + $0x78] sm:$0xff]
    %v109 = vld [vmem:[#allocation8 + $0x80] sm:$0xff]
    %v110 = vld [vmem:[#allocation8 + $0x88] sm:$0xff]
    %v111 = vld [vmem:[#allocation8 + $0x90] sm:$0xff]
    %v112 = vld [vmem:[#allocation8 + $0x98] sm:$0xff]
    %v113 = vld [vmem:[#allocation8 + $0xa0] sm:$0xff]
    %v114 = vld [vmem:[#allocation8 + $0xa8] sm:$0xff]
    %v115 = vld [vmem:[#allocation8 + $0xb0] sm:$0xff]
    %v116 = vld [vmem:[#allocation8 + $0xb8] sm:$0xff]
    %v117 = vld [vmem:[#allocation8 + $0xc0] sm:$0xff]
    %v118 = vld [vmem:[#allocation8 + $0xc8] sm:$0xff]
    %v119 = vld [vmem:[#allocation8 + $0xd0] sm:$0xff]
    %v120 = vld [vmem:[#allocation8 + $0xd8] sm:$0xff]
    %v121 = vld [vmem:[#allocation8 + $0xe0] sm:$0xff]
    %v122 = vld [vmem:[#allocation8 + $0xe8] sm:$0xff]
    %v123 = vld [vmem:[#allocation8 + $0xf0] sm:$0xff]
    %v124 = vld [vmem:[#allocation8 + $0xf8] sm:$0xff]
    %v125 = vld [vmem:[#allocation11] sm:$0xf]
    %v127 = vperm.slane %v125, 0
    %v128 = vperm.slane %v125, 1
    %v129 = vperm.slane %v125, 2
    %v130 = vperm.slane %v125, 3
    %v143 = vunpack.c.l.b16 %v85
    %v144 = vunpack.c.l.b16 %v86
    %v145 = vunpack.c.l.b16 %v87
    %v146 = vunpack.c.l.b16 %v88
    %v147 = vunpack.c.l.b16 %v89
    %v148 = vunpack.c.l.b16 %v90
    %v149 = vunpack.c.l.b16 %v91
    %v150 = vunpack.c.l.b16 %v92
    %v151 = vpack.c.b16 %v144, %v143
    %v152 = vpack.c.b16 %v146, %v145
    %v153 = vpack.c.b16 %v148, %v147
    %v154 = vpack.c.b16 %v150, %v149
    %v191 = vunpack.c.l.b16 %v93
    %v192 = vunpack.c.h.b16 %v93
    %v193 = vunpack.c.l.b16 %v94
    %v194 = vunpack.c.h.b16 %v94
    %v195 = vunpack.c.l.b16 %v95
    %v196 = vunpack.c.h.b16 %v95
    %v197 = vunpack.c.l.b16 %v96
    %v198 = vunpack.c.h.b16 %v96
    %v199 = vunpack.c.l.b16 %v97
    %v200 = vunpack.c.h.b16 %v97
    %v201 = vunpack.c.l.b16 %v98
    %v202 = vunpack.c.h.b16 %v98
    %v203 = vunpack.c.l.b16 %v99
    %v204 = vunpack.c.h.b16 %v99
    %v205 = vunpack.c.l.b16 %v100
    %v206 = vunpack.c.h.b16 %v100
    %v207 = vunpack.c.l.b16 %v101
    %v208 = vunpack.c.h.b16 %v101
    %v209 = vunpack.c.l.b16 %v102
    %v210 = vunpack.c.h.b16 %v102
    %v211 = vunpack.c.l.b16 %v103
    %v212 = vunpack.c.h.b16 %v103
    %v213 = vunpack.c.l.b16 %v104
    %v214 = vunpack.c.h.b16 %v104
    %v215 = vunpack.c.l.b16 %v105
    %v216 = vunpack.c.h.b16 %v105
    %v217 = vunpack.c.l.b16 %v106
    %v218 = vunpack.c.h.b16 %v106
    %v219 = vunpack.c.l.b16 %v107
    %v220 = vunpack.c.h.b16 %v107
    %v221 = vunpack.c.l.b16 %v108
    %v222 = vunpack.c.h.b16 %v108
    %v223 = vunpack.c.l.b16 %v109
    %v224 = vunpack.c.h.b16 %v109
    %v225 = vunpack.c.l.b16 %v110
    %v226 = vunpack.c.h.b16 %v110
    %v227 = vunpack.c.l.b16 %v111
    %v228 = vunpack.c.h.b16 %v111
    %v229 = vunpack.c.l.b16 %v112
    %v230 = vunpack.c.h.b16 %v112
    %v231 = vunpack.c.l.b16 %v113
    %v232 = vunpack.c.h.b16 %v113
    %v233 = vunpack.c.l.b16 %v114
    %v234 = vunpack.c.h.b16 %v114
    %v235 = vunpack.c.l.b16 %v115
    %v236 = vunpack.c.h.b16 %v115
    %v237 = vunpack.c.l.b16 %v116
    %v238 = vunpack.c.h.b16 %v116
    %v239 = vunpack.c.l.b16 %v117
    %v240 = vunpack.c.h.b16 %v117
    %v241 = vunpack.c.l.b16 %v118
    %v242 = vunpack.c.h.b16 %v118
    %v243 = vunpack.c.l.b16 %v119
    %v244 = vunpack.c.h.b16 %v119
    %v245 = vunpack.c.l.b16 %v120
    %v246 = vunpack.c.h.b16 %v120
    %v247 = vunpack.c.l.b16 %v121
    %v248 = vunpack.c.h.b16 %v121
    %v249 = vunpack.c.l.b16 %v122
    %v250 = vunpack.c.h.b16 %v122
    %v251 = vunpack.c.l.b16 %v123
    %v252 = vunpack.c.h.b16 %v123
    %v253 = vunpack.c.l.b16 %v124
    %v254 = vunpack.c.h.b16 %v124
    %v255 = vpack.c.b16 %v195, %v191
    %v256 = vpack.c.b16 %v196, %v192
    %v257 = vpack.c.b16 %v197, %v193
    %v258 = vpack.c.b16 %v198, %v194
    %v259 = vpack.c.b16 %v203, %v199
    %v260 = vpack.c.b16 %v204, %v200
    %v261 = vpack.c.b16 %v205, %v201
    %v262 = vpack.c.b16 %v206, %v202
    %v263 = vpack.c.b16 %v211, %v207
    %v264 = vpack.c.b16 %v212, %v208
    %v265 = vpack.c.b16 %v213, %v209
    %v266 = vpack.c.b16 %v214, %v210
    %v267 = vpack.c.b16 %v219, %v215
    %v268 = vpack.c.b16 %v220, %v216
    %v269 = vpack.c.b16 %v221, %v217
    %v270 = vpack.c.b16 %v222, %v218
    %v271 = vpack.c.b16 %v227, %v223
    %v272 = vpack.c.b16 %v228, %v224
    %v273 = vpack.c.b16 %v229, %v225
    %v274 = vpack.c.b16 %v230, %v226
    %v275 = vpack.c.b16 %v235, %v231
    %v276 = vpack.c.b16 %v236, %v232
    %v277 = vpack.c.b16 %v237, %v233
    %v278 = vpack.c.b16 %v238, %v234
    %v279 = vpack.c.b16 %v243, %v239
    %v280 = vpack.c.b16 %v244, %v240
    %v281 = vpack.c.b16 %v245, %v241
    %v282 = vpack.c.b16 %v246, %v242
    %v283 = vpack.c.b16 %v251, %v247
    %v284 = vpack.c.b16 %v252, %v248
    %v285 = vpack.c.b16 %v253, %v249
    %v286 = vpack.c.b16 %v254, %v250
    %319 = vmatpush.bf16.msra.mxu0 %v283
    %320 = vmatpush.bf16.msra.mxu0 %v279
    %321 = vmatpush.bf16.msra.mxu0 %v275
    %322 = vmatpush.bf16.msra.mxu0 %v271
    %323 = vmatpush.bf16.msra.mxu0 %v267
    %324 = vmatpush.bf16.msra.mxu0 %v263
    %325 = vmatpush.bf16.msra.mxu0 %v259
    %326 = vmatpush.bf16.msra.mxu0 %v255
    %327 = vmatmul.bf16.gmra.mxu0 %v151
    %v328 = vpop.f32.mrf.mxu0
    %v329 = vadd.f32 %v127, %v328
    %v330 = vpop.f32.mrf.mxu0
    %v331 = vadd.f32 %v127, %v330
    %332 = vmatmul.bf16.gmra.mxu0 %v152
    %v333 = vpop.f32.mrf.mxu0
    %v334 = vadd.f32 %v127, %v333
    %v335 = vpop.f32.mrf.mxu0
    %v336 = vadd.f32 %v127, %v335
    %337 = vmatmul.bf16.gmra.mxu0 %v153
    %v338 = vpop.f32.mrf.mxu0
    %v339 = vadd.f32 %v127, %v338
    %v340 = vpop.f32.mrf.mxu0
    %v341 = vadd.f32 %v127, %v340
    %342 = vmatmul.bf16.gmra.mxu0 %v154
    %v343 = vpop.f32.mrf.mxu0
    %v344 = vadd.f32 %v127, %v343
    %v345 = vpop.f32.mrf.mxu0
    %v346 = vadd.f32 %v127, %v345
    %347 = vdwg.mxu0
    %348 = vmatpush.bf16.msra.mxu0 %v284
    %349 = vmatpush.bf16.msra.mxu0 %v280
    %350 = vmatpush.bf16.msra.mxu0 %v276
    %351 = vmatpush.bf16.msra.mxu0 %v272
    %352 = vmatpush.bf16.msra.mxu0 %v268
    %353 = vmatpush.bf16.msra.mxu0 %v264
    %354 = vmatpush.bf16.msra.mxu0 %v260
    %355 = vmatpush.bf16.msra.mxu0 %v256
    %356 = vmatmul.bf16.gmra.mxu0 %v151
    %v357 = vpop.f32.mrf.mxu0
    %v358 = vadd.f32 %v128, %v357
    %v359 = vpop.f32.mrf.mxu0
    %v360 = vadd.f32 %v128, %v359
    %361 = vmatmul.bf16.gmra.mxu0 %v152
    %v362 = vpop.f32.mrf.mxu0
    %v363 = vadd.f32 %v128, %v362
    %v364 = vpop.f32.mrf.mxu0
    %v365 = vadd.f32 %v128, %v364
    %366 = vmatmul.bf16.gmra.mxu0 %v153
    %v367 = vpop.f32.mrf.mxu0
    %v368 = vadd.f32 %v128, %v367
    %v369 = vpop.f32.mrf.mxu0
    %v370 = vadd.f32 %v128, %v369
    %371 = vmatmul.bf16.gmra.mxu0 %v154
    %v372 = vpop.f32.mrf.mxu0
    %v373 = vadd.f32 %v128, %v372
    %v374 = vpop.f32.mrf.mxu0
    %v375 = vadd.f32 %v128, %v374
    %376 = vdwg.mxu0
    %377 = vmatpush.bf16.msra.mxu0 %v285
    %378 = vmatpush.bf16.msra.mxu0 %v281
    %379 = vmatpush.bf16.msra.mxu0 %v277
    %380 = vmatpush.bf16.msra.mxu0 %v273
    %381 = vmatpush.bf16.msra.mxu0 %v269
    %382 = vmatpush.bf16.msra.mxu0 %v265
    %383 = vmatpush.bf16.msra.mxu0 %v261
    %384 = vmatpush.bf16.msra.mxu0 %v257
    %385 = vmatmul.bf16.gmra.mxu0 %v151
    %v386 = vpop.f32.mrf.mxu0
    %v387 = vadd.f32 %v129, %v386
    %v388 = vpop.f32.mrf.mxu0
    %v389 = vadd.f32 %v129, %v388
    %390 = vmatmul.bf16.gmra.mxu0 %v152
    %v391 = vpop.f32.mrf.mxu0
    %v392 = vadd.f32 %v129, %v391
    %v393 = vpop.f32.mrf.mxu0
    %v394 = vadd.f32 %v129, %v393
    %395 = vmatmul.bf16.gmra.mxu0 %v153
    %v396 = vpop.f32.mrf.mxu0
    %v397 = vadd.f32 %v129, %v396
    %v398 = vpop.f32.mrf.mxu0
    %v399 = vadd.f32 %v129, %v398
    %400 = vmatmul.bf16.gmra.mxu0 %v154
    %v401 = vpop.f32.mrf.mxu0
    %v402 = vadd.f32 %v129, %v401
    %v403 = vpop.f32.mrf.mxu0
    %v404 = vadd.f32 %v129, %v403
    %405 = vdwg.mxu0
    %406 = vmatpush.bf16.msra.mxu0 %v286
    %407 = vmatpush.bf16.msra.mxu0 %v282
    %408 = vmatpush.bf16.msra.mxu0 %v278
    %409 = vmatpush.bf16.msra.mxu0 %v274
    %410 = vmatpush.bf16.msra.mxu0 %v270
    %411 = vmatpush.bf16.msra.mxu0 %v266
    %412 = vmatpush.bf16.msra.mxu0 %v262
    %413 = vmatpush.bf16.msra.mxu0 %v258
    %414 = vmatmul.bf16.gmra.mxu0 %v151
    %v415 = vpop.f32.mrf.mxu0
    %v416 = vadd.f32 %v130, %v415
    %v417 = vpop.f32.mrf.mxu0
    %v418 = vadd.f32 %v130, %v417
    %419 = vmatmul.bf16.gmra.mxu0 %v152
    %v420 = vpop.f32.mrf.mxu0
    %v421 = vadd.f32 %v130, %v420
    %v422 = vpop.f32.mrf.mxu0
    %v423 = vadd.f32 %v130, %v422
    %424 = vmatmul.bf16.gmra.mxu0 %v153
    %v425 = vpop.f32.mrf.mxu0
    %v426 = vadd.f32 %v130, %v425
    %v427 = vpop.f32.mrf.mxu0
    %v428 = vadd.f32 %v130, %v427
    %429 = vmatmul.bf16.gmra.mxu0 %v154
    %v430 = vpop.f32.mrf.mxu0
    %v431 = vadd.f32 %v130, %v430
    %v432 = vpop.f32.mrf.mxu0
    %v433 = vadd.f32 %v130, %v432
    %434 = vdwg.mxu0
    %435 = vst [vmem:[#allocation2] sm:$0xff] %v329
    %436 = vst [vmem:[#allocation2 + $0x8] sm:$0xff] %v358
    %437 = vst [vmem:[#allocation2 + $0x10] sm:$0xff] %v387
    %438 = vst [vmem:[#allocation2 + $0x18] sm:$0xff] %v416
    %439 = vst [vmem:[#allocation2 + $0x20] sm:$0xff] %v331
    %440 = vst [vmem:[#allocation2 + $0x28] sm:$0xff] %v360
    %441 = vst [vmem:[#allocation2 + $0x30] sm:$0xff] %v389
    %442 = vst [vmem:[#allocation2 + $0x38] sm:$0xff] %v418
    %443 = vst [vmem:[#allocation2 + $0x40] sm:$0xff] %v334
    %444 = vst [vmem:[#allocation2 + $0x48] sm:$0xff] %v363
    %445 = vst [vmem:[#allocation2 + $0x50] sm:$0xff] %v392
    %446 = vst [vmem:[#allocation2 + $0x58] sm:$0xff] %v421
    %447 = vst [vmem:[#allocation2 + $0x60] sm:$0xff] %v336
    %448 = vst [vmem:[#allocation2 + $0x68] sm:$0xff] %v365
    %449 = vst [vmem:[#allocation2 + $0x70] sm:$0xff] %v394
    %450 = vst [vmem:[#allocation2 + $0x78] sm:$0xff] %v423
    %451 = vst [vmem:[#allocation2 + $0x80] sm:$0xff] %v339
    %452 = vst [vmem:[#allocation2 + $0x88] sm:$0xff] %v368
    %453 = vst [vmem:[#allocation2 + $0x90] sm:$0xff] %v397
    %454 = vst [vmem:[#allocation2 + $0x98] sm:$0xff] %v426
    %455 = vst [vmem:[#allocation2 + $0xa0] sm:$0xff] %v341
    %456 = vst [vmem:[#allocation2 + $0xa8] sm:$0xff] %v370
    %457 = vst [vmem:[#allocation2 + $0xb0] sm:$0xff] %v399
    %458 = vst [vmem:[#allocation2 + $0xb8] sm:$0xff] %v428
    %459 = vst [vmem:[#allocation2 + $0xc0] sm:$0xff] %v344
    %460 = vst [vmem:[#allocation2 + $0xc8] sm:$0xff] %v373
    %461 = vst [vmem:[#allocation2 + $0xd0] sm:$0xff] %v402
    %462 = vst [vmem:[#allocation2 + $0xd8] sm:$0xff] %v431
    %463 = vst [vmem:[#allocation2 + $0xe0] sm:$0xff] %v346
    %464 = vst [vmem:[#allocation2 + $0xe8] sm:$0xff] %v375
    %465 = vst [vmem:[#allocation2 + $0xf0] sm:$0xff] %v404
    %466 = vst [vmem:[#allocation2 + $0xf8] sm:$0xff] %v433
    %v467 = vld [vmem:[#allocation3] sm:$0xff]
    %v468 = vld [vmem:[#allocation4] sm:$0xff]
    %v469 = vld [vmem:[#allocation2] sm:$0xff]
    %v470 = vld [vmem:[#allocation2 + $0x8] sm:$0xff]
    %v471 = vld [vmem:[#allocation2 + $0x10] sm:$0xff]
    %v472 = vld [vmem:[#allocation2 + $0x18] sm:$0xff]
    %v473 = vpack.c.bf16 %v467, %v467
    %v474 = vld [vmem:[#allocation10] sm:$0xff]
    %v475 = vld [vmem:[#allocation10 + $0x8] sm:$0xff]
    %v476 = vld [vmem:[#allocation10 + $0x10] sm:$0xff]
    %v477 = vld [vmem:[#allocation10 + $0x18] sm:$0xff]
    %v478 = vld [vmem:[#allocation10 + $0x20] sm:$0xff]
    %v479 = vld [vmem:[#allocation10 + $0x28] sm:$0xff]
    %v480 = vld [vmem:[#allocation10 + $0x30] sm:$0xff]
    %v481 = vld [vmem:[#allocation10 + $0x38] sm:$0xff]
    %v482 = vld [vmem:[#allocation10 + $0x40] sm:$0xff]
    %v483 = vld [vmem:[#allocation10 + $0x48] sm:$0xff]
    %v484 = vld [vmem:[#allocation10 + $0x50] sm:$0xff]
    %v485 = vld [vmem:[#allocation10 + $0x58] sm:$0xff]
    %v486 = vld [vmem:[#allocation10 + $0x60] sm:$0xff]
    %v487 = vld [vmem:[#allocation10 + $0x68] sm:$0xff]
    %v488 = vld [vmem:[#allocation10 + $0x70] sm:$0xff]
    %v489 = vld [vmem:[#allocation10 + $0x78] sm:$0xff]
    %v490 = vld [vmem:[#allocation10 + $0x80] sm:$0xff]
    %v491 = vld [vmem:[#allocation10 + $0x88] sm:$0xff]
    %v492 = vld [vmem:[#allocation10 + $0x90] sm:$0xff]
    %v493 = vld [vmem:[#allocation10 + $0x98] sm:$0xff]
    %v494 = vld [vmem:[#allocation10 + $0xa0] sm:$0xff]
    %v495 = vld [vmem:[#allocation10 + $0xa8] sm:$0xff]
    %v496 = vld [vmem:[#allocation10 + $0xb0] sm:$0xff]
    %v497 = vld [vmem:[#allocation10 + $0xb8] sm:$0xff]
    %v498 = vld [vmem:[#allocation10 + $0xc0] sm:$0xff]
    %v499 = vld [vmem:[#allocation10 + $0xc8] sm:$0xff]
    %v500 = vld [vmem:[#allocation10 + $0xd0] sm:$0xff]
    %v501 = vld [vmem:[#allocation10 + $0xd8] sm:$0xff]
    %v502 = vld [vmem:[#allocation10 + $0xe0] sm:$0xff]
    %v503 = vld [vmem:[#allocation10 + $0xe8] sm:$0xff]
    %v504 = vld [vmem:[#allocation10 + $0xf0] sm:$0xff]
    %v505 = vld [vmem:[#allocation10 + $0xf8] sm:$0xff]
    %v538 = vunpack.c.l.b16 %v474
    %v539 = vunpack.c.h.b16 %v474
    %v540 = vunpack.c.l.b16 %v475
    %v541 = vunpack.c.h.b16 %v475
    %v542 = vunpack.c.l.b16 %v476
    %v543 = vunpack.c.h.b16 %v476
    %v544 = vunpack.c.l.b16 %v477
    %v545 = vunpack.c.h.b16 %v477
    %v546 = vunpack.c.l.b16 %v478
    %v547 = vunpack.c.h.b16 %v478
    %v548 = vunpack.c.l.b16 %v479
    %v549 = vunpack.c.h.b16 %v479
    %v550 = vunpack.c.l.b16 %v480
    %v551 = vunpack.c.h.b16 %v480
    %v552 = vunpack.c.l.b16 %v481
    %v553 = vunpack.c.h.b16 %v481
    %v554 = vunpack.c.l.b16 %v482
    %v555 = vunpack.c.h.b16 %v482
    %v556 = vunpack.c.l.b16 %v483
    %v557 = vunpack.c.h.b16 %v483
    %v558 = vunpack.c.l.b16 %v484
    %v559 = vunpack.c.h.b16 %v484
    %v560 = vunpack.c.l.b16 %v485
    %v561 = vunpack.c.h.b16 %v485
    %v562 = vunpack.c.l.b16 %v486
    %v563 = vunpack.c.h.b16 %v486
    %v564 = vunpack.c.l.b16 %v487
    %v565 = vunpack.c.h.b16 %v487
    %v566 = vunpack.c.l.b16 %v488
    %v567 = vunpack.c.h.b16 %v488
    %v568 = vunpack.c.l.b16 %v489
    %v569 = vunpack.c.h.b16 %v489
    %v570 = vunpack.c.l.b16 %v490
    %v571 = vunpack.c.h.b16 %v490
    %v572 = vunpack.c.l.b16 %v491
    %v573 = vunpack.c.h.b16 %v491
    %v574 = vunpack.c.l.b16 %v492
    %v575 = vunpack.c.h.b16 %v492
    %v576 = vunpack.c.l.b16 %v493
    %v577 = vunpack.c.h.b16 %v493
    %v578 = vunpack.c.l.b16 %v494
    %v579 = vunpack.c.h.b16 %v494
    %v580 = vunpack.c.l.b16 %v495
    %v581 = vunpack.c.h.b16 %v495
    %v582 = vunpack.c.l.b16 %v496
    %v583 = vunpack.c.h.b16 %v496
    %v584 = vunpack.c.l.b16 %v497
    %v585 = vunpack.c.h.b16 %v497
    %v586 = vunpack.c.l.b16 %v498
    %v587 = vunpack.c.h.b16 %v498
    %v588 = vunpack.c.l.b16 %v499
    %v589 = vunpack.c.h.b16 %v499
    %v590 = vunpack.c.l.b16 %v500
    %v591 = vunpack.c.h.b16 %v500
    %v592 = vunpack.c.l.b16 %v501
    %v593 = vunpack.c.h.b16 %v501
    %v594 = vunpack.c.l.b16 %v502
    %v595 = vunpack.c.h.b16 %v502
    %v596 = vunpack.c.l.b16 %v503
    %v597 = vunpack.c.h.b16 %v503
    %v598 = vunpack.c.l.b16 %v504
    %v599 = vunpack.c.h.b16 %v504
    %v600 = vunpack.c.l.b16 %v505
    %v601 = vunpack.c.h.b16 %v505
    %v602 = vpack.c.b16 %v542, %v538
    %v603 = vpack.c.b16 %v543, %v539
    %v604 = vpack.c.b16 %v544, %v540
    %v605 = vpack.c.b16 %v545, %v541
    %v606 = vpack.c.b16 %v550, %v546
    %v607 = vpack.c.b16 %v551, %v547
    %v608 = vpack.c.b16 %v552, %v548
    %v609 = vpack.c.b16 %v553, %v549
    %v610 = vpack.c.b16 %v558, %v554
    %v611 = vpack.c.b16 %v559, %v555
    %v612 = vpack.c.b16 %v560, %v556
    %v613 = vpack.c.b16 %v561, %v557
    %v614 = vpack.c.b16 %v566, %v562
    %v615 = vpack.c.b16 %v567, %v563
    %v616 = vpack.c.b16 %v568, %v564
    %v617 = vpack.c.b16 %v569, %v565
    %v618 = vpack.c.b16 %v574, %v570
    %v619 = vpack.c.b16 %v575, %v571
    %v620 = vpack.c.b16 %v576, %v572
    %v621 = vpack.c.b16 %v577, %v573
    %v622 = vpack.c.b16 %v582, %v578
    %v623 = vpack.c.b16 %v583, %v579
    %v624 = vpack.c.b16 %v584, %v580
    %v625 = vpack.c.b16 %v585, %v581
    %v626 = vpack.c.b16 %v590, %v586
    %v627 = vpack.c.b16 %v591, %v587
    %v628 = vpack.c.b16 %v592, %v588
    %v629 = vpack.c.b16 %v593, %v589
    %v630 = vpack.c.b16 %v598, %v594
    %v631 = vpack.c.b16 %v599, %v595
    %v632 = vpack.c.b16 %v600, %v596
    %v633 = vpack.c.b16 %v601, %v597
    %666 = vmatpush.bf16.msra.mxu0 %v630
    %667 = vmatpush.bf16.msra.mxu0 %v626
    %668 = vmatpush.bf16.msra.mxu0 %v622
    %669 = vmatpush.bf16.msra.mxu0 %v618
    %670 = vmatpush.bf16.msra.mxu0 %v614
    %671 = vmatpush.bf16.msra.mxu0 %v610
    %672 = vmatpush.bf16.msra.mxu0 %v606
    %673 = vmatpush.bf16.msra.mxu0 %v602
    %674 = vmatmul.bf16.gmra.mxu0 %v473
    %v675 = vpop.f32.mrf.mxu0
    %v676 = vadd.f32 0.0, %v675
    %v677 = vpop.f32.mrf.mxu0
    %678 = vdwg.mxu0
    %679 = vmatpush.bf16.msra.mxu0 %v631
    %680 = vmatpush.bf16.msra.mxu0 %v627
    %681 = vmatpush.bf16.msra.mxu0 %v623
    %682 = vmatpush.bf16.msra.mxu0 %v619
    %683 = vmatpush.bf16.msra.mxu0 %v615
    %684 = vmatpush.bf16.msra.mxu0 %v611
    %685 = vmatpush.bf16.msra.mxu0 %v607
    %686 = vmatpush.bf16.msra.mxu0 %v603
    %687 = vmatmul.bf16.gmra.mxu0 %v473
    %v688 = vpop.f32.mrf.mxu0
    %v689 = vadd.f32 0.0, %v688
    %v690 = vpop.f32.mrf.mxu0
    %691 = vdwg.mxu0
    %692 = vmatpush.bf16.msra.mxu0 %v632
    %693 = vmatpush.bf16.msra.mxu0 %v628
    %694 = vmatpush.bf16.msra.mxu0 %v624
    %695 = vmatpush.bf16.msra.mxu0 %v620
    %696 = vmatpush.bf16.msra.mxu0 %v616
    %697 = vmatpush.bf16.msra.mxu0 %v612
    %698 = vmatpush.bf16.msra.mxu0 %v608
    %699 = vmatpush.bf16.msra.mxu0 %v604
    %700 = vmatmul.bf16.gmra.mxu0 %v473
    %v701 = vpop.f32.mrf.mxu0
    %v702 = vadd.f32 0.0, %v701
    %v703 = vpop.f32.mrf.mxu0
    %704 = vdwg.mxu0
    %705 = vmatpush.bf16.msra.mxu0 %v633
    %706 = vmatpush.bf16.msra.mxu0 %v629
    %707 = vmatpush.bf16.msra.mxu0 %v625
    %708 = vmatpush.bf16.msra.mxu0 %v621
    %709 = vmatpush.bf16.msra.mxu0 %v617
    %710 = vmatpush.bf16.msra.mxu0 %v613
    %711 = vmatpush.bf16.msra.mxu0 %v609
    %712 = vmatpush.bf16.msra.mxu0 %v605
    %713 = vmatmul.bf16.gmra.mxu0 %v473
    %v714 = vpop.f32.mrf.mxu0
    %v715 = vadd.f32 0.0, %v714
    %v716 = vpop.f32.mrf.mxu0
    %717 = vdwg.mxu0
    %v718 = vadd.f32 %v469, %v676
    %v719 = vadd.f32 %v470, %v689
    %v720 = vadd.f32 %v471, %v702
    %v721 = vadd.f32 %v472, %v715
    %v722 = vxor.u32 %v718, 2147483648
    %v723 = vmul.f32 %v722, 1.442695
    %v724 = vpow.pop %v723
    %v725 = vadd.f32 %v724, 1.0
    %v726 = vrcp.pop %v725
    %v727 = vmul.f32 %v725, %v726
    %v728 = vsub.f32 1.0, %v727
    %v729 = vmul.f32 %v726, %v728
    %v730 = vadd.f32 %v726, %v729
    %vm731 = vweird.f32 %v725
    %vm732 = vweird.f32 %v726
    %vm733 = vmor %vm731, %vm732
    %v734 = vsel %vm733, %v726, %v730
    %v735 = vand.u32 2147483647, %v725
    %vm736 = vcmp.eq.f32.partialorder %v735, 8.507059e+37
    %v737 = vand.u32 %v725, 2147483648
    %v738 = vor.u32 1.1754944e-38, %v737
    %v739 = vsel %vm736, %v738, %v734
    %v740 = vmul.f32 1.0, %v739
    %v741 = vxor.u32 %v719, 2147483648
    %v742 = vmul.f32 %v741, 1.442695
    %v743 = vpow.pop %v742
    %v744 = vadd.f32 %v743, 1.0
    %v745 = vrcp.pop %v744
    %v746 = vmul.f32 %v744, %v745
    %v747 = vsub.f32 1.0, %v746
    %v748 = vmul.f32 %v745, %v747
    %v749 = vadd.f32 %v745, %v748
    %vm750 = vweird.f32 %v744
    %vm751 = vweird.f32 %v745
    %vm752 = vmor %vm750, %vm751
    %v753 = vsel %vm752, %v745, %v749
    %v754 = vand.u32 2147483647, %v744
    %vm755 = vcmp.eq.f32.partialorder %v754, 8.507059e+37
    %v756 = vand.u32 %v744, 2147483648
    %v757 = vor.u32 1.1754944e-38, %v756
    %v758 = vsel %vm755, %v757, %v753
    %v759 = vmul.f32 1.0, %v758
    %v760 = vtanh.pop %v720
    %v761 = vxor.u32 %v721, 2147483648
    %v762 = vmul.f32 %v761, 1.442695
    %v763 = vpow.pop %v762
    %v764 = vadd.f32 %v763, 1.0
    %v765 = vrcp.pop %v764
    %v766 = vmul.f32 %v764, %v765
    %v767 = vsub.f32 1.0, %v766
    %v768 = vmul.f32 %v765, %v767
    %v769 = vadd.f32 %v765, %v768
    %vm770 = vweird.f32 %v764
    %vm771 = vweird.f32 %v765
    %vm772 = vmor %vm770, %vm771
    %v773 = vsel %vm772, %v765, %v769
    %v774 = vand.u32 2147483647, %v764
    %vm775 = vcmp.eq.f32.partialorder %v774, 8.507059e+37
    %v776 = vand.u32 %v764, 2147483648
    %v777 = vor.u32 1.1754944e-38, %v776
    %v778 = vsel %vm775, %v777, %v773
    %v779 = vmul.f32 1.0, %v778
    %v780 = vmul.f32 %v759, %v468
    %v781 = vmul.f32 %v740, %v760
    %v782 = vadd.f32 %v780, %v781
    %v783 = vtanh.pop %v782
    %v784 = vmul.f32 %v779, %v783
    %v785 = vpack.c.bf16 %v784, %v784
    %786 = vst [vmem:[#allocation13] sm:$0xf] %v785
    %s787 = scalar_lea.vmem [#allocation2], 32
    %v788 = vld [vmem:[%s787] sm:$0xff]
    %v789 = vld [vmem:[%s787 + $0x8] sm:$0xff]
    %v790 = vld [vmem:[%s787 + $0x10] sm:$0xff]
    %v791 = vld [vmem:[%s787 + $0x18] sm:$0xff]
    %v792 = vld [vmem:[#allocation10] sm:$0xff]
    %v793 = vld [vmem:[#allocation10 + $0x8] sm:$0xff]
    %v794 = vld [vmem:[#allocation10 + $0x10] sm:$0xff]
    %v795 = vld [vmem:[#allocation10 + $0x18] sm:$0xff]
    %v796 = vld [vmem:[#allocation10 + $0x20] sm:$0xff]
    %v797 = vld [vmem:[#allocation10 + $0x28] sm:$0xff]
    %v798 = vld [vmem:[#allocation10 + $0x30] sm:$0xff]
    %v799 = vld [vmem:[#allocation10 + $0x38] sm:$0xff]
    %v800 = vld [vmem:[#allocation10 + $0x40] sm:$0xff]
    %v801 = vld [vmem:[#allocation10 + $0x48] sm:$0xff]
    %v802 = vld [vmem:[#allocation10 + $0x50] sm:$0xff]
    %v803 = vld [vmem:[#allocation10 + $0x58] sm:$0xff]
    %v804 = vld [vmem:[#allocation10 + $0x60] sm:$0xff]
    %v805 = vld [vmem:[#allocation10 + $0x68] sm:$0xff]
    %v806 = vld [vmem:[#allocation10 + $0x70] sm:$0xff]
    %v807 = vld [vmem:[#allocation10 + $0x78] sm:$0xff]
    %v808 = vld [vmem:[#allocation10 + $0x80] sm:$0xff]
    %v809 = vld [vmem:[#allocation10 + $0x88] sm:$0xff]
    %v810 = vld [vmem:[#allocation10 + $0x90] sm:$0xff]
    %v811 = vld [vmem:[#allocation10 + $0x98] sm:$0xff]
    %v812 = vld [vmem:[#allocation10 + $0xa0] sm:$0xff]
    %v813 = vld [vmem:[#allocation10 + $0xa8] sm:$0xff]
    %v814 = vld [vmem:[#allocation10 + $0xb0] sm:$0xff]
    %v815 = vld [vmem:[#allocation10 + $0xb8] sm:$0xff]
    %v816 = vld [vmem:[#allocation10 + $0xc0] sm:$0xff]
    %v817 = vld [vmem:[#allocation10 + $0xc8] sm:$0xff]
    %v818 = vld [vmem:[#allocation10 + $0xd0] sm:$0xff]
    %v819 = vld [vmem:[#allocation10 + $0xd8] sm:$0xff]
    %v820 = vld [vmem:[#allocation10 + $0xe0] sm:$0xff]
    %v821 = vld [vmem:[#allocation10 + $0xe8] sm:$0xff]
    %v822 = vld [vmem:[#allocation10 + $0xf0] sm:$0xff]
    %v823 = vld [vmem:[#allocation10 + $0xf8] sm:$0xff]
    %v856 = vunpack.c.l.b16 %v792
    %v857 = vunpack.c.h.b16 %v792
    %v858 = vunpack.c.l.b16 %v793
    %v859 = vunpack.c.h.b16 %v793
    %v860 = vunpack.c.l.b16 %v794
    %v861 = vunpack.c.h.b16 %v794
    %v862 = vunpack.c.l.b16 %v795
    %v863 = vunpack.c.h.b16 %v795
    %v864 = vunpack.c.l.b16 %v796
    %v865 = vunpack.c.h.b16 %v796
    %v866 = vunpack.c.l.b16 %v797
    %v867 = vunpack.c.h.b16 %v797
    %v868 = vunpack.c.l.b16 %v798
    %v869 = vunpack.c.h.b16 %v798
    %v870 = vunpack.c.l.b16 %v799
    %v871 = vunpack.c.h.b16 %v799
    %v872 = vunpack.c.l.b16 %v800
    %v873 = vunpack.c.h.b16 %v800
    %v874 = vunpack.c.l.b16 %v801
    %v875 = vunpack.c.h.b16 %v801
    %v876 = vunpack.c.l.b16 %v802
    %v877 = vunpack.c.h.b16 %v802
    %v878 = vunpack.c.l.b16 %v803
    %v879 = vunpack.c.h.b16 %v803
    %v880 = vunpack.c.l.b16 %v804
    %v881 = vunpack.c.h.b16 %v804
    %v882 = vunpack.c.l.b16 %v805
    %v883 = vunpack.c.h.b16 %v805
    %v884 = vunpack.c.l.b16 %v806
    %v885 = vunpack.c.h.b16 %v806
    %v886 = vunpack.c.l.b16 %v807
    %v887 = vunpack.c.h.b16 %v807
    %v888 = vunpack.c.l.b16 %v808
    %v889 = vunpack.c.h.b16 %v808
    %v890 = vunpack.c.l.b16 %v809
    %v891 = vunpack.c.h.b16 %v809
    %v892 = vunpack.c.l.b16 %v810
    %v893 = vunpack.c.h.b16 %v810
    %v894 = vunpack.c.l.b16 %v811
    %v895 = vunpack.c.h.b16 %v811
    %v896 = vunpack.c.l.b16 %v812
    %v897 = vunpack.c.h.b16 %v812
    %v898 = vunpack.c.l.b16 %v813
    %v899 = vunpack.c.h.b16 %v813
    %v900 = vunpack.c.l.b16 %v814
    %v901 = vunpack.c.h.b16 %v814
    %v902 = vunpack.c.l.b16 %v815
    %v903 = vunpack.c.h.b16 %v815
    %v904 = vunpack.c.l.b16 %v816
    %v905 = vunpack.c.h.b16 %v816
    %v906 = vunpack.c.l.b16 %v817
    %v907 = vunpack.c.h.b16 %v817
    %v908 = vunpack.c.l.b16 %v818
    %v909 = vunpack.c.h.b16 %v818
    %v910 = vunpack.c.l.b16 %v819
    %v911 = vunpack.c.h.b16 %v819
    %v912 = vunpack.c.l.b16 %v820
    %v913 = vunpack.c.h.b16 %v820
    %v914 = vunpack.c.l.b16 %v821
    %v915 = vunpack.c.h.b16 %v821
    %v916 = vunpack.c.l.b16 %v822
    %v917 = vunpack.c.h.b16 %v822
    %v918 = vunpack.c.l.b16 %v823
    %v919 = vunpack.c.h.b16 %v823
    %v920 = vpack.c.b16 %v860, %v856
    %v921 = vpack.c.b16 %v861, %v857
    %v922 = vpack.c.b16 %v862, %v858
    %v923 = vpack.c.b16 %v863, %v859
    %v924 = vpack.c.b16 %v868, %v864
    %v925 = vpack.c.b16 %v869, %v865
    %v926 = vpack.c.b16 %v870, %v866
    %v927 = vpack.c.b16 %v871, %v867
    %v928 = vpack.c.b16 %v876, %v872
    %v929 = vpack.c.b16 %v877, %v873
    %v930 = vpack.c.b16 %v878, %v874
    %v931 = vpack.c.b16 %v879, %v875
    %v932 = vpack.c.b16 %v884, %v880
    %v933 = vpack.c.b16 %v885, %v881
    %v934 = vpack.c.b16 %v886, %v882
    %v935 = vpack.c.b16 %v887, %v883
    %v936 = vpack.c.b16 %v892, %v888
    %v937 = vpack.c.b16 %v893, %v889
    %v938 = vpack.c.b16 %v894, %v890
    %v939 = vpack.c.b16 %v895, %v891
    %v940 = vpack.c.b16 %v900, %v896
    %v941 = vpack.c.b16 %v901, %v897
    %v942 = vpack.c.b16 %v902, %v898
    %v943 = vpack.c.b16 %v903, %v899
    %v944 = vpack.c.b16 %v908, %v904
    %v945 = vpack.c.b16 %v909, %v905
    %v946 = vpack.c.b16 %v910, %v906
    %v947 = vpack.c.b16 %v911, %v907
    %v948 = vpack.c.b16 %v916, %v912
    %v949 = vpack.c.b16 %v917, %v913
    %v950 = vpack.c.b16 %v918, %v914
    %v951 = vpack.c.b16 %v919, %v915
    %984 = vmatpush.bf16.msra.mxu0 %v948
    %985 = vmatpush.bf16.msra.mxu0 %v944
    %986 = vmatpush.bf16.msra.mxu0 %v940
    %987 = vmatpush.bf16.msra.mxu0 %v936
    %988 = vmatpush.bf16.msra.mxu0 %v932
    %989 = vmatpush.bf16.msra.mxu0 %v928
    %990 = vmatpush.bf16.msra.mxu0 %v924
    %991 = vmatpush.bf16.msra.mxu0 %v920
    %992 = vmatmul.bf16.gmra.mxu0 %v785
    %v993 = vpop.f32.mrf.mxu0
    %v994 = vadd.f32 0.0, %v993
    %v995 = vpop.f32.mrf.mxu0
    %996 = vdwg.mxu0
    %997 = vmatpush.bf16.msra.mxu0 %v949
    %998 = vmatpush.bf16.msra.mxu0 %v945
    %999 = vmatpush.bf16.msra.mxu0 %v941
    %1000 = vmatpush.bf16.msra.mxu0 %v937
    %1001 = vmatpush.bf16.msra.mxu0 %v933
    %1002 = vmatpush.bf16.msra.mxu0 %v929
    %1003 = vmatpush.bf16.msra.mxu0 %v925
    %1004 = vmatpush.bf16.msra.mxu0 %v921
    %1005 = vmatmul.bf16.gmra.mxu0 %v785
    %v1006 = vpop.f32.mrf.mxu0
    %v1007 = vadd.f32 0.0, %v1006
    %v1008 = vpop.f32.mrf.mxu0
    %1009 = vdwg.mxu0
    %1010 = vmatpush.bf16.msra.mxu0 %v950
    %1011 = vmatpush.bf16.msra.mxu0 %v946
    %1012 = vmatpush.bf16.msra.mxu0 %v942
    %1013 = vmatpush.bf16.msra.mxu0 %v938
    %1014 = vmatpush.bf16.msra.mxu0 %v934
    %1015 = vmatpush.bf16.msra.mxu0 %v930
    %1016 = vmatpush.bf16.msra.mxu0 %v926
    %1017 = vmatpush.bf16.msra.mxu0 %v922
    %1018 = vmatmul.bf16.gmra.mxu0 %v785
    %v1019 = vpop.f32.mrf.mxu0
    %v1020 = vadd.f32 0.0, %v1019
    %v1021 = vpop.f32.mrf.mxu0
    %1022 = vdwg.mxu0
    %1023 = vmatpush.bf16.msra.mxu0 %v951
    %1024 = vmatpush.bf16.msra.mxu0 %v947
    %1025 = vmatpush.bf16.msra.mxu0 %v943
    %1026 = vmatpush.bf16.msra.mxu0 %v939
    %1027 = vmatpush.bf16.msra.mxu0 %v935
    %1028 = vmatpush.bf16.msra.mxu0 %v931
    %1029 = vmatpush.bf16.msra.mxu0 %v927
    %1030 = vmatpush.bf16.msra.mxu0 %v923
    %1031 = vmatmul.bf16.gmra.mxu0 %v785
    %v1032 = vpop.f32.mrf.mxu0
    %v1033 = vadd.f32 0.0, %v1032
    %v1034 = vpop.f32.mrf.mxu0
    %1035 = vdwg.mxu0
    %v1036 = vadd.f32 %v788, %v994
    %v1037 = vadd.f32 %v789, %v1007
    %v1038 = vadd.f32 %v790, %v1020
    %v1039 = vadd.f32 %v791, %v1033
    %v1040 = vxor.u32 %v1036, 2147483648
    %v1041 = vmul.f32 %v1040, 1.442695
    %v1042 = vpow.pop %v1041
    %v1043 = vadd.f32 %v1042, 1.0
    %v1044 = vrcp.pop %v1043
    %v1045 = vmul.f32 %v1043, %v1044
    %v1046 = vsub.f32 1.0, %v1045
    %v1047 = vmul.f32 %v1044, %v1046
    %v1048 = vadd.f32 %v1044, %v1047
    %vm1049 = vweird.f32 %v1043
    %vm1050 = vweird.f32 %v1044
    %vm1051 = vmor %vm1049, %vm1050
    %v1052 = vsel %vm1051, %v1044, %v1048
    %v1053 = vand.u32 2147483647, %v1043
    %vm1054 = vcmp.eq.f32.partialorder %v1053, 8.507059e+37
    %v1055 = vand.u32 %v1043, 2147483648
    %v1056 = vor.u32 1.1754944e-38, %v1055
    %v1057 = vsel %vm1054, %v1056, %v1052
    %v1058 = vmul.f32 1.0, %v1057
    %v1059 = vxor.u32 %v1037, 2147483648
    %v1060 = vmul.f32 %v1059, 1.442695
    %v1061 = vpow.pop %v1060
    %v1062 = vadd.f32 %v1061, 1.0
    %v1063 = vrcp.pop %v1062
    %v1064 = vmul.f32 %v1062, %v1063
    %v1065 = vsub.f32 1.0, %v1064
    %v1066 = vmul.f32 %v1063, %v1065
    %v1067 = vadd.f32 %v1063, %v1066
    %vm1068 = vweird.f32 %v1062
    %vm1069 = vweird.f32 %v1063
    %vm1070 = vmor %vm1068, %vm1069
    %v1071 = vsel %vm1070, %v1063, %v1067
    %v1072 = vand.u32 2147483647, %v1062
    %vm1073 = vcmp.eq.f32.partialorder %v1072, 8.507059e+37
    %v1074 = vand.u32 %v1062, 2147483648
    %v1075 = vor.u32 1.1754944e-38, %v1074
    %v1076 = vsel %vm1073, %v1075, %v1071
    %v1077 = vmul.f32 1.0, %v1076
    %v1078 = vtanh.pop %v1038
    %v1079 = vxor.u32 %v1039, 2147483648
    %v1080 = vmul.f32 %v1079, 1.442695
    %v1081 = vpow.pop %v1080
    %v1082 = vadd.f32 %v1081, 1.0
    %v1083 = vrcp.pop %v1082
    %v1084 = vmul.f32 %v1082, %v1083
    %v1085 = vsub.f32 1.0, %v1084
    %v1086 = vmul.f32 %v1083, %v1085
    %v1087 = vadd.f32 %v1083, %v1086
    %vm1088 = vweird.f32 %v1082
    %vm1089 = vweird.f32 %v1083
    %vm1090 = vmor %vm1088, %vm1089
    %v1091 = vsel %vm1090, %v1083, %v1087
    %v1092 = vand.u32 2147483647, %v1082
    %vm1093 = vcmp.eq.f32.partialorder %v1092, 8.507059e+37
    %v1094 = vand.u32 %v1082, 2147483648
    %v1095 = vor.u32 1.1754944e-38, %v1094
    %v1096 = vsel %vm1093, %v1095, %v1091
    %v1097 = vmul.f32 1.0, %v1096
    %v1098 = vmul.f32 %v1077, %v782
    %v1099 = vmul.f32 %v1058, %v1078
    %v1100 = vadd.f32 %v1098, %v1099
    %v1101 = vtanh.pop %v1100
    %v1102 = vmul.f32 %v1097, %v1101
    %v1103 = vpack.c.bf16 %v1102, %v1102
    %s1104 = scalar_lea.vmem [#allocation13], 4
    %1105 = vst [vmem:[%s1104] sm:$0xf] %v1103
    %s1106 = scalar_lea.vmem [#allocation2], 64
    %v1107 = vld [vmem:[%s1106] sm:$0xff]
    %v1108 = vld [vmem:[%s1106 + $0x8] sm:$0xff]
    %v1109 = vld [vmem:[%s1106 + $0x10] sm:$0xff]
    %v1110 = vld [vmem:[%s1106 + $0x18] sm:$0xff]
    %v1111 = vld [vmem:[#allocation10] sm:$0xff]
    %v1112 = vld [vmem:[#allocation10 + $0x8] sm:$0xff]
    %v1113 = vld [vmem:[#allocation10 + $0x10] sm:$0xff]
    %v1114 = vld [vmem:[#allocation10 + $0x18] sm:$0xff]
    %v1115 = vld [vmem:[#allocation10 + $0x20] sm:$0xff]
    %v1116 = vld [vmem:[#allocation10 + $0x28] sm:$0xff]
    %v1117 = vld [vmem:[#allocation10 + $0x30] sm:$0xff]
    %v1118 = vld [vmem:[#allocation10 + $0x38] sm:$0xff]
    %v1119 = vld [vmem:[#allocation10 + $0x40] sm:$0xff]
    %v1120 = vld [vmem:[#allocation10 + $0x48] sm:$0xff]
    %v1121 = vld [vmem:[#allocation10 + $0x50] sm:$0xff]
    %v1122 = vld [vmem:[#allocation10 + $0x58] sm:$0xff]
    %v1123 = vld [vmem:[#allocation10 + $0x60] sm:$0xff]
    %v1124 = vld [vmem:[#allocation10 + $0x68] sm:$0xff]
    %v1125 = vld [vmem:[#allocation10 + $0x70] sm:$0xff]
    %v1126 = vld [vmem:[#allocation10 + $0x78] sm:$0xff]
    %v1127 = vld [vmem:[#allocation10 + $0x80] sm:$0xff]
    %v1128 = vld [vmem:[#allocation10 + $0x88] sm:$0xff]
    %v1129 = vld [vmem:[#allocation10 + $0x90] sm:$0xff]
    %v1130 = vld [vmem:[#allocation10 + $0x98] sm:$0xff]
    %v1131 = vld [vmem:[#allocation10 + $0xa0] sm:$0xff]
    %v1132 = vld [vmem:[#allocation10 + $0xa8] sm:$0xff]
    %v1133 = vld [vmem:[#allocation10 + $0xb0] sm:$0xff]
    %v1134 = vld [vmem:[#allocation10 + $0xb8] sm:$0xff]
    %v1135 = vld [vmem:[#allocation10 + $0xc0] sm:$0xff]
    %v1136 = vld [vmem:[#allocation10 + $0xc8] sm:$0xff]
    %v1137 = vld [vmem:[#allocation10 + $0xd0] sm:$0xff]
    %v1138 = vld [vmem:[#allocation10 + $0xd8] sm:$0xff]
    %v1139 = vld [vmem:[#allocation10 + $0xe0] sm:$0xff]
    %v1140 = vld [vmem:[#allocation10 + $0xe8] sm:$0xff]
    %v1141 = vld [vmem:[#allocation10 + $0xf0] sm:$0xff]
    %v1142 = vld [vmem:[#allocation10 + $0xf8] sm:$0xff]
    %v1175 = vunpack.c.l.b16 %v1111
    %v1176 = vunpack.c.h.b16 %v1111
    %v1177 = vunpack.c.l.b16 %v1112
    %v1178 = vunpack.c.h.b16 %v1112
    %v1179 = vunpack.c.l.b16 %v1113
    %v1180 = vunpack.c.h.b16 %v1113
    %v1181 = vunpack.c.l.b16 %v1114
    %v1182 = vunpack.c.h.b16 %v1114
    %v1183 = vunpack.c.l.b16 %v1115
    %v1184 = vunpack.c.h.b16 %v1115
    %v1185 = vunpack.c.l.b16 %v1116
    %v1186 = vunpack.c.h.b16 %v1116
    %v1187 = vunpack.c.l.b16 %v1117
    %v1188 = vunpack.c.h.b16 %v1117
    %v1189 = vunpack.c.l.b16 %v1118
    %v1190 = vunpack.c.h.b16 %v1118
    %v1191 = vunpack.c.l.b16 %v1119
    %v1192 = vunpack.c.h.b16 %v1119
    %v1193 = vunpack.c.l.b16 %v1120
    %v1194 = vunpack.c.h.b16 %v1120
    %v1195 = vunpack.c.l.b16 %v1121
    %v1196 = vunpack.c.h.b16 %v1121
    %v1197 = vunpack.c.l.b16 %v1122
    %v1198 = vunpack.c.h.b16 %v1122
    %v1199 = vunpack.c.l.b16 %v1123
    %v1200 = vunpack.c.h.b16 %v1123
    %v1201 = vunpack.c.l.b16 %v1124
    %v1202 = vunpack.c.h.b16 %v1124
    %v1203 = vunpack.c.l.b16 %v1125
    %v1204 = vunpack.c.h.b16 %v1125
    %v1205 = vunpack.c.l.b16 %v1126
    %v1206 = vunpack.c.h.b16 %v1126
    %v1207 = vunpack.c.l.b16 %v1127
    %v1208 = vunpack.c.h.b16 %v1127
    %v1209 = vunpack.c.l.b16 %v1128
    %v1210 = vunpack.c.h.b16 %v1128
    %v1211 = vunpack.c.l.b16 %v1129
    %v1212 = vunpack.c.h.b16 %v1129
    %v1213 = vunpack.c.l.b16 %v1130
    %v1214 = vunpack.c.h.b16 %v1130
    %v1215 = vunpack.c.l.b16 %v1131
    %v1216 = vunpack.c.h.b16 %v1131
    %v1217 = vunpack.c.l.b16 %v1132
    %v1218 = vunpack.c.h.b16 %v1132
    %v1219 = vunpack.c.l.b16 %v1133
    %v1220 = vunpack.c.h.b16 %v1133
    %v1221 = vunpack.c.l.b16 %v1134
    %v1222 = vunpack.c.h.b16 %v1134
    %v1223 = vunpack.c.l.b16 %v1135
    %v1224 = vunpack.c.h.b16 %v1135
    %v1225 = vunpack.c.l.b16 %v1136
    %v1226 = vunpack.c.h.b16 %v1136
    %v1227 = vunpack.c.l.b16 %v1137
    %v1228 = vunpack.c.h.b16 %v1137
    %v1229 = vunpack.c.l.b16 %v1138
    %v1230 = vunpack.c.h.b16 %v1138
    %v1231 = vunpack.c.l.b16 %v1139
    %v1232 = vunpack.c.h.b16 %v1139
    %v1233 = vunpack.c.l.b16 %v1140
    %v1234 = vunpack.c.h.b16 %v1140
    %v1235 = vunpack.c.l.b16 %v1141
    %v1236 = vunpack.c.h.b16 %v1141
    %v1237 = vunpack.c.l.b16 %v1142
    %v1238 = vunpack.c.h.b16 %v1142
    %v1239 = vpack.c.b16 %v1179, %v1175
    %v1240 = vpack.c.b16 %v1180, %v1176
    %v1241 = vpack.c.b16 %v1181, %v1177
    %v1242 = vpack.c.b16 %v1182, %v1178
    %v1243 = vpack.c.b16 %v1187, %v1183
    %v1244 = vpack.c.b16 %v1188, %v1184
    %v1245 = vpack.c.b16 %v1189, %v1185
    %v1246 = vpack.c.b16 %v1190, %v1186
    %v1247 = vpack.c.b16 %v1195, %v1191
    %v1248 = vpack.c.b16 %v1196, %v1192
    %v1249 = vpack.c.b16 %v1197, %v1193
    %v1250 = vpack.c.b16 %v1198, %v1194
    %v1251 = vpack.c.b16 %v1203, %v1199
    %v1252 = vpack.c.b16 %v1204, %v1200
    %v1253 = vpack.c.b16 %v1205, %v1201
    %v1254 = vpack.c.b16 %v1206, %v1202
    %v1255 = vpack.c.b16 %v1211, %v1207
    %v1256 = vpack.c.b16 %v1212, %v1208
    %v1257 = vpack.c.b16 %v1213, %v1209
    %v1258 = vpack.c.b16 %v1214, %v1210
    %v1259 = vpack.c.b16 %v1219, %v1215
    %v1260 = vpack.c.b16 %v1220, %v1216
    %v1261 = vpack.c.b16 %v1221, %v1217
    %v1262 = vpack.c.b16 %v1222, %v1218
    %v1263 = vpack.c.b16 %v1227, %v1223
    %v1264 = vpack.c.b16 %v1228, %v1224
    %v1265 = vpack.c.b16 %v1229, %v1225
    %v1266 = vpack.c.b16 %v1230, %v1226
    %v1267 = vpack.c.b16 %v1235, %v1231
    %v1268 = vpack.c.b16 %v1236, %v1232
    %v1269 = vpack.c.b16 %v1237, %v1233
    %v1270 = vpack.c.b16 %v1238, %v1234
    %1303 = vmatpush.bf16.msra.mxu0 %v1267
    %1304 = vmatpush.bf16.msra.mxu0 %v1263
    %1305 = vmatpush.bf16.msra.mxu0 %v1259
    %1306 = vmatpush.bf16.msra.mxu0 %v1255
    %1307 = vmatpush.bf16.msra.mxu0 %v1251
    %1308 = vmatpush.bf16.msra.mxu0 %v1247
    %1309 = vmatpush.bf16.msra.mxu0 %v1243
    %1310 = vmatpush.bf16.msra.mxu0 %v1239
    %1311 = vmatmul.bf16.gmra.mxu0 %v1103
    %v1312 = vpop.f32.mrf.mxu0
    %v1313 = vadd.f32 0.0, %v1312
    %v1314 = vpop.f32.mrf.mxu0
    %1315 = vdwg.mxu0
    %1316 = vmatpush.bf16.msra.mxu0 %v1268
    %1317 = vmatpush.bf16.msra.mxu0 %v1264
    %1318 = vmatpush.bf16.msra.mxu0 %v1260
    %1319 = vmatpush.bf16.msra.mxu0 %v1256
    %1320 = vmatpush.bf16.msra.mxu0 %v1252
    %1321 = vmatpush.bf16.msra.mxu0 %v1248
    %1322 = vmatpush.bf16.msra.mxu0 %v1244
    %1323 = vmatpush.bf16.msra.mxu0 %v1240
    %1324 = vmatmul.bf16.gmra.mxu0 %v1103
    %v1325 = vpop.f32.mrf.mxu0
    %v1326 = vadd.f32 0.0, %v1325
    %v1327 = vpop.f32.mrf.mxu0
    %1328 = vdwg.mxu0
    %1329 = vmatpush.bf16.msra.mxu0 %v1269
    %1330 = vmatpush.bf16.msra.mxu0 %v1265
    %1331 = vmatpush.bf16.msra.mxu0 %v1261
    %1332 = vmatpush.bf16.msra.mxu0 %v1257
    %1333 = vmatpush.bf16.msra.mxu0 %v1253
    %1334 = vmatpush.bf16.msra.mxu0 %v1249
    %1335 = vmatpush.bf16.msra.mxu0 %v1245
    %1336 = vmatpush.bf16.msra.mxu0 %v1241
    %1337 = vmatmul.bf16.gmra.mxu0 %v1103
    %v1338 = vpop.f32.mrf.mxu0
    %v1339 = vadd.f32 0.0, %v1338
    %v1340 = vpop.f32.mrf.mxu0
    %1341 = vdwg.mxu0
    %1342 = vmatpush.bf16.msra.mxu0 %v1270
    %1343 = vmatpush.bf16.msra.mxu0 %v1266
    %1344 = vmatpush.bf16.msra.mxu0 %v1262
    %1345 = vmatpush.bf16.msra.mxu0 %v1258
    %1346 = vmatpush.bf16.msra.mxu0 %v1254
    %1347 = vmatpush.bf16.msra.mxu0 %v1250
    %1348 = vmatpush.bf16.msra.mxu0 %v1246
    %1349 = vmatpush.bf16.msra.mxu0 %v1242
    %1350 = vmatmul.bf16.gmra.mxu0 %v1103
    %v1351 = vpop.f32.mrf.mxu0
    %v1352 = vadd.f32 0.0, %v1351
    %v1353 = vpop.f32.mrf.mxu0
    %1354 = vdwg.mxu0
    %v1355 = vadd.f32 %v1107, %v1313
    %v1356 = vadd.f32 %v1108, %v1326
    %v1357 = vadd.f32 %v1109, %v1339
    %v1358 = vadd.f32 %v1110, %v1352
    %v1359 = vxor.u32 %v1355, 2147483648
    %v1360 = vmul.f32 %v1359, 1.442695
    %v1361 = vpow.pop %v1360
    %v1362 = vadd.f32 %v1361, 1.0
    %v1363 = vrcp.pop %v1362
    %v1364 = vmul.f32 %v1362, %v1363
    %v1365 = vsub.f32 1.0, %v1364
    %v1366 = vmul.f32 %v1363, %v1365
    %v1367 = vadd.f32 %v1363, %v1366
    %vm1368 = vweird.f32 %v1362
    %vm1369 = vweird.f32 %v1363
    %vm1370 = vmor %vm1368, %vm1369
    %v1371 = vsel %vm1370, %v1363, %v1367
    %v1372 = vand.u32 2147483647, %v1362
    %vm1373 = vcmp.eq.f32.partialorder %v1372, 8.507059e+37
    %v1374 = vand.u32 %v1362, 2147483648
    %v1375 = vor.u32 1.1754944e-38, %v1374
    %v1376 = vsel %vm1373, %v1375, %v1371
    %v1377 = vmul.f32 1.0, %v1376
    %v1378 = vxor.u32 %v1356, 2147483648
    %v1379 = vmul.f32 %v1378, 1.442695
    %v1380 = vpow.pop %v1379
    %v1381 = vadd.f32 %v1380, 1.0
    %v1382 = vrcp.pop %v1381
    %v1383 = vmul.f32 %v1381, %v1382
    %v1384 = vsub.f32 1.0, %v1383
    %v1385 = vmul.f32 %v1382, %v1384
    %v1386 = vadd.f32 %v1382, %v1385
    %vm1387 = vweird.f32 %v1381
    %vm1388 = vweird.f32 %v1382
    %vm1389 = vmor %vm1387, %vm1388
    %v1390 = vsel %vm1389, %v1382, %v1386
    %v1391 = vand.u32 2147483647, %v1381
    %vm1392 = vcmp.eq.f32.partialorder %v1391, 8.507059e+37
    %v1393 = vand.u32 %v1381, 2147483648
    %v1394 = vor.u32 1.1754944e-38, %v1393
    %v1395 = vsel %vm1392, %v1394, %v1390
    %v1396 = vmul.f32 1.0, %v1395
    %v1397 = vtanh.pop %v1357
    %v1398 = vxor.u32 %v1358, 2147483648
    %v1399 = vmul.f32 %v1398, 1.442695
    %v1400 = vpow.pop %v1399
    %v1401 = vadd.f32 %v1400, 1.0
    %v1402 = vrcp.pop %v1401
    %v1403 = vmul.f32 %v1401, %v1402
    %v1404 = vsub.f32 1.0, %v1403
    %v1405 = vmul.f32 %v1402, %v1404
    %v1406 = vadd.f32 %v1402, %v1405
    %vm1407 = vweird.f32 %v1401
    %vm1408 = vweird.f32 %v1402
    %vm1409 = vmor %vm1407, %vm1408
    %v1410 = vsel %vm1409, %v1402, %v1406
    %v1411 = vand.u32 2147483647, %v1401
    %vm1412 = vcmp.eq.f32.partialorder %v1411, 8.507059e+37
    %v1413 = vand.u32 %v1401, 2147483648
    %v1414 = vor.u32 1.1754944e-38, %v1413
    %v1415 = vsel %vm1412, %v1414, %v1410
    %v1416 = vmul.f32 1.0, %v1415
    %v1417 = vmul.f32 %v1396, %v1100
    %v1418 = vmul.f32 %v1377, %v1397
    %v1419 = vadd.f32 %v1417, %v1418
    %v1420 = vtanh.pop %v1419
    %v1421 = vmul.f32 %v1416, %v1420
    %v1422 = vpack.c.bf16 %v1421, %v1421
    %s1423 = scalar_lea.vmem [#allocation13], 8
    %1424 = vst [vmem:[%s1423] sm:$0xf] %v1422
    %s1425 = scalar_lea.vmem [#allocation2], 96
    %v1426 = vld [vmem:[%s1425] sm:$0xff]
    %v1427 = vld [vmem:[%s1425 + $0x8] sm:$0xff]
    %v1428 = vld [vmem:[%s1425 + $0x10] sm:$0xff]
    %v1429 = vld [vmem:[%s1425 + $0x18] sm:$0xff]
    %v1430 = vld [vmem:[#allocation10] sm:$0xff]
    %v1431 = vld [vmem:[#allocation10 + $0x8] sm:$0xff]
    %v1432 = vld [vmem:[#allocation10 + $0x10] sm:$0xff]
    %v1433 = vld [vmem:[#allocation10 + $0x18] sm:$0xff]
    %v1434 = vld [vmem:[#allocation10 + $0x20] sm:$0xff]
    %v1435 = vld [vmem:[#allocation10 + $0x28] sm:$0xff]
    %v1436 = vld [vmem:[#allocation10 + $0x30] sm:$0xff]
    %v1437 = vld [vmem:[#allocation10 + $0x38] sm:$0xff]
    %v1438 = vld [vmem:[#allocation10 + $0x40] sm:$0xff]
    %v1439 = vld [vmem:[#allocation10 + $0x48] sm:$0xff]
    %v1440 = vld [vmem:[#allocation10 + $0x50] sm:$0xff]
    %v1441 = vld [vmem:[#allocation10 + $0x58] sm:$0xff]
    %v1442 = vld [vmem:[#allocation10 + $0x60] sm:$0xff]
    %v1443 = vld [vmem:[#allocation10 + $0x68] sm:$0xff]
    %v1444 = vld [vmem:[#allocation10 + $0x70] sm:$0xff]
    %v1445 = vld [vmem:[#allocation10 + $0x78] sm:$0xff]
    %v1446 = vld [vmem:[#allocation10 + $0x80] sm:$0xff]
    %v1447 = vld [vmem:[#allocation10 + $0x88] sm:$0xff]
    %v1448 = vld [vmem:[#allocation10 + $0x90] sm:$0xff]
    %v1449 = vld [vmem:[#allocation10 + $0x98] sm:$0xff]
    %v1450 = vld [vmem:[#allocation10 + $0xa0] sm:$0xff]
    %v1451 = vld [vmem:[#allocation10 + $0xa8] sm:$0xff]
    %v1452 = vld [vmem:[#allocation10 + $0xb0] sm:$0xff]
    %v1453 = vld [vmem:[#allocation10 + $0xb8] sm:$0xff]
    %v1454 = vld [vmem:[#allocation10 + $0xc0] sm:$0xff]
    %v1455 = vld [vmem:[#allocation10 + $0xc8] sm:$0xff]
    %v1456 = vld [vmem:[#allocation10 + $0xd0] sm:$0xff]
    %v1457 = vld [vmem:[#allocation10 + $0xd8] sm:$0xff]
    %v1458 = vld [vmem:[#allocation10 + $0xe0] sm:$0xff]
    %v1459 = vld [vmem:[#allocation10 + $0xe8] sm:$0xff]
    %v1460 = vld [vmem:[#allocation10 + $0xf0] sm:$0xff]
    %v1461 = vld [vmem:[#allocation10 + $0xf8] sm:$0xff]
    %v1494 = vunpack.c.l.b16 %v1430
    %v1495 = vunpack.c.h.b16 %v1430
    %v1496 = vunpack.c.l.b16 %v1431
    %v1497 = vunpack.c.h.b16 %v1431
    %v1498 = vunpack.c.l.b16 %v1432
    %v1499 = vunpack.c.h.b16 %v1432
    %v1500 = vunpack.c.l.b16 %v1433
    %v1501 = vunpack.c.h.b16 %v1433
    %v1502 = vunpack.c.l.b16 %v1434
    %v1503 = vunpack.c.h.b16 %v1434
    %v1504 = vunpack.c.l.b16 %v1435
    %v1505 = vunpack.c.h.b16 %v1435
    %v1506 = vunpack.c.l.b16 %v1436
    %v1507 = vunpack.c.h.b16 %v1436
    %v1508 = vunpack.c.l.b16 %v1437
    %v1509 = vunpack.c.h.b16 %v1437
    %v1510 = vunpack.c.l.b16 %v1438
    %v1511 = vunpack.c.h.b16 %v1438
    %v1512 = vunpack.c.l.b16 %v1439
    %v1513 = vunpack.c.h.b16 %v1439
    %v1514 = vunpack.c.l.b16 %v1440
    %v1515 = vunpack.c.h.b16 %v1440
    %v1516 = vunpack.c.l.b16 %v1441
    %v1517 = vunpack.c.h.b16 %v1441
    %v1518 = vunpack.c.l.b16 %v1442
    %v1519 = vunpack.c.h.b16 %v1442
    %v1520 = vunpack.c.l.b16 %v1443
    %v1521 = vunpack.c.h.b16 %v1443
    %v1522 = vunpack.c.l.b16 %v1444
    %v1523 = vunpack.c.h.b16 %v1444
    %v1524 = vunpack.c.l.b16 %v1445
    %v1525 = vunpack.c.h.b16 %v1445
    %v1526 = vunpack.c.l.b16 %v1446
    %v1527 = vunpack.c.h.b16 %v1446
    %v1528 = vunpack.c.l.b16 %v1447
    %v1529 = vunpack.c.h.b16 %v1447
    %v1530 = vunpack.c.l.b16 %v1448
    %v1531 = vunpack.c.h.b16 %v1448
    %v1532 = vunpack.c.l.b16 %v1449
    %v1533 = vunpack.c.h.b16 %v1449
    %v1534 = vunpack.c.l.b16 %v1450
    %v1535 = vunpack.c.h.b16 %v1450
    %v1536 = vunpack.c.l.b16 %v1451
    %v1537 = vunpack.c.h.b16 %v1451
    %v1538 = vunpack.c.l.b16 %v1452
    %v1539 = vunpack.c.h.b16 %v1452
    %v1540 = vunpack.c.l.b16 %v1453
    %v1541 = vunpack.c.h.b16 %v1453
    %v1542 = vunpack.c.l.b16 %v1454
    %v1543 = vunpack.c.h.b16 %v1454
    %v1544 = vunpack.c.l.b16 %v1455
    %v1545 = vunpack.c.h.b16 %v1455
    %v1546 = vunpack.c.l.b16 %v1456
    %v1547 = vunpack.c.h.b16 %v1456
    %v1548 = vunpack.c.l.b16 %v1457
    %v1549 = vunpack.c.h.b16 %v1457
    %v1550 = vunpack.c.l.b16 %v1458
    %v1551 = vunpack.c.h.b16 %v1458
    %v1552 = vunpack.c.l.b16 %v1459
    %v1553 = vunpack.c.h.b16 %v1459
    %v1554 = vunpack.c.l.b16 %v1460
    %v1555 = vunpack.c.h.b16 %v1460
    %v1556 = vunpack.c.l.b16 %v1461
    %v1557 = vunpack.c.h.b16 %v1461
    %v1558 = vpack.c.b16 %v1498, %v1494
    %v1559 = vpack.c.b16 %v1499, %v1495
    %v1560 = vpack.c.b16 %v1500, %v1496
    %v1561 = vpack.c.b16 %v1501, %v1497
    %v1562 = vpack.c.b16 %v1506, %v1502
    %v1563 = vpack.c.b16 %v1507, %v1503
    %v1564 = vpack.c.b16 %v1508, %v1504
    %v1565 = vpack.c.b16 %v1509, %v1505
    %v1566 = vpack.c.b16 %v1514, %v1510
    %v1567 = vpack.c.b16 %v1515, %v1511
    %v1568 = vpack.c.b16 %v1516, %v1512
    %v1569 = vpack.c.b16 %v1517, %v1513
    %v1570 = vpack.c.b16 %v1522, %v1518
    %v1571 = vpack.c.b16 %v1523, %v1519
    %v1572 = vpack.c.b16 %v1524, %v1520
    %v1573 = vpack.c.b16 %v1525, %v1521
    %v1574 = vpack.c.b16 %v1530, %v1526
    %v1575 = vpack.c.b16 %v1531, %v1527
    %v1576 = vpack.c.b16 %v1532, %v1528
    %v1577 = vpack.c.b16 %v1533, %v1529
    %v1578 = vpack.c.b16 %v1538, %v1534
    %v1579 = vpack.c.b16 %v1539, %v1535
    %v1580 = vpack.c.b16 %v1540, %v1536
    %v1581 = vpack.c.b16 %v1541, %v1537
    %v1582 = vpack.c.b16 %v1546, %v1542
    %v1583 = vpack.c.b16 %v1547, %v1543
    %v1584 = vpack.c.b16 %v1548, %v1544
    %v1585 = vpack.c.b16 %v1549, %v1545
    %v1586 = vpack.c.b16 %v1554, %v1550
    %v1587 = vpack.c.b16 %v1555, %v1551
    %v1588 = vpack.c.b16 %v1556, %v1552
    %v1589 = vpack.c.b16 %v1557, %v1553
    %1622 = vmatpush.bf16.msra.mxu0 %v1586
    %1623 = vmatpush.bf16.msra.mxu0 %v1582
    %1624 = vmatpush.bf16.msra.mxu0 %v1578
    %1625 = vmatpush.bf16.msra.mxu0 %v1574
    %1626 = vmatpush.bf16.msra.mxu0 %v1570
    %1627 = vmatpush.bf16.msra.mxu0 %v1566
    %1628 = vmatpush.bf16.msra.mxu0 %v1562
    %1629 = vmatpush.bf16.msra.mxu0 %v1558
    %1630 = vmatmul.bf16.gmra.mxu0 %v1422
    %v1631 = vpop.f32.mrf.mxu0
    %v1632 = vadd.f32 0.0, %v1631
    %v1633 = vpop.f32.mrf.mxu0
    %1634 = vdwg.mxu0
    %1635 = vmatpush.bf16.msra.mxu0 %v1587
    %1636 = vmatpush.bf16.msra.mxu0 %v1583
    %1637 = vmatpush.bf16.msra.mxu0 %v1579
    %1638 = vmatpush.bf16.msra.mxu0 %v1575
    %1639 = vmatpush.bf16.msra.mxu0 %v1571
    %1640 = vmatpush.bf16.msra.mxu0 %v1567
    %1641 = vmatpush.bf16.msra.mxu0 %v1563
    %1642 = vmatpush.bf16.msra.mxu0 %v1559
    %1643 = vmatmul.bf16.gmra.mxu0 %v1422
    %v1644 = vpop.f32.mrf.mxu0
    %v1645 = vadd.f32 0.0, %v1644
    %v1646 = vpop.f32.mrf.mxu0
    %1647 = vdwg.mxu0
    %1648 = vmatpush.bf16.msra.mxu0 %v1588
    %1649 = vmatpush.bf16.msra.mxu0 %v1584
    %1650 = vmatpush.bf16.msra.mxu0 %v1580
    %1651 = vmatpush.bf16.msra.mxu0 %v1576
    %1652 = vmatpush.bf16.msra.mxu0 %v1572
    %1653 = vmatpush.bf16.msra.mxu0 %v1568
    %1654 = vmatpush.bf16.msra.mxu0 %v1564
    %1655 = vmatpush.bf16.msra.mxu0 %v1560
    %1656 = vmatmul.bf16.gmra.mxu0 %v1422
    %v1657 = vpop.f32.mrf.mxu0
    %v1658 = vadd.f32 0.0, %v1657
    %v1659 = vpop.f32.mrf.mxu0
    %1660 = vdwg.mxu0
    %1661 = vmatpush.bf16.msra.mxu0 %v1589
    %1662 = vmatpush.bf16.msra.mxu0 %v1585
    %1663 = vmatpush.bf16.msra.mxu0 %v1581
    %1664 = vmatpush.bf16.msra.mxu0 %v1577
    %1665 = vmatpush.bf16.msra.mxu0 %v1573
    %1666 = vmatpush.bf16.msra.mxu0 %v1569
    %1667 = vmatpush.bf16.msra.mxu0 %v1565
    %1668 = vmatpush.bf16.msra.mxu0 %v1561
    %1669 = vmatmul.bf16.gmra.mxu0 %v1422
    %v1670 = vpop.f32.mrf.mxu0
    %v1671 = vadd.f32 0.0, %v1670
    %v1672 = vpop.f32.mrf.mxu0
    %1673 = vdwg.mxu0
    %v1674 = vadd.f32 %v1426, %v1632
    %v1675 = vadd.f32 %v1427, %v1645
    %v1676 = vadd.f32 %v1428, %v1658
    %v1677 = vadd.f32 %v1429, %v1671
    %v1678 = vxor.u32 %v1674, 2147483648
    %v1679 = vmul.f32 %v1678, 1.442695
    %v1680 = vpow.pop %v1679
    %v1681 = vadd.f32 %v1680, 1.0
    %v1682 = vrcp.pop %v1681
    %v1683 = vmul.f32 %v1681, %v1682
    %v1684 = vsub.f32 1.0, %v1683
    %v1685 = vmul.f32 %v1682, %v1684
    %v1686 = vadd.f32 %v1682, %v1685
    %vm1687 = vweird.f32 %v1681
    %vm1688 = vweird.f32 %v1682
    %vm1689 = vmor %vm1687, %vm1688
    %v1690 = vsel %vm1689, %v1682, %v1686
    %v1691 = vand.u32 2147483647, %v1681
    %vm1692 = vcmp.eq.f32.partialorder %v1691, 8.507059e+37
    %v1693 = vand.u32 %v1681, 2147483648
    %v1694 = vor.u32 1.1754944e-38, %v1693
    %v1695 = vsel %vm1692, %v1694, %v1690
    %v1696 = vmul.f32 1.0, %v1695
    %v1697 = vxor.u32 %v1675, 2147483648
    %v1698 = vmul.f32 %v1697, 1.442695
    %v1699 = vpow.pop %v1698
    %v1700 = vadd.f32 %v1699, 1.0
    %v1701 = vrcp.pop %v1700
    %v1702 = vmul.f32 %v1700, %v1701
    %v1703 = vsub.f32 1.0, %v1702
    %v1704 = vmul.f32 %v1701, %v1703
    %v1705 = vadd.f32 %v1701, %v1704
    %vm1706 = vweird.f32 %v1700
    %vm1707 = vweird.f32 %v1701
    %vm1708 = vmor %vm1706, %vm1707
    %v1709 = vsel %vm1708, %v1701, %v1705
    %v1710 = vand.u32 2147483647, %v1700
    %vm1711 = vcmp.eq.f32.partialorder %v1710, 8.507059e+37
    %v1712 = vand.u32 %v1700, 2147483648
    %v1713 = vor.u32 1.1754944e-38, %v1712
    %v1714 = vsel %vm1711, %v1713, %v1709
    %v1715 = vmul.f32 1.0, %v1714
    %v1716 = vtanh.pop %v1676
    %v1717 = vxor.u32 %v1677, 2147483648
    %v1718 = vmul.f32 %v1717, 1.442695
    %v1719 = vpow.pop %v1718
    %v1720 = vadd.f32 %v1719, 1.0
    %v1721 = vrcp.pop %v1720
    %v1722 = vmul.f32 %v1720, %v1721
    %v1723 = vsub.f32 1.0, %v1722
    %v1724 = vmul.f32 %v1721, %v1723
    %v1725 = vadd.f32 %v1721, %v1724
    %vm1726 = vweird.f32 %v1720
    %vm1727 = vweird.f32 %v1721
    %vm1728 = vmor %vm1726, %vm1727
    %v1729 = vsel %vm1728, %v1721, %v1725
    %v1730 = vand.u32 2147483647, %v1720
    %vm1731 = vcmp.eq.f32.partialorder %v1730, 8.507059e+37
    %v1732 = vand.u32 %v1720, 2147483648
    %v1733 = vor.u32 1.1754944e-38, %v1732
    %v1734 = vsel %vm1731, %v1733, %v1729
    %v1735 = vmul.f32 1.0, %v1734
    %v1736 = vmul.f32 %v1715, %v1419
    %v1737 = vmul.f32 %v1696, %v1716
    %v1738 = vadd.f32 %v1736, %v1737
    %v1739 = vtanh.pop %v1738
    %v1740 = vmul.f32 %v1735, %v1739
    %v1741 = vpack.c.bf16 %v1740, %v1740
    %s1742 = scalar_lea.vmem [#allocation13], 12
    %1743 = vst [vmem:[%s1742] sm:$0xf] %v1741
    %s1744 = scalar_lea.vmem [#allocation2], 128
    %v1745 = vld [vmem:[%s1744] sm:$0xff]
    %v1746 = vld [vmem:[%s1744 + $0x8] sm:$0xff]
    %v1747 = vld [vmem:[%s1744 + $0x10] sm:$0xff]
    %v1748 = vld [vmem:[%s1744 + $0x18] sm:$0xff]
    %v1749 = vld [vmem:[#allocation10] sm:$0xff]
    %v1750 = vld [vmem:[#allocation10 + $0x8] sm:$0xff]
    %v1751 = vld [vmem:[#allocation10 + $0x10] sm:$0xff]
    %v1752 = vld [vmem:[#allocation10 + $0x18] sm:$0xff]
    %v1753 = vld [vmem:[#allocation10 + $0x20] sm:$0xff]
    %v1754 = vld [vmem:[#allocation10 + $0x28] sm:$0xff]
    %v1755 = vld [vmem:[#allocation10 + $0x30] sm:$0xff]
    %v1756 = vld [vmem:[#allocation10 + $0x38] sm:$0xff]
    %v1757 = vld [vmem:[#allocation10 + $0x40] sm:$0xff]
    %v1758 = vld [vmem:[#allocation10 + $0x48] sm:$0xff]
    %v1759 = vld [vmem:[#allocation10 + $0x50] sm:$0xff]
    %v1760 = vld [vmem:[#allocation10 + $0x58] sm:$0xff]
    %v1761 = vld [vmem:[#allocation10 + $0x60] sm:$0xff]
    %v1762 = vld [vmem:[#allocation10 + $0x68] sm:$0xff]
    %v1763 = vld [vmem:[#allocation10 + $0x70] sm:$0xff]
    %v1764 = vld [vmem:[#allocation10 + $0x78] sm:$0xff]
    %v1765 = vld [vmem:[#allocation10 + $0x80] sm:$0xff]
    %v1766 = vld [vmem:[#allocation10 + $0x88] sm:$0xff]
    %v1767 = vld [vmem:[#allocation10 + $0x90] sm:$0xff]
    %v1768 = vld [vmem:[#allocation10 + $0x98] sm:$0xff]
    %v1769 = vld [vmem:[#allocation10 + $0xa0] sm:$0xff]
    %v1770 = vld [vmem:[#allocation10 + $0xa8] sm:$0xff]
    %v1771 = vld [vmem:[#allocation10 + $0xb0] sm:$0xff]
    %v1772 = vld [vmem:[#allocation10 + $0xb8] sm:$0xff]
    %v1773 = vld [vmem:[#allocation10 + $0xc0] sm:$0xff]
    %v1774 = vld [vmem:[#allocation10 + $0xc8] sm:$0xff]
    %v1775 = vld [vmem:[#allocation10 + $0xd0] sm:$0xff]
    %v1776 = vld [vmem:[#allocation10 + $0xd8] sm:$0xff]
    %v1777 = vld [vmem:[#allocation10 + $0xe0] sm:$0xff]
    %v1778 = vld [vmem:[#allocation10 + $0xe8] sm:$0xff]
    %v1779 = vld [vmem:[#allocation10 + $0xf0] sm:$0xff]
    %v1780 = vld [vmem:[#allocation10 + $0xf8] sm:$0xff]
    %v1813 = vunpack.c.l.b16 %v1749
    %v1814 = vunpack.c.h.b16 %v1749
    %v1815 = vunpack.c.l.b16 %v1750
    %v1816 = vunpack.c.h.b16 %v1750
    %v1817 = vunpack.c.l.b16 %v1751
    %v1818 = vunpack.c.h.b16 %v1751
    %v1819 = vunpack.c.l.b16 %v1752
    %v1820 = vunpack.c.h.b16 %v1752
    %v1821 = vunpack.c.l.b16 %v1753
    %v1822 = vunpack.c.h.b16 %v1753
    %v1823 = vunpack.c.l.b16 %v1754
    %v1824 = vunpack.c.h.b16 %v1754
    %v1825 = vunpack.c.l.b16 %v1755
    %v1826 = vunpack.c.h.b16 %v1755
    %v1827 = vunpack.c.l.b16 %v1756
    %v1828 = vunpack.c.h.b16 %v1756
    %v1829 = vunpack.c.l.b16 %v1757
    %v1830 = vunpack.c.h.b16 %v1757
    %v1831 = vunpack.c.l.b16 %v1758
    %v1832 = vunpack.c.h.b16 %v1758
    %v1833 = vunpack.c.l.b16 %v1759
    %v1834 = vunpack.c.h.b16 %v1759
    %v1835 = vunpack.c.l.b16 %v1760
    %v1836 = vunpack.c.h.b16 %v1760
    %v1837 = vunpack.c.l.b16 %v1761
    %v1838 = vunpack.c.h.b16 %v1761
    %v1839 = vunpack.c.l.b16 %v1762
    %v1840 = vunpack.c.h.b16 %v1762
    %v1841 = vunpack.c.l.b16 %v1763
    %v1842 = vunpack.c.h.b16 %v1763
    %v1843 = vunpack.c.l.b16 %v1764
    %v1844 = vunpack.c.h.b16 %v1764
    %v1845 = vunpack.c.l.b16 %v1765
    %v1846 = vunpack.c.h.b16 %v1765
    %v1847 = vunpack.c.l.b16 %v1766
    %v1848 = vunpack.c.h.b16 %v1766
    %v1849 = vunpack.c.l.b16 %v1767
    %v1850 = vunpack.c.h.b16 %v1767
    %v1851 = vunpack.c.l.b16 %v1768
    %v1852 = vunpack.c.h.b16 %v1768
    %v1853 = vunpack.c.l.b16 %v1769
    %v1854 = vunpack.c.h.b16 %v1769
    %v1855 = vunpack.c.l.b16 %v1770
    %v1856 = vunpack.c.h.b16 %v1770
    %v1857 = vunpack.c.l.b16 %v1771
    %v1858 = vunpack.c.h.b16 %v1771
    %v1859 = vunpack.c.l.b16 %v1772
    %v1860 = vunpack.c.h.b16 %v1772
    %v1861 = vunpack.c.l.b16 %v1773
    %v1862 = vunpack.c.h.b16 %v1773
    %v1863 = vunpack.c.l.b16 %v1774
    %v1864 = vunpack.c.h.b16 %v1774
    %v1865 = vunpack.c.l.b16 %v1775
    %v1866 = vunpack.c.h.b16 %v1775
    %v1867 = vunpack.c.l.b16 %v1776
    %v1868 = vunpack.c.h.b16 %v1776
    %v1869 = vunpack.c.l.b16 %v1777
    %v1870 = vunpack.c.h.b16 %v1777
    %v1871 = vunpack.c.l.b16 %v1778
    %v1872 = vunpack.c.h.b16 %v1778
    %v1873 = vunpack.c.l.b16 %v1779
    %v1874 = vunpack.c.h.b16 %v1779
    %v1875 = vunpack.c.l.b16 %v1780
    %v1876 = vunpack.c.h.b16 %v1780
    %v1877 = vpack.c.b16 %v1817, %v1813
    %v1878 = vpack.c.b16 %v1818, %v1814
    %v1879 = vpack.c.b16 %v1819, %v1815
    %v1880 = vpack.c.b16 %v1820, %v1816
    %v1881 = vpack.c.b16 %v1825, %v1821
    %v1882 = vpack.c.b16 %v1826, %v1822
    %v1883 = vpack.c.b16 %v1827, %v1823
    %v1884 = vpack.c.b16 %v1828, %v1824
    %v1885 = vpack.c.b16 %v1833, %v1829
    %v1886 = vpack.c.b16 %v1834, %v1830
    %v1887 = vpack.c.b16 %v1835, %v1831
    %v1888 = vpack.c.b16 %v1836, %v1832
    %v1889 = vpack.c.b16 %v1841, %v1837
    %v1890 = vpack.c.b16 %v1842, %v1838
    %v1891 = vpack.c.b16 %v1843, %v1839
    %v1892 = vpack.c.b16 %v1844, %v1840
    %v1893 = vpack.c.b16 %v1849, %v1845
    %v1894 = vpack.c.b16 %v1850, %v1846
    %v1895 = vpack.c.b16 %v1851, %v1847
    %v1896 = vpack.c.b16 %v1852, %v1848
    %v1897 = vpack.c.b16 %v1857, %v1853
    %v1898 = vpack.c.b16 %v1858, %v1854
    %v1899 = vpack.c.b16 %v1859, %v1855
    %v1900 = vpack.c.b16 %v1860, %v1856
    %v1901 = vpack.c.b16 %v1865, %v1861
    %v1902 = vpack.c.b16 %v1866, %v1862
    %v1903 = vpack.c.b16 %v1867, %v1863
    %v1904 = vpack.c.b16 %v1868, %v1864
    %v1905 = vpack.c.b16 %v1873, %v1869
    %v1906 = vpack.c.b16 %v1874, %v1870
    %v1907 = vpack.c.b16 %v1875, %v1871
    %v1908 = vpack.c.b16 %v1876, %v1872
    %1941 = vmatpush.bf16.msra.mxu0 %v1905
    %1942 = vmatpush.bf16.msra.mxu0 %v1901
    %1943 = vmatpush.bf16.msra.mxu0 %v1897
    %1944 = vmatpush.bf16.msra.mxu0 %v1893
    %1945 = vmatpush.bf16.msra.mxu0 %v1889
    %1946 = vmatpush.bf16.msra.mxu0 %v1885
    %1947 = vmatpush.bf16.msra.mxu0 %v1881
    %1948 = vmatpush.bf16.msra.mxu0 %v1877
    %1949 = vmatmul.bf16.gmra.mxu0 %v1741
    %v1950 = vpop.f32.mrf.mxu0
    %v1951 = vadd.f32 0.0, %v1950
    %v1952 = vpop.f32.mrf.mxu0
    %1953 = vdwg.mxu0
    %1954 = vmatpush.bf16.msra.mxu0 %v1906
    %1955 = vmatpush.bf16.msra.mxu0 %v1902
    %1956 = vmatpush.bf16.msra.mxu0 %v1898
    %1957 = vmatpush.bf16.msra.mxu0 %v1894
    %1958 = vmatpush.bf16.msra.mxu0 %v1890
    %1959 = vmatpush.bf16.msra.mxu0 %v1886
    %1960 = vmatpush.bf16.msra.mxu0 %v1882
    %1961 = vmatpush.bf16.msra.mxu0 %v1878
    %1962 = vmatmul.bf16.gmra.mxu0 %v1741
    %v1963 = vpop.f32.mrf.mxu0
    %v1964 = vadd.f32 0.0, %v1963
    %v1965 = vpop.f32.mrf.mxu0
    %1966 = vdwg.mxu0
    %1967 = vmatpush.bf16.msra.mxu0 %v1907
    %1968 = vmatpush.bf16.msra.mxu0 %v1903
    %1969 = vmatpush.bf16.msra.mxu0 %v1899
    %1970 = vmatpush.bf16.msra.mxu0 %v1895
    %1971 = vmatpush.bf16.msra.mxu0 %v1891
    %1972 = vmatpush.bf16.msra.mxu0 %v1887
    %1973 = vmatpush.bf16.msra.mxu0 %v1883
    %1974 = vmatpush.bf16.msra.mxu0 %v1879
    %1975 = vmatmul.bf16.gmra.mxu0 %v1741
    %v1976 = vpop.f32.mrf.mxu0
    %v1977 = vadd.f32 0.0, %v1976
    %v1978 = vpop.f32.mrf.mxu0
    %1979 = vdwg.mxu0
    %1980 = vmatpush.bf16.msra.mxu0 %v1908
    %1981 = vmatpush.bf16.msra.mxu0 %v1904
    %1982 = vmatpush.bf16.msra.mxu0 %v1900
    %1983 = vmatpush.bf16.msra.mxu0 %v1896
    %1984 = vmatpush.bf16.msra.mxu0 %v1892
    %1985 = vmatpush.bf16.msra.mxu0 %v1888
    %1986 = vmatpush.bf16.msra.mxu0 %v1884
    %1987 = vmatpush.bf16.msra.mxu0 %v1880
    %1988 = vmatmul.bf16.gmra.mxu0 %v1741
    %v1989 = vpop.f32.mrf.mxu0
    %v1990 = vadd.f32 0.0, %v1989
    %v1991 = vpop.f32.mrf.mxu0
    %1992 = vdwg.mxu0
    %v1993 = vadd.f32 %v1745, %v1951
    %v1994 = vadd.f32 %v1746, %v1964
    %v1995 = vadd.f32 %v1747, %v1977
    %v1996 = vadd.f32 %v1748, %v1990
    %v1997 = vxor.u32 %v1993, 2147483648
    %v1998 = vmul.f32 %v1997, 1.442695
    %v1999 = vpow.pop %v1998
    %v2000 = vadd.f32 %v1999, 1.0
    %v2001 = vrcp.pop %v2000
    %v2002 = vmul.f32 %v2000, %v2001
    %v2003 = vsub.f32 1.0, %v2002
    %v2004 = vmul.f32 %v2001, %v2003
    %v2005 = vadd.f32 %v2001, %v2004
    %vm2006 = vweird.f32 %v2000
    %vm2007 = vweird.f32 %v2001
    %vm2008 = vmor %vm2006, %vm2007
    %v2009 = vsel %vm2008, %v2001, %v2005
    %v2010 = vand.u32 2147483647, %v2000
    %vm2011 = vcmp.eq.f32.partialorder %v2010, 8.507059e+37
    %v2012 = vand.u32 %v2000, 2147483648
    %v2013 = vor.u32 1.1754944e-38, %v2012
    %v2014 = vsel %vm2011, %v2013, %v2009
    %v2015 = vmul.f32 1.0, %v2014
    %v2016 = vxor.u32 %v1994, 2147483648
    %v2017 = vmul.f32 %v2016, 1.442695
    %v2018 = vpow.pop %v2017
    %v2019 = vadd.f32 %v2018, 1.0
    %v2020 = vrcp.pop %v2019
    %v2021 = vmul.f32 %v2019, %v2020
    %v2022 = vsub.f32 1.0, %v2021
    %v2023 = vmul.f32 %v2020, %v2022
    %v2024 = vadd.f32 %v2020, %v2023
    %vm2025 = vweird.f32 %v2019
    %vm2026 = vweird.f32 %v2020
    %vm2027 = vmor %vm2025, %vm2026
    %v2028 = vsel %vm2027, %v2020, %v2024
    %v2029 = vand.u32 2147483647, %v2019
    %vm2030 = vcmp.eq.f32.partialorder %v2029, 8.507059e+37
    %v2031 = vand.u32 %v2019, 2147483648
    %v2032 = vor.u32 1.1754944e-38, %v2031
    %v2033 = vsel %vm2030, %v2032, %v2028
    %v2034 = vmul.f32 1.0, %v2033
    %v2035 = vtanh.pop %v1995
    %v2036 = vxor.u32 %v1996, 2147483648
    %v2037 = vmul.f32 %v2036, 1.442695
    %v2038 = vpow.pop %v2037
    %v2039 = vadd.f32 %v2038, 1.0
    %v2040 = vrcp.pop %v2039
    %v2041 = vmul.f32 %v2039, %v2040
    %v2042 = vsub.f32 1.0, %v2041
    %v2043 = vmul.f32 %v2040, %v2042
    %v2044 = vadd.f32 %v2040, %v2043
    %vm2045 = vweird.f32 %v2039
    %vm2046 = vweird.f32 %v2040
    %vm2047 = vmor %vm2045, %vm2046
    %v2048 = vsel %vm2047, %v2040, %v2044
    %v2049 = vand.u32 2147483647, %v2039
    %vm2050 = vcmp.eq.f32.partialorder %v2049, 8.507059e+37
    %v2051 = vand.u32 %v2039, 2147483648
    %v2052 = vor.u32 1.1754944e-38, %v2051
    %v2053 = vsel %vm2050, %v2052, %v2048
    %v2054 = vmul.f32 1.0, %v2053
    %v2055 = vmul.f32 %v2034, %v1738
    %v2056 = vmul.f32 %v2015, %v2035
    %v2057 = vadd.f32 %v2055, %v2056
    %v2058 = vtanh.pop %v2057
    %v2059 = vmul.f32 %v2054, %v2058
    %v2060 = vpack.c.bf16 %v2059, %v2059
    %s2061 = scalar_lea.vmem [#allocation13], 16
    %2062 = vst [vmem:[%s2061] sm:$0xf] %v2060
    %s2063 = scalar_lea.vmem [#allocation2], 160
    %v2064 = vld [vmem:[%s2063] sm:$0xff]
    %v2065 = vld [vmem:[%s2063 + $0x8] sm:$0xff]
    %v2066 = vld [vmem:[%s2063 + $0x10] sm:$0xff]
    %v2067 = vld [vmem:[%s2063 + $0x18] sm:$0xff]
    %v2068 = vld [vmem:[#allocation10] sm:$0xff]
    %v2069 = vld [vmem:[#allocation10 + $0x8] sm:$0xff]
    %v2070 = vld [vmem:[#allocation10 + $0x10] sm:$0xff]
    %v2071 = vld [vmem:[#allocation10 + $0x18] sm:$0xff]
    %v2072 = vld [vmem:[#allocation10 + $0x20] sm:$0xff]
    %v2073 = vld [vmem:[#allocation10 + $0x28] sm:$0xff]
    %v2074 = vld [vmem:[#allocation10 + $0x30] sm:$0xff]
    %v2075 = vld [vmem:[#allocation10 + $0x38] sm:$0xff]
    %v2076 = vld [vmem:[#allocation10 + $0x40] sm:$0xff]
    %v2077 = vld [vmem:[#allocation10 + $0x48] sm:$0xff]
    %v2078 = vld [vmem:[#allocation10 + $0x50] sm:$0xff]
    %v2079 = vld [vmem:[#allocation10 + $0x58] sm:$0xff]
    %v2080 = vld [vmem:[#allocation10 + $0x60] sm:$0xff]
    %v2081 = vld [vmem:[#allocation10 + $0x68] sm:$0xff]
    %v2082 = vld [vmem:[#allocation10 + $0x70] sm:$0xff]
    %v2083 = vld [vmem:[#allocation10 + $0x78] sm:$0xff]
    %v2084 = vld [vmem:[#allocation10 + $0x80] sm:$0xff]
    %v2085 = vld [vmem:[#allocation10 + $0x88] sm:$0xff]
    %v2086 = vld [vmem:[#allocation10 + $0x90] sm:$0xff]
    %v2087 = vld [vmem:[#allocation10 + $0x98] sm:$0xff]
    %v2088 = vld [vmem:[#allocation10 + $0xa0] sm:$0xff]
    %v2089 = vld [vmem:[#allocation10 + $0xa8] sm:$0xff]
    %v2090 = vld [vmem:[#allocation10 + $0xb0] sm:$0xff]
    %v2091 = vld [vmem:[#allocation10 + $0xb8] sm:$0xff]
    %v2092 = vld [vmem:[#allocation10 + $0xc0] sm:$0xff]
    %v2093 = vld [vmem:[#allocation10 + $0xc8] sm:$0xff]
    %v2094 = vld [vmem:[#allocation10 + $0xd0] sm:$0xff]
    %v2095 = vld [vmem:[#allocation10 + $0xd8] sm:$0xff]
    %v2096 = vld [vmem:[#allocation10 + $0xe0] sm:$0xff]
    %v2097 = vld [vmem:[#allocation10 + $0xe8] sm:$0xff]
    %v2098 = vld [vmem:[#allocation10 + $0xf0] sm:$0xff]
    %v2099 = vld [vmem:[#allocation10 + $0xf8] sm:$0xff]
    %v2132 = vunpack.c.l.b16 %v2068
    %v2133 = vunpack.c.h.b16 %v2068
    %v2134 = vunpack.c.l.b16 %v2069
    %v2135 = vunpack.c.h.b16 %v2069
    %v2136 = vunpack.c.l.b16 %v2070
    %v2137 = vunpack.c.h.b16 %v2070
    %v2138 = vunpack.c.l.b16 %v2071
    %v2139 = vunpack.c.h.b16 %v2071
    %v2140 = vunpack.c.l.b16 %v2072
    %v2141 = vunpack.c.h.b16 %v2072
    %v2142 = vunpack.c.l.b16 %v2073
    %v2143 = vunpack.c.h.b16 %v2073
    %v2144 = vunpack.c.l.b16 %v2074
    %v2145 = vunpack.c.h.b16 %v2074
    %v2146 = vunpack.c.l.b16 %v2075
    %v2147 = vunpack.c.h.b16 %v2075
    %v2148 = vunpack.c.l.b16 %v2076
    %v2149 = vunpack.c.h.b16 %v2076
    %v2150 = vunpack.c.l.b16 %v2077
    %v2151 = vunpack.c.h.b16 %v2077
    %v2152 = vunpack.c.l.b16 %v2078
    %v2153 = vunpack.c.h.b16 %v2078
    %v2154 = vunpack.c.l.b16 %v2079
    %v2155 = vunpack.c.h.b16 %v2079
    %v2156 = vunpack.c.l.b16 %v2080
    %v2157 = vunpack.c.h.b16 %v2080
    %v2158 = vunpack.c.l.b16 %v2081
    %v2159 = vunpack.c.h.b16 %v2081
    %v2160 = vunpack.c.l.b16 %v2082
    %v2161 = vunpack.c.h.b16 %v2082
    %v2162 = vunpack.c.l.b16 %v2083
    %v2163 = vunpack.c.h.b16 %v2083
    %v2164 = vunpack.c.l.b16 %v2084
    %v2165 = vunpack.c.h.b16 %v2084
    %v2166 = vunpack.c.l.b16 %v2085
    %v2167 = vunpack.c.h.b16 %v2085
    %v2168 = vunpack.c.l.b16 %v2086
    %v2169 = vunpack.c.h.b16 %v2086
    %v2170 = vunpack.c.l.b16 %v2087
    %v2171 = vunpack.c.h.b16 %v2087
    %v2172 = vunpack.c.l.b16 %v2088
    %v2173 = vunpack.c.h.b16 %v2088
    %v2174 = vunpack.c.l.b16 %v2089
    %v2175 = vunpack.c.h.b16 %v2089
    %v2176 = vunpack.c.l.b16 %v2090
    %v2177 = vunpack.c.h.b16 %v2090
    %v2178 = vunpack.c.l.b16 %v2091
    %v2179 = vunpack.c.h.b16 %v2091
    %v2180 = vunpack.c.l.b16 %v2092
    %v2181 = vunpack.c.h.b16 %v2092
    %v2182 = vunpack.c.l.b16 %v2093
    %v2183 = vunpack.c.h.b16 %v2093
    %v2184 = vunpack.c.l.b16 %v2094
    %v2185 = vunpack.c.h.b16 %v2094
    %v2186 = vunpack.c.l.b16 %v2095
    %v2187 = vunpack.c.h.b16 %v2095
    %v2188 = vunpack.c.l.b16 %v2096
    %v2189 = vunpack.c.h.b16 %v2096
    %v2190 = vunpack.c.l.b16 %v2097
    %v2191 = vunpack.c.h.b16 %v2097
    %v2192 = vunpack.c.l.b16 %v2098
    %v2193 = vunpack.c.h.b16 %v2098
    %v2194 = vunpack.c.l.b16 %v2099
    %v2195 = vunpack.c.h.b16 %v2099
    %v2196 = vpack.c.b16 %v2136, %v2132
    %v2197 = vpack.c.b16 %v2137, %v2133
    %v2198 = vpack.c.b16 %v2138, %v2134
    %v2199 = vpack.c.b16 %v2139, %v2135
    %v2200 = vpack.c.b16 %v2144, %v2140
    %v2201 = vpack.c.b16 %v2145, %v2141
    %v2202 = vpack.c.b16 %v2146, %v2142
    %v2203 = vpack.c.b16 %v2147, %v2143
    %v2204 = vpack.c.b16 %v2152, %v2148
    %v2205 = vpack.c.b16 %v2153, %v2149
    %v2206 = vpack.c.b16 %v2154, %v2150
    %v2207 = vpack.c.b16 %v2155, %v2151
    %v2208 = vpack.c.b16 %v2160, %v2156
    %v2209 = vpack.c.b16 %v2161, %v2157
    %v2210 = vpack.c.b16 %v2162, %v2158
    %v2211 = vpack.c.b16 %v2163, %v2159
    %v2212 = vpack.c.b16 %v2168, %v2164
    %v2213 = vpack.c.b16 %v2169, %v2165
    %v2214 = vpack.c.b16 %v2170, %v2166
    %v2215 = vpack.c.b16 %v2171, %v2167
    %v2216 = vpack.c.b16 %v2176, %v2172
    %v2217 = vpack.c.b16 %v2177, %v2173
    %v2218 = vpack.c.b16 %v2178, %v2174
    %v2219 = vpack.c.b16 %v2179, %v2175
    %v2220 = vpack.c.b16 %v2184, %v2180
    %v2221 = vpack.c.b16 %v2185, %v2181
    %v2222 = vpack.c.b16 %v2186, %v2182
    %v2223 = vpack.c.b16 %v2187, %v2183
    %v2224 = vpack.c.b16 %v2192, %v2188
    %v2225 = vpack.c.b16 %v2193, %v2189
    %v2226 = vpack.c.b16 %v2194, %v2190
    %v2227 = vpack.c.b16 %v2195, %v2191
    %2260 = vmatpush.bf16.msra.mxu0 %v2224
    %2261 = vmatpush.bf16.msra.mxu0 %v2220
    %2262 = vmatpush.bf16.msra.mxu0 %v2216
    %2263 = vmatpush.bf16.msra.mxu0 %v2212
    %2264 = vmatpush.bf16.msra.mxu0 %v2208
    %2265 = vmatpush.bf16.msra.mxu0 %v2204
    %2266 = vmatpush.bf16.msra.mxu0 %v2200
    %2267 = vmatpush.bf16.msra.mxu0 %v2196
    %2268 = vmatmul.bf16.gmra.mxu0 %v2060
    %v2269 = vpop.f32.mrf.mxu0
    %v2270 = vadd.f32 0.0, %v2269
    %v2271 = vpop.f32.mrf.mxu0
    %2272 = vdwg.mxu0
    %2273 = vmatpush.bf16.msra.mxu0 %v2225
    %2274 = vmatpush.bf16.msra.mxu0 %v2221
    %2275 = vmatpush.bf16.msra.mxu0 %v2217
    %2276 = vmatpush.bf16.msra.mxu0 %v2213
    %2277 = vmatpush.bf16.msra.mxu0 %v2209
    %2278 = vmatpush.bf16.msra.mxu0 %v2205
    %2279 = vmatpush.bf16.msra.mxu0 %v2201
    %2280 = vmatpush.bf16.msra.mxu0 %v2197
    %2281 = vmatmul.bf16.gmra.mxu0 %v2060
    %v2282 = vpop.f32.mrf.mxu0
    %v2283 = vadd.f32 0.0, %v2282
    %v2284 = vpop.f32.mrf.mxu0
    %2285 = vdwg.mxu0
    %2286 = vmatpush.bf16.msra.mxu0 %v2226
    %2287 = vmatpush.bf16.msra.mxu0 %v2222
    %2288 = vmatpush.bf16.msra.mxu0 %v2218
    %2289 = vmatpush.bf16.msra.mxu0 %v2214
    %2290 = vmatpush.bf16.msra.mxu0 %v2210
    %2291 = vmatpush.bf16.msra.mxu0 %v2206
    %2292 = vmatpush.bf16.msra.mxu0 %v2202
    %2293 = vmatpush.bf16.msra.mxu0 %v2198
    %2294 = vmatmul.bf16.gmra.mxu0 %v2060
    %v2295 = vpop.f32.mrf.mxu0
    %v2296 = vadd.f32 0.0, %v2295
    %v2297 = vpop.f32.mrf.mxu0
    %2298 = vdwg.mxu0
    %2299 = vmatpush.bf16.msra.mxu0 %v2227
    %2300 = vmatpush.bf16.msra.mxu0 %v2223
    %2301 = vmatpush.bf16.msra.mxu0 %v2219
    %2302 = vmatpush.bf16.msra.mxu0 %v2215
    %2303 = vmatpush.bf16.msra.mxu0 %v2211
    %2304 = vmatpush.bf16.msra.mxu0 %v2207
    %2305 = vmatpush.bf16.msra.mxu0 %v2203
    %2306 = vmatpush.bf16.msra.mxu0 %v2199
    %2307 = vmatmul.bf16.gmra.mxu0 %v2060
    %v2308 = vpop.f32.mrf.mxu0
    %v2309 = vadd.f32 0.0, %v2308
    %v2310 = vpop.f32.mrf.mxu0
    %2311 = vdwg.mxu0
    %v2312 = vadd.f32 %v2064, %v2270
    %v2313 = vadd.f32 %v2065, %v2283
    %v2314 = vadd.f32 %v2066, %v2296
    %v2315 = vadd.f32 %v2067, %v2309
    %v2316 = vxor.u32 %v2312, 2147483648
    %v2317 = vmul.f32 %v2316, 1.442695
    %v2318 = vpow.pop %v2317
    %v2319 = vadd.f32 %v2318, 1.0
    %v2320 = vrcp.pop %v2319
    %v2321 = vmul.f32 %v2319, %v2320
    %v2322 = vsub.f32 1.0, %v2321
    %v2323 = vmul.f32 %v2320, %v2322
    %v2324 = vadd.f32 %v2320, %v2323
    %vm2325 = vweird.f32 %v2319
    %vm2326 = vweird.f32 %v2320
    %vm2327 = vmor %vm2325, %vm2326
    %v2328 = vsel %vm2327, %v2320, %v2324
    %v2329 = vand.u32 2147483647, %v2319
    %vm2330 = vcmp.eq.f32.partialorder %v2329, 8.507059e+37
    %v2331 = vand.u32 %v2319, 2147483648
    %v2332 = vor.u32 1.1754944e-38, %v2331
    %v2333 = vsel %vm2330, %v2332, %v2328
    %v2334 = vmul.f32 1.0, %v2333
    %v2335 = vxor.u32 %v2313, 2147483648
    %v2336 = vmul.f32 %v2335, 1.442695
    %v2337 = vpow.pop %v2336
    %v2338 = vadd.f32 %v2337, 1.0
    %v2339 = vrcp.pop %v2338
    %v2340 = vmul.f32 %v2338, %v2339
    %v2341 = vsub.f32 1.0, %v2340
    %v2342 = vmul.f32 %v2339, %v2341
    %v2343 = vadd.f32 %v2339, %v2342
    %vm2344 = vweird.f32 %v2338
    %vm2345 = vweird.f32 %v2339
    %vm2346 = vmor %vm2344, %vm2345
    %v2347 = vsel %vm2346, %v2339, %v2343
    %v2348 = vand.u32 2147483647, %v2338
    %vm2349 = vcmp.eq.f32.partialorder %v2348, 8.507059e+37
    %v2350 = vand.u32 %v2338, 2147483648
    %v2351 = vor.u32 1.1754944e-38, %v2350
    %v2352 = vsel %vm2349, %v2351, %v2347
    %v2353 = vmul.f32 1.0, %v2352
    %v2354 = vtanh.pop %v2314
    %v2355 = vxor.u32 %v2315, 2147483648
    %v2356 = vmul.f32 %v2355, 1.442695
    %v2357 = vpow.pop %v2356
    %v2358 = vadd.f32 %v2357, 1.0
    %v2359 = vrcp.pop %v2358
    %v2360 = vmul.f32 %v2358, %v2359
    %v2361 = vsub.f32 1.0, %v2360
    %v2362 = vmul.f32 %v2359, %v2361
    %v2363 = vadd.f32 %v2359, %v2362
    %vm2364 = vweird.f32 %v2358
    %vm2365 = vweird.f32 %v2359
    %vm2366 = vmor %vm2364, %vm2365
    %v2367 = vsel %vm2366, %v2359, %v2363
    %v2368 = vand.u32 2147483647, %v2358
    %vm2369 = vcmp.eq.f32.partialorder %v2368, 8.507059e+37
    %v2370 = vand.u32 %v2358, 2147483648
    %v2371 = vor.u32 1.1754944e-38, %v2370
    %v2372 = vsel %vm2369, %v2371, %v2367
    %v2373 = vmul.f32 1.0, %v2372
    %v2374 = vmul.f32 %v2353, %v2057
    %v2375 = vmul.f32 %v2334, %v2354
    %v2376 = vadd.f32 %v2374, %v2375
    %v2377 = vtanh.pop %v2376
    %v2378 = vmul.f32 %v2373, %v2377
    %v2379 = vpack.c.bf16 %v2378, %v2378
    %s2380 = scalar_lea.vmem [#allocation13], 20
    %2381 = vst [vmem:[%s2380] sm:$0xf] %v2379
    %s2382 = scalar_lea.vmem [#allocation2], 192
    %v2383 = vld [vmem:[%s2382] sm:$0xff]
    %v2384 = vld [vmem:[%s2382 + $0x8] sm:$0xff]
    %v2385 = vld [vmem:[%s2382 + $0x10] sm:$0xff]
    %v2386 = vld [vmem:[%s2382 + $0x18] sm:$0xff]
    %v2387 = vld [vmem:[#allocation10] sm:$0xff]
    %v2388 = vld [vmem:[#allocation10 + $0x8] sm:$0xff]
    %v2389 = vld [vmem:[#allocation10 + $0x10] sm:$0xff]
    %v2390 = vld [vmem:[#allocation10 + $0x18] sm:$0xff]
    %v2391 = vld [vmem:[#allocation10 + $0x20] sm:$0xff]
    %v2392 = vld [vmem:[#allocation10 + $0x28] sm:$0xff]
    %v2393 = vld [vmem:[#allocation10 + $0x30] sm:$0xff]
    %v2394 = vld [vmem:[#allocation10 + $0x38] sm:$0xff]
    %v2395 = vld [vmem:[#allocation10 + $0x40] sm:$0xff]
    %v2396 = vld [vmem:[#allocation10 + $0x48] sm:$0xff]
    %v2397 = vld [vmem:[#allocation10 + $0x50] sm:$0xff]
    %v2398 = vld [vmem:[#allocation10 + $0x58] sm:$0xff]
    %v2399 = vld [vmem:[#allocation10 + $0x60] sm:$0xff]
    %v2400 = vld [vmem:[#allocation10 + $0x68] sm:$0xff]
    %v2401 = vld [vmem:[#allocation10 + $0x70] sm:$0xff]
    %v2402 = vld [vmem:[#allocation10 + $0x78] sm:$0xff]
    %v2403 = vld [vmem:[#allocation10 + $0x80] sm:$0xff]
    %v2404 = vld [vmem:[#allocation10 + $0x88] sm:$0xff]
    %v2405 = vld [vmem:[#allocation10 + $0x90] sm:$0xff]
    %v2406 = vld [vmem:[#allocation10 + $0x98] sm:$0xff]
    %v2407 = vld [vmem:[#allocation10 + $0xa0] sm:$0xff]
    %v2408 = vld [vmem:[#allocation10 + $0xa8] sm:$0xff]
    %v2409 = vld [vmem:[#allocation10 + $0xb0] sm:$0xff]
    %v2410 = vld [vmem:[#allocation10 + $0xb8] sm:$0xff]
    %v2411 = vld [vmem:[#allocation10 + $0xc0] sm:$0xff]
    %v2412 = vld [vmem:[#allocation10 + $0xc8] sm:$0xff]
    %v2413 = vld [vmem:[#allocation10 + $0xd0] sm:$0xff]
    %v2414 = vld [vmem:[#allocation10 + $0xd8] sm:$0xff]
    %v2415 = vld [vmem:[#allocation10 + $0xe0] sm:$0xff]
    %v2416 = vld [vmem:[#allocation10 + $0xe8] sm:$0xff]
    %v2417 = vld [vmem:[#allocation10 + $0xf0] sm:$0xff]
    %v2418 = vld [vmem:[#allocation10 + $0xf8] sm:$0xff]
    %v2451 = vunpack.c.l.b16 %v2387
    %v2452 = vunpack.c.h.b16 %v2387
    %v2453 = vunpack.c.l.b16 %v2388
    %v2454 = vunpack.c.h.b16 %v2388
    %v2455 = vunpack.c.l.b16 %v2389
    %v2456 = vunpack.c.h.b16 %v2389
    %v2457 = vunpack.c.l.b16 %v2390
    %v2458 = vunpack.c.h.b16 %v2390
    %v2459 = vunpack.c.l.b16 %v2391
    %v2460 = vunpack.c.h.b16 %v2391
    %v2461 = vunpack.c.l.b16 %v2392
    %v2462 = vunpack.c.h.b16 %v2392
    %v2463 = vunpack.c.l.b16 %v2393
    %v2464 = vunpack.c.h.b16 %v2393
    %v2465 = vunpack.c.l.b16 %v2394
    %v2466 = vunpack.c.h.b16 %v2394
    %v2467 = vunpack.c.l.b16 %v2395
    %v2468 = vunpack.c.h.b16 %v2395
    %v2469 = vunpack.c.l.b16 %v2396
    %v2470 = vunpack.c.h.b16 %v2396
    %v2471 = vunpack.c.l.b16 %v2397
    %v2472 = vunpack.c.h.b16 %v2397
    %v2473 = vunpack.c.l.b16 %v2398
    %v2474 = vunpack.c.h.b16 %v2398
    %v2475 = vunpack.c.l.b16 %v2399
    %v2476 = vunpack.c.h.b16 %v2399
    %v2477 = vunpack.c.l.b16 %v2400
    %v2478 = vunpack.c.h.b16 %v2400
    %v2479 = vunpack.c.l.b16 %v2401
    %v2480 = vunpack.c.h.b16 %v2401
    %v2481 = vunpack.c.l.b16 %v2402
    %v2482 = vunpack.c.h.b16 %v2402
    %v2483 = vunpack.c.l.b16 %v2403
    %v2484 = vunpack.c.h.b16 %v2403
    %v2485 = vunpack.c.l.b16 %v2404
    %v2486 = vunpack.c.h.b16 %v2404
    %v2487 = vunpack.c.l.b16 %v2405
    %v2488 = vunpack.c.h.b16 %v2405
    %v2489 = vunpack.c.l.b16 %v2406
    %v2490 = vunpack.c.h.b16 %v2406
    %v2491 = vunpack.c.l.b16 %v2407
    %v2492 = vunpack.c.h.b16 %v2407
    %v2493 = vunpack.c.l.b16 %v2408
    %v2494 = vunpack.c.h.b16 %v2408
    %v2495 = vunpack.c.l.b16 %v2409
    %v2496 = vunpack.c.h.b16 %v2409
    %v2497 = vunpack.c.l.b16 %v2410
    %v2498 = vunpack.c.h.b16 %v2410
    %v2499 = vunpack.c.l.b16 %v2411
    %v2500 = vunpack.c.h.b16 %v2411
    %v2501 = vunpack.c.l.b16 %v2412
    %v2502 = vunpack.c.h.b16 %v2412
    %v2503 = vunpack.c.l.b16 %v2413
    %v2504 = vunpack.c.h.b16 %v2413
    %v2505 = vunpack.c.l.b16 %v2414
    %v2506 = vunpack.c.h.b16 %v2414
    %v2507 = vunpack.c.l.b16 %v2415
    %v2508 = vunpack.c.h.b16 %v2415
    %v2509 = vunpack.c.l.b16 %v2416
    %v2510 = vunpack.c.h.b16 %v2416
    %v2511 = vunpack.c.l.b16 %v2417
    %v2512 = vunpack.c.h.b16 %v2417
    %v2513 = vunpack.c.l.b16 %v2418
    %v2514 = vunpack.c.h.b16 %v2418
    %v2515 = vpack.c.b16 %v2455, %v2451
    %v2516 = vpack.c.b16 %v2456, %v2452
    %v2517 = vpack.c.b16 %v2457, %v2453
    %v2518 = vpack.c.b16 %v2458, %v2454
    %v2519 = vpack.c.b16 %v2463, %v2459
    %v2520 = vpack.c.b16 %v2464, %v2460
    %v2521 = vpack.c.b16 %v2465, %v2461
    %v2522 = vpack.c.b16 %v2466, %v2462
    %v2523 = vpack.c.b16 %v2471, %v2467
    %v2524 = vpack.c.b16 %v2472, %v2468
    %v2525 = vpack.c.b16 %v2473, %v2469
    %v2526 = vpack.c.b16 %v2474, %v2470
    %v2527 = vpack.c.b16 %v2479, %v2475
    %v2528 = vpack.c.b16 %v2480, %v2476
    %v2529 = vpack.c.b16 %v2481, %v2477
    %v2530 = vpack.c.b16 %v2482, %v2478
    %v2531 = vpack.c.b16 %v2487, %v2483
    %v2532 = vpack.c.b16 %v2488, %v2484
    %v2533 = vpack.c.b16 %v2489, %v2485
    %v2534 = vpack.c.b16 %v2490, %v2486
    %v2535 = vpack.c.b16 %v2495, %v2491
    %v2536 = vpack.c.b16 %v2496, %v2492
    %v2537 = vpack.c.b16 %v2497, %v2493
    %v2538 = vpack.c.b16 %v2498, %v2494
    %v2539 = vpack.c.b16 %v2503, %v2499
    %v2540 = vpack.c.b16 %v2504, %v2500
    %v2541 = vpack.c.b16 %v2505, %v2501
    %v2542 = vpack.c.b16 %v2506, %v2502
    %v2543 = vpack.c.b16 %v2511, %v2507
    %v2544 = vpack.c.b16 %v2512, %v2508
    %v2545 = vpack.c.b16 %v2513, %v2509
    %v2546 = vpack.c.b16 %v2514, %v2510
    %2579 = vmatpush.bf16.msra.mxu0 %v2543
    %2580 = vmatpush.bf16.msra.mxu0 %v2539
    %2581 = vmatpush.bf16.msra.mxu0 %v2535
    %2582 = vmatpush.bf16.msra.mxu0 %v2531
    %2583 = vmatpush.bf16.msra.mxu0 %v2527
    %2584 = vmatpush.bf16.msra.mxu0 %v2523
    %2585 = vmatpush.bf16.msra.mxu0 %v2519
    %2586 = vmatpush.bf16.msra.mxu0 %v2515
    %2587 = vmatmul.bf16.gmra.mxu0 %v2379
    %v2588 = vpop.f32.mrf.mxu0
    %v2589 = vadd.f32 0.0, %v2588
    %v2590 = vpop.f32.mrf.mxu0
    %2591 = vdwg.mxu0
    %2592 = vmatpush.bf16.msra.mxu0 %v2544
    %2593 = vmatpush.bf16.msra.mxu0 %v2540
    %2594 = vmatpush.bf16.msra.mxu0 %v2536
    %2595 = vmatpush.bf16.msra.mxu0 %v2532
    %2596 = vmatpush.bf16.msra.mxu0 %v2528
    %2597 = vmatpush.bf16.msra.mxu0 %v2524
    %2598 = vmatpush.bf16.msra.mxu0 %v2520
    %2599 = vmatpush.bf16.msra.mxu0 %v2516
    %2600 = vmatmul.bf16.gmra.mxu0 %v2379
    %v2601 = vpop.f32.mrf.mxu0
    %v2602 = vadd.f32 0.0, %v2601
    %v2603 = vpop.f32.mrf.mxu0
    %2604 = vdwg.mxu0
    %2605 = vmatpush.bf16.msra.mxu0 %v2545
    %2606 = vmatpush.bf16.msra.mxu0 %v2541
    %2607 = vmatpush.bf16.msra.mxu0 %v2537
    %2608 = vmatpush.bf16.msra.mxu0 %v2533
    %2609 = vmatpush.bf16.msra.mxu0 %v2529
    %2610 = vmatpush.bf16.msra.mxu0 %v2525
    %2611 = vmatpush.bf16.msra.mxu0 %v2521
    %2612 = vmatpush.bf16.msra.mxu0 %v2517
    %2613 = vmatmul.bf16.gmra.mxu0 %v2379
    %v2614 = vpop.f32.mrf.mxu0
    %v2615 = vadd.f32 0.0, %v2614
    %v2616 = vpop.f32.mrf.mxu0
    %2617 = vdwg.mxu0
    %2618 = vmatpush.bf16.msra.mxu0 %v2546
    %2619 = vmatpush.bf16.msra.mxu0 %v2542
    %2620 = vmatpush.bf16.msra.mxu0 %v2538
    %2621 = vmatpush.bf16.msra.mxu0 %v2534
    %2622 = vmatpush.bf16.msra.mxu0 %v2530
    %2623 = vmatpush.bf16.msra.mxu0 %v2526
    %2624 = vmatpush.bf16.msra.mxu0 %v2522
    %2625 = vmatpush.bf16.msra.mxu0 %v2518
    %2626 = vmatmul.bf16.gmra.mxu0 %v2379
    %v2627 = vpop.f32.mrf.mxu0
    %v2628 = vadd.f32 0.0, %v2627
    %v2629 = vpop.f32.mrf.mxu0
    %2630 = vdwg.mxu0
    %v2631 = vadd.f32 %v2383, %v2589
    %v2632 = vadd.f32 %v2384, %v2602
    %v2633 = vadd.f32 %v2385, %v2615
    %v2634 = vadd.f32 %v2386, %v2628
    %v2635 = vxor.u32 %v2631, 2147483648
    %v2636 = vmul.f32 %v2635, 1.442695
    %v2637 = vpow.pop %v2636
    %v2638 = vadd.f32 %v2637, 1.0
    %v2639 = vrcp.pop %v2638
    %v2640 = vmul.f32 %v2638, %v2639
    %v2641 = vsub.f32 1.0, %v2640
    %v2642 = vmul.f32 %v2639, %v2641
    %v2643 = vadd.f32 %v2639, %v2642
    %vm2644 = vweird.f32 %v2638
    %vm2645 = vweird.f32 %v2639
    %vm2646 = vmor %vm2644, %vm2645
    %v2647 = vsel %vm2646, %v2639, %v2643
    %v2648 = vand.u32 2147483647, %v2638
    %vm2649 = vcmp.eq.f32.partialorder %v2648, 8.507059e+37
    %v2650 = vand.u32 %v2638, 2147483648
    %v2651 = vor.u32 1.1754944e-38, %v2650
    %v2652 = vsel %vm2649, %v2651, %v2647
    %v2653 = vmul.f32 1.0, %v2652
    %v2654 = vxor.u32 %v2632, 2147483648
    %v2655 = vmul.f32 %v2654, 1.442695
    %v2656 = vpow.pop %v2655
    %v2657 = vadd.f32 %v2656, 1.0
    %v2658 = vrcp.pop %v2657
    %v2659 = vmul.f32 %v2657, %v2658
    %v2660 = vsub.f32 1.0, %v2659
    %v2661 = vmul.f32 %v2658, %v2660
    %v2662 = vadd.f32 %v2658, %v2661
    %vm2663 = vweird.f32 %v2657
    %vm2664 = vweird.f32 %v2658
    %vm2665 = vmor %vm2663, %vm2664
    %v2666 = vsel %vm2665, %v2658, %v2662
    %v2667 = vand.u32 2147483647, %v2657
    %vm2668 = vcmp.eq.f32.partialorder %v2667, 8.507059e+37
    %v2669 = vand.u32 %v2657, 2147483648
    %v2670 = vor.u32 1.1754944e-38, %v2669
    %v2671 = vsel %vm2668, %v2670, %v2666
    %v2672 = vmul.f32 1.0, %v2671
    %v2673 = vtanh.pop %v2633
    %v2674 = vxor.u32 %v2634, 2147483648
    %v2675 = vmul.f32 %v2674, 1.442695
    %v2676 = vpow.pop %v2675
    %v2677 = vadd.f32 %v2676, 1.0
    %v2678 = vrcp.pop %v2677
    %v2679 = vmul.f32 %v2677, %v2678
    %v2680 = vsub.f32 1.0, %v2679
    %v2681 = vmul.f32 %v2678, %v2680
    %v2682 = vadd.f32 %v2678, %v2681
    %vm2683 = vweird.f32 %v2677
    %vm2684 = vweird.f32 %v2678
    %vm2685 = vmor %vm2683, %vm2684
    %v2686 = vsel %vm2685, %v2678, %v2682
    %v2687 = vand.u32 2147483647, %v2677
    %vm2688 = vcmp.eq.f32.partialorder %v2687, 8.507059e+37
    %v2689 = vand.u32 %v2677, 2147483648
    %v2690 = vor.u32 1.1754944e-38, %v2689
    %v2691 = vsel %vm2688, %v2690, %v2686
    %v2692 = vmul.f32 1.0, %v2691
    %v2693 = vmul.f32 %v2672, %v2376
    %v2694 = vmul.f32 %v2653, %v2673
    %v2695 = vadd.f32 %v2693, %v2694
    %v2696 = vtanh.pop %v2695
    %v2697 = vmul.f32 %v2692, %v2696
    %v2698 = vpack.c.bf16 %v2697, %v2697
    %s2699 = scalar_lea.vmem [#allocation13], 24
    %2700 = vst [vmem:[%s2699] sm:$0xf] %v2698
    %s2701 = scalar_lea.vmem [#allocation2], 224
    %v2702 = vld [vmem:[%s2701] sm:$0xff]
    %v2703 = vld [vmem:[%s2701 + $0x8] sm:$0xff]
    %v2704 = vld [vmem:[%s2701 + $0x10] sm:$0xff]
    %v2705 = vld [vmem:[%s2701 + $0x18] sm:$0xff]
    %v2706 = vld [vmem:[#allocation10] sm:$0xff]
    %v2707 = vld [vmem:[#allocation10 + $0x8] sm:$0xff]
    %v2708 = vld [vmem:[#allocation10 + $0x10] sm:$0xff]
    %v2709 = vld [vmem:[#allocation10 + $0x18] sm:$0xff]
    %v2710 = vld [vmem:[#allocation10 + $0x20] sm:$0xff]
    %v2711 = vld [vmem:[#allocation10 + $0x28] sm:$0xff]
    %v2712 = vld [vmem:[#allocation10 + $0x30] sm:$0xff]
    %v2713 = vld [vmem:[#allocation10 + $0x38] sm:$0xff]
    %v2714 = vld [vmem:[#allocation10 + $0x40] sm:$0xff]
    %v2715 = vld [vmem:[#allocation10 + $0x48] sm:$0xff]
    %v2716 = vld [vmem:[#allocation10 + $0x50] sm:$0xff]
    %v2717 = vld [vmem:[#allocation10 + $0x58] sm:$0xff]
    %v2718 = vld [vmem:[#allocation10 + $0x60] sm:$0xff]
    %v2719 = vld [vmem:[#allocation10 + $0x68] sm:$0xff]
    %v2720 = vld [vmem:[#allocation10 + $0x70] sm:$0xff]
    %v2721 = vld [vmem:[#allocation10 + $0x78] sm:$0xff]
    %v2722 = vld [vmem:[#allocation10 + $0x80] sm:$0xff]
    %v2723 = vld [vmem:[#allocation10 + $0x88] sm:$0xff]
    %v2724 = vld [vmem:[#allocation10 + $0x90] sm:$0xff]
    %v2725 = vld [vmem:[#allocation10 + $0x98] sm:$0xff]
    %v2726 = vld [vmem:[#allocation10 + $0xa0] sm:$0xff]
    %v2727 = vld [vmem:[#allocation10 + $0xa8] sm:$0xff]
    %v2728 = vld [vmem:[#allocation10 + $0xb0] sm:$0xff]
    %v2729 = vld [vmem:[#allocation10 + $0xb8] sm:$0xff]
    %v2730 = vld [vmem:[#allocation10 + $0xc0] sm:$0xff]
    %v2731 = vld [vmem:[#allocation10 + $0xc8] sm:$0xff]
    %v2732 = vld [vmem:[#allocation10 + $0xd0] sm:$0xff]
    %v2733 = vld [vmem:[#allocation10 + $0xd8] sm:$0xff]
    %v2734 = vld [vmem:[#allocation10 + $0xe0] sm:$0xff]
    %v2735 = vld [vmem:[#allocation10 + $0xe8] sm:$0xff]
    %v2736 = vld [vmem:[#allocation10 + $0xf0] sm:$0xff]
    %v2737 = vld [vmem:[#allocation10 + $0xf8] sm:$0xff]
    %v2770 = vunpack.c.l.b16 %v2706
    %v2771 = vunpack.c.h.b16 %v2706
    %v2772 = vunpack.c.l.b16 %v2707
    %v2773 = vunpack.c.h.b16 %v2707
    %v2774 = vunpack.c.l.b16 %v2708
    %v2775 = vunpack.c.h.b16 %v2708
    %v2776 = vunpack.c.l.b16 %v2709
    %v2777 = vunpack.c.h.b16 %v2709
    %v2778 = vunpack.c.l.b16 %v2710
    %v2779 = vunpack.c.h.b16 %v2710
    %v2780 = vunpack.c.l.b16 %v2711
    %v2781 = vunpack.c.h.b16 %v2711
    %v2782 = vunpack.c.l.b16 %v2712
    %v2783 = vunpack.c.h.b16 %v2712
    %v2784 = vunpack.c.l.b16 %v2713
    %v2785 = vunpack.c.h.b16 %v2713
    %v2786 = vunpack.c.l.b16 %v2714
    %v2787 = vunpack.c.h.b16 %v2714
    %v2788 = vunpack.c.l.b16 %v2715
    %v2789 = vunpack.c.h.b16 %v2715
    %v2790 = vunpack.c.l.b16 %v2716
    %v2791 = vunpack.c.h.b16 %v2716
    %v2792 = vunpack.c.l.b16 %v2717
    %v2793 = vunpack.c.h.b16 %v2717
    %v2794 = vunpack.c.l.b16 %v2718
    %v2795 = vunpack.c.h.b16 %v2718
    %v2796 = vunpack.c.l.b16 %v2719
    %v2797 = vunpack.c.h.b16 %v2719
    %v2798 = vunpack.c.l.b16 %v2720
    %v2799 = vunpack.c.h.b16 %v2720
    %v2800 = vunpack.c.l.b16 %v2721
    %v2801 = vunpack.c.h.b16 %v2721
    %v2802 = vunpack.c.l.b16 %v2722
    %v2803 = vunpack.c.h.b16 %v2722
    %v2804 = vunpack.c.l.b16 %v2723
    %v2805 = vunpack.c.h.b16 %v2723
    %v2806 = vunpack.c.l.b16 %v2724
    %v2807 = vunpack.c.h.b16 %v2724
    %v2808 = vunpack.c.l.b16 %v2725
    %v2809 = vunpack.c.h.b16 %v2725
    %v2810 = vunpack.c.l.b16 %v2726
    %v2811 = vunpack.c.h.b16 %v2726
    %v2812 = vunpack.c.l.b16 %v2727
    %v2813 = vunpack.c.h.b16 %v2727
    %v2814 = vunpack.c.l.b16 %v2728
    %v2815 = vunpack.c.h.b16 %v2728
    %v2816 = vunpack.c.l.b16 %v2729
    %v2817 = vunpack.c.h.b16 %v2729
    %v2818 = vunpack.c.l.b16 %v2730
    %v2819 = vunpack.c.h.b16 %v2730
    %v2820 = vunpack.c.l.b16 %v2731
    %v2821 = vunpack.c.h.b16 %v2731
    %v2822 = vunpack.c.l.b16 %v2732
    %v2823 = vunpack.c.h.b16 %v2732
    %v2824 = vunpack.c.l.b16 %v2733
    %v2825 = vunpack.c.h.b16 %v2733
    %v2826 = vunpack.c.l.b16 %v2734
    %v2827 = vunpack.c.h.b16 %v2734
    %v2828 = vunpack.c.l.b16 %v2735
    %v2829 = vunpack.c.h.b16 %v2735
    %v2830 = vunpack.c.l.b16 %v2736
    %v2831 = vunpack.c.h.b16 %v2736
    %v2832 = vunpack.c.l.b16 %v2737
    %v2833 = vunpack.c.h.b16 %v2737
    %v2834 = vpack.c.b16 %v2774, %v2770
    %v2835 = vpack.c.b16 %v2775, %v2771
    %v2836 = vpack.c.b16 %v2776, %v2772
    %v2837 = vpack.c.b16 %v2777, %v2773
    %v2838 = vpack.c.b16 %v2782, %v2778
    %v2839 = vpack.c.b16 %v2783, %v2779
    %v2840 = vpack.c.b16 %v2784, %v2780
    %v2841 = vpack.c.b16 %v2785, %v2781
    %v2842 = vpack.c.b16 %v2790, %v2786
    %v2843 = vpack.c.b16 %v2791, %v2787
    %v2844 = vpack.c.b16 %v2792, %v2788
    %v2845 = vpack.c.b16 %v2793, %v2789
    %v2846 = vpack.c.b16 %v2798, %v2794
    %v2847 = vpack.c.b16 %v2799, %v2795
    %v2848 = vpack.c.b16 %v2800, %v2796
    %v2849 = vpack.c.b16 %v2801, %v2797
    %v2850 = vpack.c.b16 %v2806, %v2802
    %v2851 = vpack.c.b16 %v2807, %v2803
    %v2852 = vpack.c.b16 %v2808, %v2804
    %v2853 = vpack.c.b16 %v2809, %v2805
    %v2854 = vpack.c.b16 %v2814, %v2810
    %v2855 = vpack.c.b16 %v2815, %v2811
    %v2856 = vpack.c.b16 %v2816, %v2812
    %v2857 = vpack.c.b16 %v2817, %v2813
    %v2858 = vpack.c.b16 %v2822, %v2818
    %v2859 = vpack.c.b16 %v2823, %v2819
    %v2860 = vpack.c.b16 %v2824, %v2820
    %v2861 = vpack.c.b16 %v2825, %v2821
    %v2862 = vpack.c.b16 %v2830, %v2826
    %v2863 = vpack.c.b16 %v2831, %v2827
    %v2864 = vpack.c.b16 %v2832, %v2828
    %v2865 = vpack.c.b16 %v2833, %v2829
    %2898 = vmatpush.bf16.msra.mxu0 %v2862
    %2899 = vmatpush.bf16.msra.mxu0 %v2858
    %2900 = vmatpush.bf16.msra.mxu0 %v2854
    %2901 = vmatpush.bf16.msra.mxu0 %v2850
    %2902 = vmatpush.bf16.msra.mxu0 %v2846
    %2903 = vmatpush.bf16.msra.mxu0 %v2842
    %2904 = vmatpush.bf16.msra.mxu0 %v2838
    %2905 = vmatpush.bf16.msra.mxu0 %v2834
    %2906 = vmatmul.bf16.gmra.mxu0 %v2698
    %v2907 = vpop.f32.mrf.mxu0
    %v2908 = vadd.f32 0.0, %v2907
    %v2909 = vpop.f32.mrf.mxu0
    %2910 = vdwg.mxu0
    %2911 = vmatpush.bf16.msra.mxu0 %v2863
    %2912 = vmatpush.bf16.msra.mxu0 %v2859
    %2913 = vmatpush.bf16.msra.mxu0 %v2855
    %2914 = vmatpush.bf16.msra.mxu0 %v2851
    %2915 = vmatpush.bf16.msra.mxu0 %v2847
    %2916 = vmatpush.bf16.msra.mxu0 %v2843
    %2917 = vmatpush.bf16.msra.mxu0 %v2839
    %2918 = vmatpush.bf16.msra.mxu0 %v2835
    %2919 = vmatmul.bf16.gmra.mxu0 %v2698
    %v2920 = vpop.f32.mrf.mxu0
    %v2921 = vadd.f32 0.0, %v2920
    %v2922 = vpop.f32.mrf.mxu0
    %2923 = vdwg.mxu0
    %2924 = vmatpush.bf16.msra.mxu0 %v2864
    %2925 = vmatpush.bf16.msra.mxu0 %v2860
    %2926 = vmatpush.bf16.msra.mxu0 %v2856
    %2927 = vmatpush.bf16.msra.mxu0 %v2852
    %2928 = vmatpush.bf16.msra.mxu0 %v2848
    %2929 = vmatpush.bf16.msra.mxu0 %v2844
    %2930 = vmatpush.bf16.msra.mxu0 %v2840
    %2931 = vmatpush.bf16.msra.mxu0 %v2836
    %2932 = vmatmul.bf16.gmra.mxu0 %v2698
    %v2933 = vpop.f32.mrf.mxu0
    %v2934 = vadd.f32 0.0, %v2933
    %v2935 = vpop.f32.mrf.mxu0
    %2936 = vdwg.mxu0
    %2937 = vmatpush.bf16.msra.mxu0 %v2865
    %2938 = vmatpush.bf16.msra.mxu0 %v2861
    %2939 = vmatpush.bf16.msra.mxu0 %v2857
    %2940 = vmatpush.bf16.msra.mxu0 %v2853
    %2941 = vmatpush.bf16.msra.mxu0 %v2849
    %2942 = vmatpush.bf16.msra.mxu0 %v2845
    %2943 = vmatpush.bf16.msra.mxu0 %v2841
    %2944 = vmatpush.bf16.msra.mxu0 %v2837
    %2945 = vmatmul.bf16.gmra.mxu0 %v2698
    %v2946 = vpop.f32.mrf.mxu0
    %v2947 = vadd.f32 0.0, %v2946
    %v2948 = vpop.f32.mrf.mxu0
    %2949 = vdwg.mxu0
    %v2950 = vadd.f32 %v2702, %v2908
    %v2951 = vadd.f32 %v2703, %v2921
    %v2952 = vadd.f32 %v2704, %v2934
    %v2953 = vadd.f32 %v2705, %v2947
    %v2954 = vxor.u32 %v2950, 2147483648
    %v2955 = vmul.f32 %v2954, 1.442695
    %v2956 = vpow.pop %v2955
    %v2957 = vadd.f32 %v2956, 1.0
    %v2958 = vrcp.pop %v2957
    %v2959 = vmul.f32 %v2957, %v2958
    %v2960 = vsub.f32 1.0, %v2959
    %v2961 = vmul.f32 %v2958, %v2960
    %v2962 = vadd.f32 %v2958, %v2961
    %vm2963 = vweird.f32 %v2957
    %vm2964 = vweird.f32 %v2958
    %vm2965 = vmor %vm2963, %vm2964
    %v2966 = vsel %vm2965, %v2958, %v2962
    %v2967 = vand.u32 2147483647, %v2957
    %vm2968 = vcmp.eq.f32.partialorder %v2967, 8.507059e+37
    %v2969 = vand.u32 %v2957, 2147483648
    %v2970 = vor.u32 1.1754944e-38, %v2969
    %v2971 = vsel %vm2968, %v2970, %v2966
    %v2972 = vmul.f32 1.0, %v2971
    %v2973 = vxor.u32 %v2951, 2147483648
    %v2974 = vmul.f32 %v2973, 1.442695
    %v2975 = vpow.pop %v2974
    %v2976 = vadd.f32 %v2975, 1.0
    %v2977 = vrcp.pop %v2976
    %v2978 = vmul.f32 %v2976, %v2977
    %v2979 = vsub.f32 1.0, %v2978
    %v2980 = vmul.f32 %v2977, %v2979
    %v2981 = vadd.f32 %v2977, %v2980
    %vm2982 = vweird.f32 %v2976
    %vm2983 = vweird.f32 %v2977
    %vm2984 = vmor %vm2982, %vm2983
    %v2985 = vsel %vm2984, %v2977, %v2981
    %v2986 = vand.u32 2147483647, %v2976
    %vm2987 = vcmp.eq.f32.partialorder %v2986, 8.507059e+37
    %v2988 = vand.u32 %v2976, 2147483648
    %v2989 = vor.u32 1.1754944e-38, %v2988
    %v2990 = vsel %vm2987, %v2989, %v2985
    %v2991 = vmul.f32 1.0, %v2990
    %v2992 = vtanh.pop %v2952
    %v2993 = vxor.u32 %v2953, 2147483648
    %v2994 = vmul.f32 %v2993, 1.442695
    %v2995 = vpow.pop %v2994
    %v2996 = vadd.f32 %v2995, 1.0
    %v2997 = vrcp.pop %v2996
    %v2998 = vmul.f32 %v2996, %v2997
    %v2999 = vsub.f32 1.0, %v2998
    %v3000 = vmul.f32 %v2997, %v2999
    %v3001 = vadd.f32 %v2997, %v3000
    %vm3002 = vweird.f32 %v2996
    %vm3003 = vweird.f32 %v2997
    %vm3004 = vmor %vm3002, %vm3003
    %v3005 = vsel %vm3004, %v2997, %v3001
    %v3006 = vand.u32 2147483647, %v2996
    %vm3007 = vcmp.eq.f32.partialorder %v3006, 8.507059e+37
    %v3008 = vand.u32 %v2996, 2147483648
    %v3009 = vor.u32 1.1754944e-38, %v3008
    %v3010 = vsel %vm3007, %v3009, %v3005
    %v3011 = vmul.f32 1.0, %v3010
    %v3012 = vmul.f32 %v2991, %v2695
    %v3013 = vmul.f32 %v2972, %v2992
    %v3014 = vadd.f32 %v3012, %v3013
    %v3015 = vtanh.pop %v3014
    %v3016 = vmul.f32 %v3011, %v3015
    %v3017 = vpack.c.bf16 %v3016, %v3016
    %s3018 = scalar_lea.vmem [#allocation13], 28
    %3019 = vst [vmem:[%s3018] sm:$0xf] %v3017
    %3020 = vst [vmem:[#allocation3] sm:$0xff] %v3016
    %3021 = vst [vmem:[#allocation4] sm:$0xff] %v3014
    // Predicated region
    $region38: #{tpu_custom_call.1} parent=1 // pred_check
      _
    $region39: #{tpu_custom_call.1} parent=1 // pred_check_branch
      %3023 = sbr.rel (0) target = $region41
    $region40: #{tpu_custom_call.1} parent=1 // pred_region
      %3025 = vsyncadd [#allocation7], 0
      %s3026 = sshll.u32 [#allocation13], 4
      %s3027 = int_to_ptr.vmem [resolvable:$true] %s3026
      %s3028 = sshll.u32 %s4, 4
      %s3029 = int_to_ptr.hbm [resolvable:$true] %s3028
      %3034 = dma.vmem_to_hbm [thread:$0]  %s3027, 512, %s3029, [#allocation7], 64, 64, 4
    $region41: #{tpu_custom_call.1} parent=1 // pred_fallthru
      _
    // Predicated region
    $region42: #{tpu_custom_call.1} parent=1 // pred_check
      _
    $region43: #{tpu_custom_call.1} parent=1 // pred_check_branch
      %3036 = sbr.rel (0) target = $region45
    $region44: #{tpu_custom_call.1} parent=1 // pred_region
      %3038 = dma.done [#allocation7], 512
    $region45: #{tpu_custom_call.1} parent=1 // pred_fallthru
      _
    %3039 = vsyncpa [#allocation6], 1
    %3040 = vsyncpa [#allocation9], 1
    %3041 = vsyncpa [#allocation12], 1
    %3042 = vsyncpa [#allocation7], 1

</llo_original>
